<compile_context>
chip_gen: v6e
topology: v6e:2x2x1
jax: 0.10.0
libtpu: 0.0.40
codegen_flags: <defaults>
</compile_context>

<pallas_src>
import math

import jax
import jax.numpy as jnp
from jax.experimental import pallas as pl
from jax.experimental.pallas import tpu as pltpu

# ---------------- model config (small but faithful to DLRM_Net wiring) -------
B = 1024                                # test batch size (multiple of B_TILE)
B_TILE = 256                            # batch rows per grid step (fills MXU M on v6e/v7x)
M_DEN = 16                              # dense feature dim  (ln_bot[0] = m_den)
M_SPA = 16                              # embedding dim      (ln_bot[-1] = m_spa)
LN_BOT = (M_DEN, 32, M_SPA)             # bottom MLP widths
LN_EMB = (50, 60, 70)                   # rows per embedding table
NNZ = 2                                 # fixed indices per bag (sum pooling)
NUM_TABLES = len(LN_EMB)
NUM_FEA = NUM_TABLES + 1
# arch_interaction_op='dot', arch_interaction_itself=False -> torch Zflat order (j < i)
PAIRS = tuple((i, j) for i in range(NUM_FEA) for j in range(i))
NUM_INT = len(PAIRS) + M_SPA
LN_TOP = (NUM_INT, 32, 16, 1)           # top MLP widths (output = logits)

LANE = 128                              # vreg lane width / alignment unit
K_IN = (1 + NUM_TABLES) * LANE          # 512: fused-matmul K  = [h | table0 | table1 | table2]
SLAB_W = 3 * LANE                       # 384: fused-matmul N  = [L pairs | R pairs | folded x@W]
BIAS_W = LANE + SLAB_W + 2 * LANE       # 768: packed bias vector width

assert max(LN_EMB) <= LANE, "toy tables must fit a 128-lane block (see HBM-gather TODO)"
assert len(PAIRS) * M_SPA <= LANE
assert LN_BOT[1] <= LANE and LN_TOP[1] <= LANE and LN_TOP[2] <= LANE


# ---------------------------- Pallas kernel ----------------------------------
def dlrm_kernel(x_ref, idx_ref, wb0_ref, wf_ref, wtop_ref, bias_ref, out_ref):
    f32, bf16 = jnp.float32, jnp.bfloat16
    bt = x_ref.shape[0]

    # packed biases: [bb0(128) | fused(384) | bt1(128) | bt2(128)]
    b0 = bias_ref[:, 0:LANE]
    bfused = bias_ref[:, LANE:LANE + SLAB_W]
    b1 = bias_ref[:, LANE + SLAB_W:2 * LANE + SLAB_W]
    b2 = bias_ref[:, 2 * LANE + SLAB_W:3 * LANE + SLAB_W]

    # ---- bottom MLP layer 0: Linear -> ReLU (output padded to 128 lanes) ----
    x = x_ref[...].astype(bf16)
    h = jnp.maximum(jnp.dot(x, wb0_ref[...], preferred_element_type=f32) + b0, 0.0)
    blocks = [h.astype(bf16)]                                    # (bt, 128)

    # ---- EmbeddingBag(sum): per-table multi-hot on its own 128-lane block ----
    # TODO(synk): switch to an HBM DMA gather for realistic table sizes.
    idx = idx_ref[...]                                           # (bt, NUM_TABLES*NNZ) int32
    iota = jax.lax.broadcasted_iota(jnp.int32, (bt, LANE), 1)
    for t in range(NUM_TABLES):                                  # static unroll
        m = jnp.zeros((bt, LANE), f32)
        for k in range(NNZ):
            c = t * NNZ + k
            m = m + (iota == idx[:, c:c + 1]).astype(f32)        # counts <= NNZ: exact
        blocks.append(m.astype(bf16))
    hm = jnp.concatenate(blocks, axis=1)                         # (bt, 512) bf16, 128-aligned

    # ---- fused [bottom Linear 1 | 3 bags | duplicated pair operands | x@Wtop0] ----
    slab = jnp.dot(hm, wf_ref[...], preferred_element_type=f32) + bfused   # (bt, 384) f32

    # ---- 'dot' interaction: one elementwise product of two 128-lane blocks ----
    # lanes 16p..16p+15 of prod = feat_i * feat_j for pair p; the per-pair lane sum,
    # lower-triangular select and concat-with-x are folded into wtop rows / slab X block.
    prod = (slab[:, 0:LANE] * slab[:, LANE:2 * LANE]).astype(bf16)         # (bt, 128)

    # ---- top MLP, all layers at 128-lane width ----
    t0 = jnp.maximum(
        slab[:, 2 * LANE:3 * LANE]
        + jnp.dot(prod, wtop_ref[0:LANE, :], preferred_element_type=f32), 0.0)
    t1 = jnp.maximum(
        jnp.dot(t0.astype(bf16), wtop_ref[LANE:2 * LANE, :],
                preferred_element_type=f32) + b1, 0.0)
    t2 = jnp.dot(t1.astype(bf16), wtop_ref[2 * LANE:3 * LANE, :],
                 preferred_element_type=f32) + b2
    out_ref[...] = t2.astype(out_ref.dtype)                      # (bt, 128) bf16, logit in lane 0


# --------------------------- parameter packing --------------------------------
def prepare_params(bot_params, top_params, emb_tables):
    """Quantize to bf16 and pack everything into 4 kernel arrays."""
    f32, bf16 = jnp.float32, jnp.bfloat16
    (wb0, bb0), (wb1, bb1) = bot_params
    (wt0, bt0), (wt1, bt1), (wt2, bt2) = top_params
    q = lambda w: w.astype(bf16).astype(f32)                     # same quantization as reference

    # bottom layer 0, output padded to 128 lanes
    wb0p = jnp.zeros((M_DEN, LANE), f32).at[:, :LN_BOT[1]].set(q(wb0)).astype(bf16)

    wb1q = q(wb1)
    wt0q = q(wt0)
    wt0x = wt0q[:M_SPA, :]                                       # x part of top Linear 0
    embq = [q(t) for t in emb_tables]

    # fused weight (512, 384): rows [h | table0 | table1 | table2] (128 each),
    # cols [L pair operands | R pair operands | folded x@wt0x] (128 each)
    wf = jnp.zeros((K_IN, SLAB_W), f32)
    bfused = jnp.zeros((1, SLAB_W), f32)

    def place(wf, bfused, col0, feat):
        if feat == 0:                                            # bottom-MLP output feature
            wf = wf.at[:LN_BOT[1], col0:col0 + M_SPA].set(wb1q)
            bfused = bfused.at[:, col0:col0 + M_SPA].set(bb1)
        else:                                                    # embedding table feat-1
            t = feat - 1
            r0 = (t + 1) * LANE
            wf = wf.at[r0:r0 + LN_EMB[t], col0:col0 + M_SPA].set(embq[t])
        return wf, bfused

    for p, (fi, fj) in enumerate(PAIRS):
        wf, bfused = place(wf, bfused, p * M_SPA, fi)            # L operand of pair p
        wf, bfused = place(wf, bfused, LANE + p * M_SPA, fj)     # R operand of pair p

    # folded x-contribution to top Linear 0 (valid: no activation after bottom Linear 1)
    wf = wf.at[:LN_BOT[1], 2 * LANE:2 * LANE + LN_TOP[1]].set(wb1q @ wt0x)
    bfused = bfused.at[:, 2 * LANE:2 * LANE + LN_TOP[1]].set(bb1 @ wt0x + bt0)
    wf = wf.astype(bf16)

    # packed top-MLP weight (384, 128):
    #   rows   0:128 : pairwise-product weight (rows 16p..16p+15 = wt0 row of pair p)
    #   rows 128:256 : top Linear 1, rows 256:384 : top Linear 2 (logit in column 0)
    wtop = jnp.zeros((3 * LANE, LANE), f32)
    for p in range(len(PAIRS)):
        wtop = wtop.at[p * M_SPA:(p + 1) * M_SPA, :LN_TOP[1]].set(
            jnp.tile(wt0q[M_SPA + p:M_SPA + p + 1, :], (M_SPA, 1)))
    wtop = wtop.at[LANE:LANE + LN_TOP[1], :LN_TOP[2]].set(q(wt1))
    wtop = wtop.at[2 * LANE:2 * LANE + LN_TOP[2], :LN_TOP[3]].set(q(wt2))
    wtop = wtop.astype(bf16)

    # packed biases (1, 768) f32: [bb0 | fused bias | bt1 | bt2], 128-aligned segments
    bias = jnp.zeros((1, BIAS_W), f32)
    bias = bias.at[:, :LN_BOT[1]].set(bb0)
    bias = bias.at[:, LANE:LANE + SLAB_W].set(bfused)
    bias = bias.at[:, LANE + SLAB_W:LANE + SLAB_W + LN_TOP[2]].set(bt1)
    bias = bias.at[:, 2 * LANE + SLAB_W:2 * LANE + SLAB_W + LN_TOP[3]].set(bt2)

    return wb0p, wf, wtop, bias


# ------------------------------ wrapper ---------------------------------------
def dlrm_forward(dense_x, lS_i, params, b_tile=B_TILE):
    wb0p, wf, wtop, bias = params
    Bn = dense_x.shape[0]
    bt = min(b_tile, Bn)
    assert Bn % bt == 0, "batch must be a multiple of the batch tile"
    grid = (Bn // bt,)

    # pack the three index tensors into ONE (B, 3*NNZ) int32 input (one DMA per step)
    idx = jnp.concatenate(lS_i, axis=1).astype(jnp.int32)

    in_specs = [
        pl.BlockSpec((bt, M_DEN), lambda b: (b, 0)),
        pl.BlockSpec((bt, NUM_TABLES * NNZ), lambda b: (b, 0)),
        # constant index maps -> weights stay VMEM-resident across grid steps
        pl.BlockSpec(wb0p.shape, lambda b: (0, 0)),
        pl.BlockSpec(wf.shape, lambda b: (0, 0)),
        pl.BlockSpec(wtop.shape, lambda b: (0, 0)),
        pl.BlockSpec(bias.shape, lambda b: (0, 0)),
    ]
    out_spec = pl.BlockSpec((bt, LANE), lambda b: (b, 0))

    flops = 2 * Bn * (M_DEN * LANE + K_IN * SLAB_W + 3 * LANE * LANE)
    bytes_accessed = (int(dense_x.nbytes) + int(idx.nbytes)
                      + sum(int(p.nbytes) for p in params) + Bn * LANE * 2)

    out = pl.pallas_call(
        dlrm_kernel,
        out_shape=jax.ShapeDtypeStruct((Bn, LANE), jnp.bfloat16),
        grid=grid,
        in_specs=in_specs,
        out_specs=out_spec,
        compiler_params=pltpu.CompilerParams(
            dimension_semantics=("parallel",)),
        cost_estimate=pl.CostEstimate(
            flops=flops, transcendentals=0, bytes_accessed=bytes_accessed),
    )(dense_x, idx, wb0p, wf, wtop, bias)
    return out[:, :LN_TOP[-1]].astype(jnp.float32)     # drop lane padding -> (B, 1) logits


# --------------------------- pure-JAX reference --------------------------------
def dlrm_ref(dense_x, lS_i, emb_tables, bot_params, top_params):
    """Reference with the same bf16-quantized parameters but f32 activations."""
    q = lambda w: w.astype(jnp.bfloat16).astype(jnp.float32)
    x = dense_x
    for i, (w, b) in enumerate(bot_params):
        x = x @ q(w) + b
        if i < len(bot_params) - 1:
            x = jnp.maximum(x, 0.0)
    feats = [x] + [jnp.sum(q(tbl)[idx], axis=1) for idx, tbl in zip(lS_i, emb_tables)]
    cols = [jnp.sum(feats[i] * feats[j], axis=-1, keepdims=True) for (i, j) in PAIRS]
    t = jnp.concatenate([x] + cols, axis=1)
    for i, (w, b) in enumerate(top_params):
        t = t @ q(w) + b
        if i < len(top_params) - 1:
            t = jnp.maximum(t, 0.0)
    return t


# ----------------------- deterministic parameter init --------------------------
def xavier_linear(key, in_f, out_f):
    kw, kb = jax.random.split(key)
    w = jax.random.normal(kw, (in_f, out_f), jnp.float32) * math.sqrt(2.0 / (in_f + out_f))
    b = jax.random.normal(kb, (1, out_f), jnp.float32) * math.sqrt(1.0 / out_f)
    return w, b


if __name__ == "__main__":
    key = jax.random.PRNGKey(0)
    keys = jax.random.split(key, 16)

    # inputs
    dense_x = jax.random.normal(keys[0], (B, M_DEN), jnp.float32)
    # offsets (uniform bags) — kept for fidelity to the DLRM signature (unused in kernel)
    lS_o = jnp.tile((jnp.arange(B, dtype=jnp.int32) * NNZ)[None, :], (NUM_TABLES, 1))
    lS_i = tuple(jax.random.randint(keys[1 + t], (B, NNZ), 0, LN_EMB[t], jnp.int32)
                 for t in range(NUM_TABLES))

    # embedding tables (EmbeddingBag-style uniform init)
    emb_tables = tuple(
        jax.random.uniform(keys[4 + t], (LN_EMB[t], M_SPA), jnp.float32,
                           minval=-1.0 / math.sqrt(LN_EMB[t]),
                           maxval=1.0 / math.sqrt(LN_EMB[t]))
        for t in range(NUM_TABLES))

    # MLP parameters (xavier_init analogue, deterministic)
    bot_params = tuple(xavier_linear(keys[8 + i], LN_BOT[i], LN_BOT[i + 1])
                       for i in range(len(LN_BOT) - 1))
    top_params = tuple(xavier_linear(keys[11 + i], LN_TOP[i], LN_TOP[i + 1])
                       for i in range(len(LN_TOP) - 1))

    params = prepare_params(bot_params, top_params, emb_tables)

    out = dlrm_forward(dense_x, lS_i, params)
    out = jax.block_until_ready(out)

    ref = dlrm_ref(dense_x, lS_i, emb_tables, bot_params, top_params)

    assert out.shape == (B, LN_TOP[-1]), out.shape
    assert bool(jnp.all(jnp.isfinite(out)))
    assert bool(jnp.allclose(out, ref, rtol=3e-2, atol=3e-2)), (
        float(jnp.max(jnp.abs(out - ref))))
    print("KERNEL_OK")
</pallas_src>

<mosaic_0001>
module attributes {stable_mosaic.version = 11 : i64} {
  func.func @dlrm_kernel(%arg0: i32, %arg1: memref<256x16xf32, #tpu.memory_space<vmem>>, %arg2: memref<256x6xi32, #tpu.memory_space<vmem>>, %arg3: memref<16x128xbf16, #tpu.memory_space<vmem>>, %arg4: memref<512x384xbf16, #tpu.memory_space<vmem>>, %arg5: memref<384x128xbf16, #tpu.memory_space<vmem>>, %arg6: memref<1x768xf32, #tpu.memory_space<vmem>>, %arg7: memref<256x128xbf16, #tpu.memory_space<vmem>>) attributes {dimension_semantics = [#tpu.dimension_semantics<parallel>], iteration_bounds = array<i64: 4>, scalar_prefetch = 0 : i64, scratch_operands = 0 : i64, tpu.core_type = #tpu.core_type<tc>, window_params = [{transform_indices = @transform_0, window_bounds = array<i64: 256, 16>}, {transform_indices = @transform_1, window_bounds = array<i64: 256, 6>}, {pipeline_mode = #tpu.pipeline_mode<synchronous>, transform_indices = @transform_2, window_bounds = array<i64: 16, 128>}, {pipeline_mode = #tpu.pipeline_mode<synchronous>, transform_indices = @transform_3, window_bounds = array<i64: 512, 384>}, {pipeline_mode = #tpu.pipeline_mode<synchronous>, transform_indices = @transform_4, window_bounds = array<i64: 384, 128>}, {pipeline_mode = #tpu.pipeline_mode<synchronous>, transform_indices = @transform_5, window_bounds = array<i64: 1, 768>}, {transform_indices = @transform_6, window_bounds = array<i64: 256, 128>}]} {
    %c0 = arith.constant 0 : index
    %c0_0 = arith.constant 0 : index
    %0 = vector.load %arg6[%c0, %c0_0] : memref<1x768xf32, #tpu.memory_space<vmem>>, vector<1x128xf32>
    %c0_1 = arith.constant 0 : index
    %c128 = arith.constant 128 : index
    %1 = vector.load %arg6[%c0_1, %c128] : memref<1x768xf32, #tpu.memory_space<vmem>>, vector<1x384xf32>
    %c0_2 = arith.constant 0 : index
    %c512 = arith.constant 512 : index
    %2 = vector.load %arg6[%c0_2, %c512] : memref<1x768xf32, #tpu.memory_space<vmem>>, vector<1x128xf32>
    %c0_3 = arith.constant 0 : index
    %c640 = arith.constant 640 : index
    %3 = vector.load %arg6[%c0_3, %c640] : memref<1x768xf32, #tpu.memory_space<vmem>>, vector<1x128xf32>
    %c0_4 = arith.constant 0 : index
    %c0_5 = arith.constant 0 : index
    %4 = vector.load %arg1[%c0_4, %c0_5] : memref<256x16xf32, #tpu.memory_space<vmem>>, vector<256x16xf32>
    %5 = arith.truncf %4 : vector<256x16xf32> to vector<256x16xbf16>
    %c0_6 = arith.constant 0 : index
    %c0_7 = arith.constant 0 : index
    %6 = vector.load %arg3[%c0_6, %c0_7] : memref<16x128xbf16, #tpu.memory_space<vmem>>, vector<16x128xbf16>
    %cst = arith.constant dense<0.000000e+00> : vector<256x128xf32>
    %7 = tpu.matmul %5, %6, %cst {dimension_numbers = #tpu.dot_dimension_numbers<[1], [0], [0], [1], [0, 0, 1, 1], [], []>} : vector<256x16xbf16>, vector<16x128xbf16>, vector<256x128xf32> -> vector<256x128xf32>
    %8 = vector.broadcast %0 : vector<1x128xf32> to vector<256x128xf32>
    %9 = arith.addf %7, %8 : vector<256x128xf32>
    %cst_8 = arith.constant 0.000000e+00 : f32
    %10 = vector.broadcast %cst_8 : f32 to vector<256x128xf32>
    %11 = arith.maximumf %9, %10 : vector<256x128xf32>
    %12 = arith.truncf %11 : vector<256x128xf32> to vector<256x128xbf16>
    %c0_9 = arith.constant 0 : index
    %c0_10 = arith.constant 0 : index
    %13 = vector.load %arg2[%c0_9, %c0_10] : memref<256x6xi32, #tpu.memory_space<vmem>>, vector<256x6xi32>
    %14 = tpu.iota {dimensions = array<i32: 1>} : vector<256x128xi32>
    %cst_11 = arith.constant 0.000000e+00 : f32
    %15 = vector.broadcast %cst_11 : f32 to vector<256x128xf32>
    %16 = vector.extract_strided_slice %13 {offsets = [0, 0], sizes = [256, 1], strides = [1, 1]} : vector<256x6xi32> to vector<256x1xi32>
    %17 = vector.broadcast %16 : vector<256x1xi32> to vector<256x128xi32>
    %18 = arith.cmpi eq, %14, %17 : vector<256x128xi32>
    %19 = arith.extui %18 : vector<256x128xi1> to vector<256x128xi32>
    %20 = arith.sitofp %19 : vector<256x128xi32> to vector<256x128xf32>
    %21 = arith.addf %15, %20 : vector<256x128xf32>
    %22 = vector.extract_strided_slice %13 {offsets = [0, 1], sizes = [256, 1], strides = [1, 1]} : vector<256x6xi32> to vector<256x1xi32>
    %23 = vector.broadcast %22 : vector<256x1xi32> to vector<256x128xi32>
    %24 = arith.cmpi eq, %14, %23 : vector<256x128xi32>
    %25 = arith.extui %24 : vector<256x128xi1> to vector<256x128xi32>
    %26 = arith.sitofp %25 : vector<256x128xi32> to vector<256x128xf32>
    %27 = arith.addf %21, %26 : vector<256x128xf32>
    %28 = arith.truncf %27 : vector<256x128xf32> to vector<256x128xbf16>
    %cst_12 = arith.constant 0.000000e+00 : f32
    %29 = vector.broadcast %cst_12 : f32 to vector<256x128xf32>
    %30 = vector.extract_strided_slice %13 {offsets = [0, 2], sizes = [256, 1], strides = [1, 1]} : vector<256x6xi32> to vector<256x1xi32>
    %31 = vector.broadcast %30 : vector<256x1xi32> to vector<256x128xi32>
    %32 = arith.cmpi eq, %14, %31 : vector<256x128xi32>
    %33 = arith.extui %32 : vector<256x128xi1> to vector<256x128xi32>
    %34 = arith.sitofp %33 : vector<256x128xi32> to vector<256x128xf32>
    %35 = arith.addf %29, %34 : vector<256x128xf32>
    %36 = vector.extract_strided_slice %13 {offsets = [0, 3], sizes = [256, 1], strides = [1, 1]} : vector<256x6xi32> to vector<256x1xi32>
    %37 = vector.broadcast %36 : vector<256x1xi32> to vector<256x128xi32>
    %38 = arith.cmpi eq, %14, %37 : vector<256x128xi32>
    %39 = arith.extui %38 : vector<256x128xi1> to vector<256x128xi32>
    %40 = arith.sitofp %39 : vector<256x128xi32> to vector<256x128xf32>
    %41 = arith.addf %35, %40 : vector<256x128xf32>
    %42 = arith.truncf %41 : vector<256x128xf32> to vector<256x128xbf16>
    %cst_13 = arith.constant 0.000000e+00 : f32
    %43 = vector.broadcast %cst_13 : f32 to vector<256x128xf32>
    %44 = vector.extract_strided_slice %13 {offsets = [0, 4], sizes = [256, 1], strides = [1, 1]} : vector<256x6xi32> to vector<256x1xi32>
    %45 = vector.broadcast %44 : vector<256x1xi32> to vector<256x128xi32>
    %46 = arith.cmpi eq, %14, %45 : vector<256x128xi32>
    %47 = arith.extui %46 : vector<256x128xi1> to vector<256x128xi32>
    %48 = arith.sitofp %47 : vector<256x128xi32> to vector<256x128xf32>
    %49 = arith.addf %43, %48 : vector<256x128xf32>
    %50 = vector.extract_strided_slice %13 {offsets = [0, 5], sizes = [256, 1], strides = [1, 1]} : vector<256x6xi32> to vector<256x1xi32>
    %51 = vector.broadcast %50 : vector<256x1xi32> to vector<256x128xi32>
    %52 = arith.cmpi eq, %14, %51 : vector<256x128xi32>
    %53 = arith.extui %52 : vector<256x128xi1> to vector<256x128xi32>
    %54 = arith.sitofp %53 : vector<256x128xi32> to vector<256x128xf32>
    %55 = arith.addf %49, %54 : vector<256x128xf32>
    %56 = arith.truncf %55 : vector<256x128xf32> to vector<256x128xbf16>
    %57 = tpu.concatenate %12, %28, %42, %56 in 1 : vector<256x128xbf16>, vector<256x128xbf16>, vector<256x128xbf16>, vector<256x128xbf16> -> vector<256x512xbf16>
    %c0_14 = arith.constant 0 : index
    %c0_15 = arith.constant 0 : index
    %58 = vector.load %arg4[%c0_14, %c0_15] : memref<512x384xbf16, #tpu.memory_space<vmem>>, vector<512x384xbf16>
    %cst_16 = arith.constant dense<0.000000e+00> : vector<256x384xf32>
    %59 = tpu.matmul %57, %58, %cst_16 {dimension_numbers = #tpu.dot_dimension_numbers<[1], [0], [0], [1], [0, 0, 1, 1], [], []>} : vector<256x512xbf16>, vector<512x384xbf16>, vector<256x384xf32> -> vector<256x384xf32>
    %60 = vector.broadcast %1 : vector<1x384xf32> to vector<256x384xf32>
    %61 = arith.addf %59, %60 : vector<256x384xf32>
    %62 = vector.extract_strided_slice %61 {offsets = [0, 0], sizes = [256, 128], strides = [1, 1]} : vector<256x384xf32> to vector<256x128xf32>
    %63 = vector.extract_strided_slice %61 {offsets = [0, 128], sizes = [256, 128], strides = [1, 1]} : vector<256x384xf32> to vector<256x128xf32>
    %64 = arith.mulf %62, %63 : vector<256x128xf32>
    %65 = arith.truncf %64 : vector<256x128xf32> to vector<256x128xbf16>
    %66 = vector.extract_strided_slice %61 {offsets = [0, 256], sizes = [256, 128], strides = [1, 1]} : vector<256x384xf32> to vector<256x128xf32>
    %c0_17 = arith.constant 0 : index
    %c0_18 = arith.constant 0 : index
    %67 = vector.load %arg5[%c0_17, %c0_18] : memref<384x128xbf16, #tpu.memory_space<vmem>>, vector<128x128xbf16>
    %cst_19 = arith.constant dense<0.000000e+00> : vector<256x128xf32>
    %68 = tpu.matmul %65, %67, %cst_19 {dimension_numbers = #tpu.dot_dimension_numbers<[1], [0], [0], [1], [0, 0, 1, 1], [], []>} : vector<256x128xbf16>, vector<128x128xbf16>, vector<256x128xf32> -> vector<256x128xf32>
    %69 = arith.addf %66, %68 : vector<256x128xf32>
    %cst_20 = arith.constant 0.000000e+00 : f32
    %70 = vector.broadcast %cst_20 : f32 to vector<256x128xf32>
    %71 = arith.maximumf %69, %70 : vector<256x128xf32>
    %72 = arith.truncf %71 : vector<256x128xf32> to vector<256x128xbf16>
    %c128_21 = arith.constant 128 : index
    %c0_22 = arith.constant 0 : index
    %73 = vector.load %arg5[%c128_21, %c0_22] : memref<384x128xbf16, #tpu.memory_space<vmem>>, vector<128x128xbf16>
    %cst_23 = arith.constant dense<0.000000e+00> : vector<256x128xf32>
    %74 = tpu.matmul %72, %73, %cst_23 {dimension_numbers = #tpu.dot_dimension_numbers<[1], [0], [0], [1], [0, 0, 1, 1], [], []>} : vector<256x128xbf16>, vector<128x128xbf16>, vector<256x128xf32> -> vector<256x128xf32>
    %75 = vector.broadcast %2 : vector<1x128xf32> to vector<256x128xf32>
    %76 = arith.addf %74, %75 : vector<256x128xf32>
    %cst_24 = arith.constant 0.000000e+00 : f32
    %77 = vector.broadcast %cst_24 : f32 to vector<256x128xf32>
    %78 = arith.maximumf %76, %77 : vector<256x128xf32>
    %79 = arith.truncf %78 : vector<256x128xf32> to vector<256x128xbf16>
    %c256 = arith.constant 256 : index
    %c0_25 = arith.constant 0 : index
    %80 = vector.load %arg5[%c256, %c0_25] : memref<384x128xbf16, #tpu.memory_space<vmem>>, vector<128x128xbf16>
    %cst_26 = arith.constant dense<0.000000e+00> : vector<256x128xf32>
    %81 = tpu.matmul %79, %80, %cst_26 {dimension_numbers = #tpu.dot_dimension_numbers<[1], [0], [0], [1], [0, 0, 1, 1], [], []>} : vector<256x128xbf16>, vector<128x128xbf16>, vector<256x128xf32> -> vector<256x128xf32>
    %82 = vector.broadcast %3 : vector<1x128xf32> to vector<256x128xf32>
    %83 = arith.addf %81, %82 : vector<256x128xf32>
    %84 = arith.truncf %83 : vector<256x128xf32> to vector<256x128xbf16>
    %c0_27 = arith.constant 0 : index
    %c0_28 = arith.constant 0 : index
    %85 = vector.load %arg7[%c0_27, %c0_28] : memref<256x128xbf16, #tpu.memory_space<vmem>>, vector<256x128xbf16>
    tpu.vector_store %arg7[%c0_27, %c0_28], %84 {strides = array<i32>} : memref<256x128xbf16, #tpu.memory_space<vmem>>, vector<256x128xbf16>,
    return
  }
  func.func @transform_0(%arg0: i32) -> (i32, i32) {
    %c0_i32 = arith.constant 0 : i32
    %c0_i32_0 = arith.constant 0 : i32
    return %arg0, %c0_i32 : i32, i32
  }
  func.func @transform_1(%arg0: i32) -> (i32, i32) {
    %c0_i32 = arith.constant 0 : i32
    %c0_i32_0 = arith.constant 0 : i32
    return %arg0, %c0_i32 : i32, i32
  }
  func.func @transform_2(%arg0: i32) -> (i32, i32) {
    %c0_i32 = arith.constant 0 : i32
    %c0_i32_0 = arith.constant 0 : i32
    %c0_i32_1 = arith.constant 0 : i32
    return %c0_i32, %c0_i32_0 : i32, i32
  }
  func.func @transform_3(%arg0: i32) -> (i32, i32) {
    %c0_i32 = arith.constant 0 : i32
    %c0_i32_0 = arith.constant 0 : i32
    %c0_i32_1 = arith.constant 0 : i32
    return %c0_i32, %c0_i32_0 : i32, i32
  }
  func.func @transform_4(%arg0: i32) -> (i32, i32) {
    %c0_i32 = arith.constant 0 : i32
    %c0_i32_0 = arith.constant 0 : i32
    %c0_i32_1 = arith.constant 0 : i32
    return %c0_i32, %c0_i32_0 : i32, i32
  }
  func.func @transform_5(%arg0: i32) -> (i32, i32) {
    %c0_i32 = arith.constant 0 : i32
    %c0_i32_0 = arith.constant 0 : i32
    %c0_i32_1 = arith.constant 0 : i32
    return %c0_i32, %c0_i32_0 : i32, i32
  }
  func.func @transform_6(%arg0: i32) -> (i32, i32) {
    %c0_i32 = arith.constant 0 : i32
    %c0_i32_0 = arith.constant 0 : i32
    return %arg0, %c0_i32 : i32, i32
  }
}

</mosaic_0001>

<llo_original>
// kernel: tpu_custom_call.1
$region0: #{tpu_custom_call.1}
  #allocation0 [shape = 'u32[]', space=smem, size = 0x4, offset = 0x4, fixed_abs, tag = 'smem constant byte address 0x4 - core index']
  #allocation1 [shape = 'u32[144,128]{1,0:T(1,128)}', space=vmem, size = 0x12000, scoped, tag = 'internal scratch']
  %s0 = inlined_call_operand.vmem [shape: f32[1024,16], index: 0, kind: input, shape index: {}]
  %s1 = inlined_call_operand.vmem [shape: s32[1024,6], index: 1, kind: input, shape index: {}]
  %s2 = inlined_call_operand.vmem [shape: bf16[16,128], index: 2, kind: input, shape index: {}]
  %s3 = inlined_call_operand.vmem [shape: bf16[512,384], index: 3, kind: input, shape index: {}]
  %s4 = inlined_call_operand.vmem [shape: bf16[384,128], index: 4, kind: input, shape index: {}]
  %s5 = inlined_call_operand.vmem [shape: f32[1,768], index: 5, kind: input, shape index: {}]
  %s6 = inlined_call_operand.hbm [shape: bf16[1024,128], index: 6, kind: output, shape index: {}]
  %s7 = sld [smem:[#allocation0]]
  $region57: #{tpu_custom_call.1} parent=0
    _
  %s9 = ssub.s32 1, %s7
  %s10 = scalar_select 0, %s9, %s7
  $region1: #{tpu_custom_call.1} parent=0
    #allocation2 [shape = 'u8[131072]{0}', space=vmem, size = 0x20000, scoped, tag = 'output window, operand 0']
    #allocation3 [shape = 's32[2]{0}', space=sflag, size = 0x8, scoped, tag = 'scoped memory for tpu_custom_call.1']
    %11 = vsyncpa [#allocation3], 0
    %s12 = scalar_lea.sflag [#allocation3], 1
    %13 = vsyncpa %s12, 0
    loop: start=0, step=1, limit=6
    $region2: #{tpu_custom_call.1} parent=1 // loop_pre_header
      _
    $region3: #{tpu_custom_call.1} parent=1 // loop_header
      %s15 = sphi 0, %s19
      %p16 = scmp.ge.s32.totalorder %s15, 6
      %s25 = sphi 0, %s27
      %s28 = sphi 0, %s25
      %s29 = sphi 0, %s28
      %s45 = sphi 0, %s29
      %s51 = sphi 0, %s53
      %s54 = sphi 0, %s51
      %s55 = sphi 0, %s54
      %s71 = sphi 0, %s55
      %s75 = sphi 0, %s75
      %s77 = sphi 0, %s75
      %s78 = sphi 0, %s77
      %s92 = sphi 0, %s78
      %s96 = sphi 0, %s96
      %s98 = sphi 0, %s96
      %s99 = sphi 0, %s98
      %s113 = sphi 0, %s99
      %s117 = sphi 0, %s117
      %s119 = sphi 0, %s117
      %s120 = sphi 0, %s119
      %s134 = sphi 0, %s120
      %s138 = sphi 0, %s138
      %s140 = sphi 0, %s138
      %s141 = sphi 0, %s140
      %s155 = sphi 0, %s141
      %s161 = sphi 0, %s163
      %s164 = sphi 0, %s161
      %s165 = sphi 0, %s164
      %s181 = sphi 0, %s165
    $region4: #{tpu_custom_call.1} parent=1 // loop_header_branch
      %18 = sbr.rel (%p16) target = $region8
    $region5: #{tpu_custom_call.1} parent=1 // loop_body
      %s20 = ssub.s32 %s15, 1
      %s21 = ssub.s32 %s15, 2
      %s22 = sadd.s32 %s15, 1
      %s23 = ssub.s32 %s15, %s22
      %p24 = scmp.eq.s32.totalorder %s23, 0
      %s26 = sadd.s32 %s25, 1
      %s27 = scalar_select %p24, %s25, %s26
      %p30 = pneg %p24
      %p31 = scmp.eq.s32.totalorder %s15, 3
      %p32 = por %p30, %p31
      %p33 = scmp.ne.s32.totalorder %s25, %s28
      %p34 = scmp.eq.s32.totalorder %s15, 0
      %p35 = por %p33, %p34
      %p36 = scmp.ne.s32.totalorder %s25, %s28
      %p37 = scmp.eq.s32.totalorder %s20, 3
      %p38 = por %p36, %p37
      %p39 = scmp.ne.s32.totalorder %s28, %s29
      %p40 = scmp.eq.s32.totalorder %s20, 0
      %p41 = por %p39, %p40
      %p42 = scmp.ne.s32.totalorder %s28, %s29
      %p43 = scmp.eq.s32.totalorder %s21, 3
      %p44 = por %p42, %p43
      %p46 = scmp.ne.s32.totalorder %s29, %s45
      %p47 = scmp.eq.s32.totalorder %s21, 0
      %p48 = por %p46, %p47
      %s49 = ssub.s32 %s15, %s22
      %p50 = scmp.eq.s32.totalorder %s49, 0
      %s52 = sadd.s32 %s51, 1
      %s53 = scalar_select %p50, %s51, %s52
      %p56 = pneg %p50
      %p57 = scmp.eq.s32.totalorder %s15, 3
      %p58 = por %p56, %p57
      %p59 = scmp.ne.s32.totalorder %s51, %s54
      %p60 = scmp.eq.s32.totalorder %s15, 0
      %p61 = por %p59, %p60
      %p62 = scmp.ne.s32.totalorder %s51, %s54
      %p63 = scmp.eq.s32.totalorder %s20, 3
      %p64 = por %p62, %p63
      %p65 = scmp.ne.s32.totalorder %s54, %s55
      %p66 = scmp.eq.s32.totalorder %s20, 0
      %p67 = por %p65, %p66
      %p68 = scmp.ne.s32.totalorder %s54, %s55
      %p69 = scmp.eq.s32.totalorder %s21, 3
      %p70 = por %p68, %p69
      %p72 = scmp.ne.s32.totalorder %s55, %s71
      %p73 = scmp.eq.s32.totalorder %s21, 0
      %p74 = por %p72, %p73
      %s76 = sadd.s32 %s75, 1
      %p79 = scmp.eq.s32.totalorder %s15, 3
      %p80 = scmp.ne.s32.totalorder %s75, %s77
      %p81 = scmp.eq.s32.totalorder %s15, 0
      %p82 = por %p80, %p81
      %p83 = scmp.ne.s32.totalorder %s75, %s77
      %p84 = scmp.eq.s32.totalorder %s20, 3
      %p85 = por %p83, %p84
      %p86 = scmp.ne.s32.totalorder %s77, %s78
      %p87 = scmp.eq.s32.totalorder %s20, 0
      %p88 = por %p86, %p87
      %p89 = scmp.ne.s32.totalorder %s77, %s78
      %p90 = scmp.eq.s32.totalorder %s21, 3
      %p91 = por %p89, %p90
      %p93 = scmp.ne.s32.totalorder %s78, %s92
      %p94 = scmp.eq.s32.totalorder %s21, 0
      %p95 = por %p93, %p94
      %s97 = sadd.s32 %s96, 1
      %p100 = scmp.eq.s32.totalorder %s15, 3
      %p101 = scmp.ne.s32.totalorder %s96, %s98
      %p102 = scmp.eq.s32.totalorder %s15, 0
      %p103 = por %p101, %p102
      %p104 = scmp.ne.s32.totalorder %s96, %s98
      %p105 = scmp.eq.s32.totalorder %s20, 3
      %p106 = por %p104, %p105
      %p107 = scmp.ne.s32.totalorder %s98, %s99
      %p108 = scmp.eq.s32.totalorder %s20, 0
      %p109 = por %p107, %p108
      %p110 = scmp.ne.s32.totalorder %s98, %s99
      %p111 = scmp.eq.s32.totalorder %s21, 3
      %p112 = por %p110, %p111
      %p114 = scmp.ne.s32.totalorder %s99, %s113
      %p115 = scmp.eq.s32.totalorder %s21, 0
      %p116 = por %p114, %p115
      %s118 = sadd.s32 %s117, 1
      %p121 = scmp.eq.s32.totalorder %s15, 3
      %p122 = scmp.ne.s32.totalorder %s117, %s119
      %p123 = scmp.eq.s32.totalorder %s15, 0
      %p124 = por %p122, %p123
      %p125 = scmp.ne.s32.totalorder %s117, %s119
      %p126 = scmp.eq.s32.totalorder %s20, 3
      %p127 = por %p125, %p126
      %p128 = scmp.ne.s32.totalorder %s119, %s120
      %p129 = scmp.eq.s32.totalorder %s20, 0
      %p130 = por %p128, %p129
      %p131 = scmp.ne.s32.totalorder %s119, %s120
      %p132 = scmp.eq.s32.totalorder %s21, 3
      %p133 = por %p131, %p132
      %p135 = scmp.ne.s32.totalorder %s120, %s134
      %p136 = scmp.eq.s32.totalorder %s21, 0
      %p137 = por %p135, %p136
      %s139 = sadd.s32 %s138, 1
      %p142 = scmp.eq.s32.totalorder %s15, 3
      %p143 = scmp.ne.s32.totalorder %s138, %s140
      %p144 = scmp.eq.s32.totalorder %s15, 0
      %p145 = por %p143, %p144
      %p146 = scmp.ne.s32.totalorder %s138, %s140
      %p147 = scmp.eq.s32.totalorder %s20, 3
      %p148 = por %p146, %p147
      %p149 = scmp.ne.s32.totalorder %s140, %s141
      %p150 = scmp.eq.s32.totalorder %s20, 0
      %p151 = por %p149, %p150
      %p152 = scmp.ne.s32.totalorder %s140, %s141
      %p153 = scmp.eq.s32.totalorder %s21, 3
      %p154 = por %p152, %p153
      %p156 = scmp.ne.s32.totalorder %s141, %s155
      %p157 = scmp.eq.s32.totalorder %s21, 0
      %p158 = por %p156, %p157
      %s159 = ssub.s32 %s15, %s22
      %p160 = scmp.eq.s32.totalorder %s159, 0
      %s162 = sadd.s32 %s161, 1
      %s163 = scalar_select %p160, %s161, %s162
      %p166 = pneg %p160
      %p167 = scmp.eq.s32.totalorder %s15, 3
      %p168 = por %p166, %p167
      %p169 = scmp.ne.s32.totalorder %s161, %s164
      %p170 = scmp.eq.s32.totalorder %s15, 0
      %p171 = por %p169, %p170
      %p172 = scmp.ne.s32.totalorder %s161, %s164
      %p173 = scmp.eq.s32.totalorder %s20, 3
      %p174 = por %p172, %p173
      %p175 = scmp.ne.s32.totalorder %s164, %s165
      %p176 = scmp.eq.s32.totalorder %s20, 0
      %p177 = por %p175, %p176
      %p178 = scmp.ne.s32.totalorder %s164, %s165
      %p179 = scmp.eq.s32.totalorder %s21, 3
      %p180 = por %p178, %p179
      %p182 = scmp.ne.s32.totalorder %s165, %s181
      %p183 = scmp.eq.s32.totalorder %s21, 0
      %p184 = por %p182, %p183
      %p185 = scmp.le.s32.totalorder 1, %s15
      %p186 = scmp.lt.s32.totalorder %s15, 5
      %p187 = pnand %p185, %p186
      %p188 = pneg %p187
      // Predicated region
      $region9: #{tpu_custom_call.1} parent=5 // pred_check
        _
      $region10: #{tpu_custom_call.1} parent=5 // pred_check_branch
        %190 = sbr.rel (%p187) target = $region12
      $region11: #{tpu_custom_call.1} parent=5 // pred_region
        %s191 = ssub.s32 %s15, 1
        // Predicated region
        $region13: #{tpu_custom_call.1} parent=11 // pred_check
          %p192 = pneg %p88
        $region14: #{tpu_custom_call.1} parent=11 // pred_check_branch
          %194 = sbr.rel (%p192) target = $region16
        $region15: #{tpu_custom_call.1} parent=11 // pred_region
          _
        $region16: #{tpu_custom_call.1} parent=11 // pred_fallthru
          _
        // Predicated region
        $region17: #{tpu_custom_call.1} parent=11 // pred_check
          %p195 = pneg %p109
        $region18: #{tpu_custom_call.1} parent=11 // pred_check_branch
          %197 = sbr.rel (%p195) target = $region20
        $region19: #{tpu_custom_call.1} parent=11 // pred_region
          _
        $region20: #{tpu_custom_call.1} parent=11 // pred_fallthru
          _
        // Predicated region
        $region21: #{tpu_custom_call.1} parent=11 // pred_check
          %p198 = pneg %p130
        $region22: #{tpu_custom_call.1} parent=11 // pred_check_branch
          %200 = sbr.rel (%p198) target = $region24
        $region23: #{tpu_custom_call.1} parent=11 // pred_region
          _
        $region24: #{tpu_custom_call.1} parent=11 // pred_fallthru
          _
        // Predicated region
        $region25: #{tpu_custom_call.1} parent=11 // pred_check
          %p201 = pneg %p151
        $region26: #{tpu_custom_call.1} parent=11 // pred_check_branch
          %203 = sbr.rel (%p201) target = $region28
        $region27: #{tpu_custom_call.1} parent=11 // pred_region
          _
        $region28: #{tpu_custom_call.1} parent=11 // pred_fallthru
          _
      $region12: #{tpu_custom_call.1} parent=5 // pred_fallthru
        _
      %p204 = scmp.lt.s32.totalorder %s15, 4
      // Predicated region
      $region29: #{tpu_custom_call.1} parent=5 // pred_check
        %p205 = pneg %p204
      $region30: #{tpu_custom_call.1} parent=5 // pred_check_branch
        %207 = sbr.rel (%p205) target = $region32
      $region31: #{tpu_custom_call.1} parent=5 // pred_region
        // Predicated region
        $region33: #{tpu_custom_call.1} parent=31 // pred_check
          %p208 = pneg %p35
        $region34: #{tpu_custom_call.1} parent=31 // pred_check_branch
          %210 = sbr.rel (%p208) target = $region36
        $region35: #{tpu_custom_call.1} parent=31 // pred_region
          %s211 = smul.u32 32, %s15
          %p212 = scmp.lt.s32.totalorder %s211, 127
          %s213 = scalar_select %p212, %s211, 127
          %s214 = smul.addr %s213, 8
          %s215 = scalar_lea.vmem %s0, %s214
          %s216 = smul.u32 32, %s15
        $region36: #{tpu_custom_call.1} parent=31 // pred_fallthru
          _
        // Predicated region
        $region37: #{tpu_custom_call.1} parent=31 // pred_check
          %p217 = pneg %p61
        $region38: #{tpu_custom_call.1} parent=31 // pred_check_branch
          %219 = sbr.rel (%p217) target = $region40
        $region39: #{tpu_custom_call.1} parent=31 // pred_region
          %s220 = smul.u32 32, %s15
          %p221 = scmp.lt.s32.totalorder %s220, 127
          %s222 = scalar_select %p221, %s220, 127
          %s223 = smul.addr %s222, 8
          %s224 = scalar_lea.vmem %s1, %s223
          %s225 = smul.u32 32, %s15
        $region40: #{tpu_custom_call.1} parent=31 // pred_fallthru
          _
      $region32: #{tpu_custom_call.1} parent=5 // pred_fallthru
        _
      %p226 = scmp.le.s32.totalorder 1, %s15
      %p227 = scmp.lt.s32.totalorder %s15, 5
      %p228 = pnand %p226, %p227
      %p229 = pneg %p228
      // Predicated region
      $region41: #{tpu_custom_call.1} parent=5 // pred_check
        _
      $region42: #{tpu_custom_call.1} parent=5 // pred_check_branch
        %231 = sbr.rel (%p228) target = $region44
      $region43: #{tpu_custom_call.1} parent=5 // pred_region
        %s232 = ssub.s32 %s15, 1
        %s233 = smul.u32 32, %s20
        %p234 = scmp.lt.s32.totalorder %s233, 127
        %s235 = scalar_select %p234, %s233, 127
        %s236 = smul.addr %s235, 8
        %s237 = scalar_lea.vmem %s0, %s236
        %p238 = pneg %p41
        %p239 = pneg %p38
        %s240 = smul.u32 32, %s20
        %p241 = scmp.lt.s32.totalorder %s240, 127
        %s242 = scalar_select %p241, %s240, 127
        %s243 = smul.addr %s242, 8
        %s244 = scalar_lea.vmem %s1, %s243
        %p245 = pneg %p67
        %p246 = pneg %p64
        %p247 = pneg %p88
        %p248 = pneg %p85
        %p249 = pneg %p109
        %p250 = pneg %p106
        %p251 = pneg %p130
        %p252 = pneg %p127
        %p253 = pneg %p151
        %p254 = pneg %p148
        %p255 = pneg %p177
        %p256 = pneg %p174
        %s257 = sand.u32 %s164, 1
        %s258 = scalar_lea.sflag [#allocation3], %s257
        %s259 = sand.u32 %s164, 1
        %s260 = smul.addr %s259, 128
        %s261 = scalar_lea.vmem [#allocation2], %s260
        %s262 = smul.u32 32, %s20
        %p263 = scmp.lt.s32.totalorder %s262, 127
        %s264 = scalar_select %p263, %s262, 127
        %s265 = smul.addr %s264, 8
        %s266 = scalar_lea.vmem %s0, %s265
        %s267 = smul.u32 32, %s20
        %s268 = smul.u32 32, %s20
        %p269 = scmp.lt.s32.totalorder %s268, 127
        %s270 = scalar_select %p269, %s268, 127
        %s271 = smul.addr %s270, 8
        %s272 = scalar_lea.vmem %s1, %s271
        %s273 = smul.u32 32, %s20
        %s274 = smul.u32 32, %s20
        %v276 = vld [vmem:[%s5] sm:$0x1]
        %v277 = vld [vmem:[%s5 + $0x1] sm:$0x7]
        %v278 = vld [vmem:[%s5 + $0x4] sm:$0x1]
        %v279 = vld [vmem:[%s5 + $0x5] sm:$0x1]
        %v280 = vld [vmem:[%s266] sm:$0xff]
        %v281 = vld [vmem:[%s266 + $0x8] sm:$0xff]
        %v282 = vld [vmem:[%s266 + $0x10] sm:$0xff]
        %v283 = vld [vmem:[%s266 + $0x18] sm:$0xff]
        %v284 = vld [vmem:[%s266 + $0x20] sm:$0xff]
        %v285 = vld [vmem:[%s266 + $0x28] sm:$0xff]
        %v286 = vld [vmem:[%s266 + $0x30] sm:$0xff]
        %v287 = vld [vmem:[%s266 + $0x38] sm:$0xff]
        %v288 = vld [vmem:[%s266 + $0x40] sm:$0xff]
        %v289 = vld [vmem:[%s266 + $0x48] sm:$0xff]
        %v290 = vld [vmem:[%s266 + $0x50] sm:$0xff]
        %v291 = vld [vmem:[%s266 + $0x58] sm:$0xff]
        %v292 = vld [vmem:[%s266 + $0x60] sm:$0xff]
        %v293 = vld [vmem:[%s266 + $0x68] sm:$0xff]
        %v294 = vld [vmem:[%s266 + $0x70] sm:$0xff]
        %v295 = vld [vmem:[%s266 + $0x78] sm:$0xff]
        %v296 = vld [vmem:[%s266 + $0x80] sm:$0xff]
        %v297 = vld [vmem:[%s266 + $0x88] sm:$0xff]
        %v298 = vld [vmem:[%s266 + $0x90] sm:$0xff]
        %v299 = vld [vmem:[%s266 + $0x98] sm:$0xff]
        %v300 = vld [vmem:[%s266 + $0xa0] sm:$0xff]
        %v301 = vld [vmem:[%s266 + $0xa8] sm:$0xff]
        %v302 = vld [vmem:[%s266 + $0xb0] sm:$0xff]
        %v303 = vld [vmem:[%s266 + $0xb8] sm:$0xff]
        %v304 = vld [vmem:[%s266 + $0xc0] sm:$0xff]
        %v305 = vld [vmem:[%s266 + $0xc8] sm:$0xff]
        %v306 = vld [vmem:[%s266 + $0xd0] sm:$0xff]
        %v307 = vld [vmem:[%s266 + $0xd8] sm:$0xff]
        %v308 = vld [vmem:[%s266 + $0xe0] sm:$0xff]
        %v309 = vld [vmem:[%s266 + $0xe8] sm:$0xff]
        %v310 = vld [vmem:[%s266 + $0xf0] sm:$0xff]
        %v311 = vld [vmem:[%s266 + $0xf8] sm:$0xff]
        %v312 = vpack.c.bf16 %v281, %v280
        %v313 = vpack.c.bf16 %v283, %v282
        %v314 = vpack.c.bf16 %v285, %v284
        %v315 = vpack.c.bf16 %v287, %v286
        %v316 = vpack.c.bf16 %v289, %v288
        %v317 = vpack.c.bf16 %v291, %v290
        %v318 = vpack.c.bf16 %v293, %v292
        %v319 = vpack.c.bf16 %v295, %v294
        %v320 = vpack.c.bf16 %v297, %v296
        %v321 = vpack.c.bf16 %v299, %v298
        %v322 = vpack.c.bf16 %v301, %v300
        %v323 = vpack.c.bf16 %v303, %v302
        %v324 = vpack.c.bf16 %v305, %v304
        %v325 = vpack.c.bf16 %v307, %v306
        %v326 = vpack.c.bf16 %v309, %v308
        %v327 = vpack.c.bf16 %v311, %v310
        %v328 = vld [vmem:[%s2] sm:$0xf]
        %v329 = vld [vmem:[%s2 + $0x4] sm:$0xf]
        %v331 = vlaneseq
        %v332 = vshrl.u32 %v331, 7
        %v333 = vsub.s32 0, %v332
        %v334 = vrot.slane %v276, %v333
        %v338 = vunpack.c.l.b16 %v328
        %v339 = vunpack.c.l.b16 %v329
        %v340 = vpack.c.b16 %v339, %v338
        %vm342 = vcmask 130048
        %v344 = vsel %vm342, %v312, 0
        %v347 = vsel %vm342, %v313, 0
        %v350 = vsel %vm342, %v314, 0
        %v353 = vsel %vm342, %v315, 0
        %v356 = vsel %vm342, %v316, 0
        %v359 = vsel %vm342, %v317, 0
        %v362 = vsel %vm342, %v318, 0
        %v365 = vsel %vm342, %v319, 0
        %v368 = vsel %vm342, %v320, 0
        %v371 = vsel %vm342, %v321, 0
        %v374 = vsel %vm342, %v322, 0
        %v377 = vsel %vm342, %v323, 0
        %v380 = vsel %vm342, %v324, 0
        %v383 = vsel %vm342, %v325, 0
        %v386 = vsel %vm342, %v326, 0
        %v389 = vsel %vm342, %v327, 0
        %391 = vmatprep.subr.bf16.mxu0 0
        %392 = vmatpush1.bf16.msra.mxu0 0
        %393 = vmatprep.subr.bf16.mxu0 0
        %394 = vmatpush1.bf16.msra.mxu0 0
        %395 = vmatprep.subr.bf16.mxu0 0
        %396 = vmatpush1.bf16.msra.mxu0 0
        %397 = vmatprep.subr.bf16.mxu0 0
        %398 = vmatpush1.bf16.msra.mxu0 0
        %399 = vmatprep.subr.bf16.mxu0 0
        %400 = vmatpush1.bf16.msra.mxu0 0
        %401 = vmatprep.subr.bf16.mxu0 0
        %402 = vmatpush1.bf16.msra.mxu0 0
        %403 = vmatprep.subr.bf16.mxu0 0
        %404 = vmatpush1.bf16.msra.mxu0 0
        %405 = vmatprep.subr.bf16.mxu0 0
        %406 = vmatpush1.bf16.msra.mxu0 %v340
        %407 = vmatprep.subr.bf16.mxu0 0
        %408 = vmatpush2.bf16.msra.mxu0 0
        %409 = vmatprep.subr.bf16.mxu0 0
        %410 = vmatpush2.bf16.msra.mxu0 0
        %411 = vmatprep.subr.bf16.mxu0 0
        %412 = vmatpush2.bf16.msra.mxu0 0
        %413 = vmatprep.subr.bf16.mxu0 0
        %414 = vmatpush2.bf16.msra.mxu0 0
        %415 = vmatprep.subr.bf16.mxu0 0
        %416 = vmatpush2.bf16.msra.mxu0 0
        %417 = vmatprep.subr.bf16.mxu0 0
        %418 = vmatpush2.bf16.msra.mxu0 0
        %419 = vmatprep.subr.bf16.mxu0 0
        %420 = vmatpush2.bf16.msra.mxu0 0
        %421 = vmatprep.subr.bf16.mxu0 0
        %422 = vmatpush2.bf16.msra.mxu0 0
        %423 = vmatprep.mubr.bf16.mxu0 0
        %424 = vmatmul.mubr.bf16.gmra.mxu0 %v344
        %v425 = vpop.f32.mrf.mxu0
        %v426 = vadd.f32 %v334, %v425
        %v427 = vpop.f32.mrf.mxu0
        %v428 = vpop.f32.mrf.mxu0
        %v429 = vadd.f32 %v334, %v428
        %v430 = vpop.f32.mrf.mxu0
        %431 = vmatprep.mubr.bf16.mxu0 0
        %432 = vmatmul.mubr.bf16.gmra.mxu0 %v347
        %v433 = vpop.f32.mrf.mxu0
        %v434 = vadd.f32 %v334, %v433
        %v435 = vpop.f32.mrf.mxu0
        %v436 = vpop.f32.mrf.mxu0
        %v437 = vadd.f32 %v334, %v436
        %v438 = vpop.f32.mrf.mxu0
        %439 = vmatprep.mubr.bf16.mxu0 0
        %440 = vmatmul.mubr.bf16.gmra.mxu0 %v350
        %v441 = vpop.f32.mrf.mxu0
        %v442 = vadd.f32 %v334, %v441
        %v443 = vpop.f32.mrf.mxu0
        %v444 = vpop.f32.mrf.mxu0
        %v445 = vadd.f32 %v334, %v444
        %v446 = vpop.f32.mrf.mxu0
        %447 = vmatprep.mubr.bf16.mxu0 0
        %448 = vmatmul.mubr.bf16.gmra.mxu0 %v353
        %v449 = vpop.f32.mrf.mxu0
        %v450 = vadd.f32 %v334, %v449
        %v451 = vpop.f32.mrf.mxu0
        %v452 = vpop.f32.mrf.mxu0
        %v453 = vadd.f32 %v334, %v452
        %v454 = vpop.f32.mrf.mxu0
        %455 = vmatprep.mubr.bf16.mxu0 0
        %456 = vmatmul.mubr.bf16.gmra.mxu0 %v356
        %v457 = vpop.f32.mrf.mxu0
        %v458 = vadd.f32 %v334, %v457
        %v459 = vpop.f32.mrf.mxu0
        %v460 = vpop.f32.mrf.mxu0
        %v461 = vadd.f32 %v334, %v460
        %v462 = vpop.f32.mrf.mxu0
        %463 = vmatprep.mubr.bf16.mxu0 0
        %464 = vmatmul.mubr.bf16.gmra.mxu0 %v359
        %v465 = vpop.f32.mrf.mxu0
        %v466 = vadd.f32 %v334, %v465
        %v467 = vpop.f32.mrf.mxu0
        %v468 = vpop.f32.mrf.mxu0
        %v469 = vadd.f32 %v334, %v468
        %v470 = vpop.f32.mrf.mxu0
        %471 = vmatprep.mubr.bf16.mxu0 0
        %472 = vmatmul.mubr.bf16.gmra.mxu0 %v362
        %v473 = vpop.f32.mrf.mxu0
        %v474 = vadd.f32 %v334, %v473
        %v475 = vpop.f32.mrf.mxu0
        %v476 = vpop.f32.mrf.mxu0
        %v477 = vadd.f32 %v334, %v476
        %v478 = vpop.f32.mrf.mxu0
        %479 = vmatprep.mubr.bf16.mxu0 0
        %480 = vmatmul.mubr.bf16.gmra.mxu0 %v365
        %v481 = vpop.f32.mrf.mxu0
        %v482 = vadd.f32 %v334, %v481
        %v483 = vpop.f32.mrf.mxu0
        %v484 = vpop.f32.mrf.mxu0
        %v485 = vadd.f32 %v334, %v484
        %v486 = vpop.f32.mrf.mxu0
        %487 = vmatprep.mubr.bf16.mxu0 0
        %488 = vmatmul.mubr.bf16.gmra.mxu0 %v368
        %v489 = vpop.f32.mrf.mxu0
        %v490 = vadd.f32 %v334, %v489
        %v491 = vpop.f32.mrf.mxu0
        %v492 = vpop.f32.mrf.mxu0
        %v493 = vadd.f32 %v334, %v492
        %v494 = vpop.f32.mrf.mxu0
        %495 = vmatprep.mubr.bf16.mxu0 0
        %496 = vmatmul.mubr.bf16.gmra.mxu0 %v371
        %v497 = vpop.f32.mrf.mxu0
        %v498 = vadd.f32 %v334, %v497
        %v499 = vpop.f32.mrf.mxu0
        %v500 = vpop.f32.mrf.mxu0
        %v501 = vadd.f32 %v334, %v500
        %v502 = vpop.f32.mrf.mxu0
        %503 = vmatprep.mubr.bf16.mxu0 0
        %504 = vmatmul.mubr.bf16.gmra.mxu0 %v374
        %v505 = vpop.f32.mrf.mxu0
        %v506 = vadd.f32 %v334, %v505
        %v507 = vpop.f32.mrf.mxu0
        %v508 = vpop.f32.mrf.mxu0
        %v509 = vadd.f32 %v334, %v508
        %v510 = vpop.f32.mrf.mxu0
        %511 = vmatprep.mubr.bf16.mxu0 0
        %512 = vmatmul.mubr.bf16.gmra.mxu0 %v377
        %v513 = vpop.f32.mrf.mxu0
        %v514 = vadd.f32 %v334, %v513
        %v515 = vpop.f32.mrf.mxu0
        %v516 = vpop.f32.mrf.mxu0
        %v517 = vadd.f32 %v334, %v516
        %v518 = vpop.f32.mrf.mxu0
        %519 = vmatprep.mubr.bf16.mxu0 0
        %520 = vmatmul.mubr.bf16.gmra.mxu0 %v380
        %v521 = vpop.f32.mrf.mxu0
        %v522 = vadd.f32 %v334, %v521
        %v523 = vpop.f32.mrf.mxu0
        %v524 = vpop.f32.mrf.mxu0
        %v525 = vadd.f32 %v334, %v524
        %v526 = vpop.f32.mrf.mxu0
        %527 = vmatprep.mubr.bf16.mxu0 0
        %528 = vmatmul.mubr.bf16.gmra.mxu0 %v383
        %v529 = vpop.f32.mrf.mxu0
        %v530 = vadd.f32 %v334, %v529
        %v531 = vpop.f32.mrf.mxu0
        %v532 = vpop.f32.mrf.mxu0
        %v533 = vadd.f32 %v334, %v532
        %v534 = vpop.f32.mrf.mxu0
        %535 = vmatprep.mubr.bf16.mxu0 0
        %536 = vmatmul.mubr.bf16.gmra.mxu0 %v386
        %v537 = vpop.f32.mrf.mxu0
        %v538 = vadd.f32 %v334, %v537
        %v539 = vpop.f32.mrf.mxu0
        %v540 = vpop.f32.mrf.mxu0
        %v541 = vadd.f32 %v334, %v540
        %v542 = vpop.f32.mrf.mxu0
        %543 = vmatprep.mubr.bf16.mxu0 0
        %544 = vmatmul.mubr.bf16.gmra.mxu0 %v389
        %v545 = vpop.f32.mrf.mxu0
        %v546 = vadd.f32 %v334, %v545
        %v547 = vpop.f32.mrf.mxu0
        %v548 = vpop.f32.mrf.mxu0
        %v549 = vadd.f32 %v334, %v548
        %v550 = vpop.f32.mrf.mxu0
        %551 = vdwg.mxu0
        %v552 = vmax.f32 %v426, 0.0
        %v553 = vmax.f32 %v429, 0.0
        %v554 = vmax.f32 %v434, 0.0
        %v555 = vmax.f32 %v437, 0.0
        %v556 = vmax.f32 %v442, 0.0
        %v557 = vmax.f32 %v445, 0.0
        %v558 = vmax.f32 %v450, 0.0
        %v559 = vmax.f32 %v453, 0.0
        %v560 = vmax.f32 %v458, 0.0
        %v561 = vmax.f32 %v461, 0.0
        %v562 = vmax.f32 %v466, 0.0
        %v563 = vmax.f32 %v469, 0.0
        %v564 = vmax.f32 %v474, 0.0
        %v565 = vmax.f32 %v477, 0.0
        %v566 = vmax.f32 %v482, 0.0
        %v567 = vmax.f32 %v485, 0.0
        %v568 = vmax.f32 %v490, 0.0
        %v569 = vmax.f32 %v493, 0.0
        %v570 = vmax.f32 %v498, 0.0
        %v571 = vmax.f32 %v501, 0.0
        %v572 = vmax.f32 %v506, 0.0
        %v573 = vmax.f32 %v509, 0.0
        %v574 = vmax.f32 %v514, 0.0
        %v575 = vmax.f32 %v517, 0.0
        %v576 = vmax.f32 %v522, 0.0
        %v577 = vmax.f32 %v525, 0.0
        %v578 = vmax.f32 %v530, 0.0
        %v579 = vmax.f32 %v533, 0.0
        %v580 = vmax.f32 %v538, 0.0
        %v581 = vmax.f32 %v541, 0.0
        %v582 = vmax.f32 %v546, 0.0
        %v583 = vmax.f32 %v549, 0.0
        %v584 = vpack.c.bf16 %v553, %v552
        %v585 = vpack.c.bf16 %v555, %v554
        %v586 = vpack.c.bf16 %v557, %v556
        %v587 = vpack.c.bf16 %v559, %v558
        %v588 = vpack.c.bf16 %v561, %v560
        %v589 = vpack.c.bf16 %v563, %v562
        %v590 = vpack.c.bf16 %v565, %v564
        %v591 = vpack.c.bf16 %v567, %v566
        %v592 = vpack.c.bf16 %v569, %v568
        %v593 = vpack.c.bf16 %v571, %v570
        %v594 = vpack.c.bf16 %v573, %v572
        %v595 = vpack.c.bf16 %v575, %v574
        %v596 = vpack.c.bf16 %v577, %v576
        %v597 = vpack.c.bf16 %v579, %v578
        %v598 = vpack.c.bf16 %v581, %v580
        %v599 = vpack.c.bf16 %v583, %v582
        %v600 = vld [vmem:[%s272] sm:$0xff]
        %v601 = vld [vmem:[%s272 + $0x8] sm:$0xff]
        %v602 = vld [vmem:[%s272 + $0x10] sm:$0xff]
        %v603 = vld [vmem:[%s272 + $0x18] sm:$0xff]
        %v604 = vld [vmem:[%s272 + $0x20] sm:$0xff]
        %v605 = vld [vmem:[%s272 + $0x28] sm:$0xff]
        %v606 = vld [vmem:[%s272 + $0x30] sm:$0xff]
        %v607 = vld [vmem:[%s272 + $0x38] sm:$0xff]
        %v608 = vld [vmem:[%s272 + $0x40] sm:$0xff]
        %v609 = vld [vmem:[%s272 + $0x48] sm:$0xff]
        %v610 = vld [vmem:[%s272 + $0x50] sm:$0xff]
        %v611 = vld [vmem:[%s272 + $0x58] sm:$0xff]
        %v612 = vld [vmem:[%s272 + $0x60] sm:$0xff]
        %v613 = vld [vmem:[%s272 + $0x68] sm:$0xff]
        %v614 = vld [vmem:[%s272 + $0x70] sm:$0xff]
        %v615 = vld [vmem:[%s272 + $0x78] sm:$0xff]
        %v616 = vld [vmem:[%s272 + $0x80] sm:$0xff]
        %v617 = vld [vmem:[%s272 + $0x88] sm:$0xff]
        %v618 = vld [vmem:[%s272 + $0x90] sm:$0xff]
        %v619 = vld [vmem:[%s272 + $0x98] sm:$0xff]
        %v620 = vld [vmem:[%s272 + $0xa0] sm:$0xff]
        %v621 = vld [vmem:[%s272 + $0xa8] sm:$0xff]
        %v622 = vld [vmem:[%s272 + $0xb0] sm:$0xff]
        %v623 = vld [vmem:[%s272 + $0xb8] sm:$0xff]
        %v624 = vld [vmem:[%s272 + $0xc0] sm:$0xff]
        %v625 = vld [vmem:[%s272 + $0xc8] sm:$0xff]
        %v626 = vld [vmem:[%s272 + $0xd0] sm:$0xff]
        %v627 = vld [vmem:[%s272 + $0xd8] sm:$0xff]
        %v628 = vld [vmem:[%s272 + $0xe0] sm:$0xff]
        %v629 = vld [vmem:[%s272 + $0xe8] sm:$0xff]
        %v630 = vld [vmem:[%s272 + $0xf0] sm:$0xff]
        %v631 = vld [vmem:[%s272 + $0xf8] sm:$0xff]
        %v632 = vlaneseq
        %v633 = vand.u32 %v632, 127
        %634 = vset.pattern.permute.xlu0 0
        %635 = vperm.xlu0 %634, %v600
        %v636 = vpop.permute.xlu0 %635
        %637 = vset.pattern.permute.xlu0 0
        %638 = vperm.xlu0 %637, %v601
        %v639 = vpop.permute.xlu0 %638
        %640 = vset.pattern.permute.xlu0 0
        %641 = vperm.xlu0 %640, %v602
        %v642 = vpop.permute.xlu0 %641
        %643 = vset.pattern.permute.xlu0 0
        %644 = vperm.xlu0 %643, %v603
        %v645 = vpop.permute.xlu0 %644
        %646 = vset.pattern.permute.xlu0 0
        %647 = vperm.xlu0 %646, %v604
        %v648 = vpop.permute.xlu0 %647
        %649 = vset.pattern.permute.xlu0 0
        %650 = vperm.xlu0 %649, %v605
        %v651 = vpop.permute.xlu0 %650
        %652 = vset.pattern.permute.xlu0 0
        %653 = vperm.xlu0 %652, %v606
        %v654 = vpop.permute.xlu0 %653
        %655 = vset.pattern.permute.xlu0 0
        %656 = vperm.xlu0 %655, %v607
        %v657 = vpop.permute.xlu0 %656
        %658 = vset.pattern.permute.xlu0 0
        %659 = vperm.xlu0 %658, %v608
        %v660 = vpop.permute.xlu0 %659
        %661 = vset.pattern.permute.xlu0 0
        %662 = vperm.xlu0 %661, %v609
        %v663 = vpop.permute.xlu0 %662
        %664 = vset.pattern.permute.xlu0 0
        %665 = vperm.xlu0 %664, %v610
        %v666 = vpop.permute.xlu0 %665
        %667 = vset.pattern.permute.xlu0 0
        %668 = vperm.xlu0 %667, %v611
        %v669 = vpop.permute.xlu0 %668
        %670 = vset.pattern.permute.xlu0 0
        %671 = vperm.xlu0 %670, %v612
        %v672 = vpop.permute.xlu0 %671
        %673 = vset.pattern.permute.xlu0 0
        %674 = vperm.xlu0 %673, %v613
        %v675 = vpop.permute.xlu0 %674
        %676 = vset.pattern.permute.xlu0 0
        %677 = vperm.xlu0 %676, %v614
        %v678 = vpop.permute.xlu0 %677
        %679 = vset.pattern.permute.xlu0 0
        %680 = vperm.xlu0 %679, %v615
        %v681 = vpop.permute.xlu0 %680
        %682 = vset.pattern.permute.xlu0 0
        %683 = vperm.xlu0 %682, %v616
        %v684 = vpop.permute.xlu0 %683
        %685 = vset.pattern.permute.xlu0 0
        %686 = vperm.xlu0 %685, %v617
        %v687 = vpop.permute.xlu0 %686
        %688 = vset.pattern.permute.xlu0 0
        %689 = vperm.xlu0 %688, %v618
        %v690 = vpop.permute.xlu0 %689
        %691 = vset.pattern.permute.xlu0 0
        %692 = vperm.xlu0 %691, %v619
        %v693 = vpop.permute.xlu0 %692
        %694 = vset.pattern.permute.xlu0 0
        %695 = vperm.xlu0 %694, %v620
        %v696 = vpop.permute.xlu0 %695
        %697 = vset.pattern.permute.xlu0 0
        %698 = vperm.xlu0 %697, %v621
        %v699 = vpop.permute.xlu0 %698
        %700 = vset.pattern.permute.xlu0 0
        %701 = vperm.xlu0 %700, %v622
        %v702 = vpop.permute.xlu0 %701
        %703 = vset.pattern.permute.xlu0 0
        %704 = vperm.xlu0 %703, %v623
        %v705 = vpop.permute.xlu0 %704
        %706 = vset.pattern.permute.xlu0 0
        %707 = vperm.xlu0 %706, %v624
        %v708 = vpop.permute.xlu0 %707
        %709 = vset.pattern.permute.xlu0 0
        %710 = vperm.xlu0 %709, %v625
        %v711 = vpop.permute.xlu0 %710
        %712 = vset.pattern.permute.xlu0 0
        %713 = vperm.xlu0 %712, %v626
        %v714 = vpop.permute.xlu0 %713
        %715 = vset.pattern.permute.xlu0 0
        %716 = vperm.xlu0 %715, %v627
        %v717 = vpop.permute.xlu0 %716
        %718 = vset.pattern.permute.xlu0 0
        %719 = vperm.xlu0 %718, %v628
        %v720 = vpop.permute.xlu0 %719
        %721 = vset.pattern.permute.xlu0 0
        %722 = vperm.xlu0 %721, %v629
        %v723 = vpop.permute.xlu0 %722
        %724 = vset.pattern.permute.xlu0 0
        %725 = vperm.xlu0 %724, %v630
        %v726 = vpop.permute.xlu0 %725
        %727 = vset.pattern.permute.xlu0 0
        %728 = vperm.xlu0 %727, %v631
        %v729 = vpop.permute.xlu0 %728
        %vm730 = vcmp.eq.s32.totalorder %v633, %v636
        %vm731 = vcmp.eq.s32.totalorder %v633, %v639
        %vm732 = vcmp.eq.s32.totalorder %v633, %v642
        %vm733 = vcmp.eq.s32.totalorder %v633, %v645
        %vm734 = vcmp.eq.s32.totalorder %v633, %v648
        %vm735 = vcmp.eq.s32.totalorder %v633, %v651
        %vm736 = vcmp.eq.s32.totalorder %v633, %v654
        %vm737 = vcmp.eq.s32.totalorder %v633, %v657
        %vm738 = vcmp.eq.s32.totalorder %v633, %v660
        %vm739 = vcmp.eq.s32.totalorder %v633, %v663
        %vm740 = vcmp.eq.s32.totalorder %v633, %v666
        %vm741 = vcmp.eq.s32.totalorder %v633, %v669
        %vm742 = vcmp.eq.s32.totalorder %v633, %v672
        %vm743 = vcmp.eq.s32.totalorder %v633, %v675
        %vm744 = vcmp.eq.s32.totalorder %v633, %v678
        %vm745 = vcmp.eq.s32.totalorder %v633, %v681
        %vm746 = vcmp.eq.s32.totalorder %v633, %v684
        %vm747 = vcmp.eq.s32.totalorder %v633, %v687
        %vm748 = vcmp.eq.s32.totalorder %v633, %v690
        %vm749 = vcmp.eq.s32.totalorder %v633, %v693
        %vm750 = vcmp.eq.s32.totalorder %v633, %v696
        %vm751 = vcmp.eq.s32.totalorder %v633, %v699
        %vm752 = vcmp.eq.s32.totalorder %v633, %v702
        %vm753 = vcmp.eq.s32.totalorder %v633, %v705
        %vm754 = vcmp.eq.s32.totalorder %v633, %v708
        %vm755 = vcmp.eq.s32.totalorder %v633, %v711
        %vm756 = vcmp.eq.s32.totalorder %v633, %v714
        %vm757 = vcmp.eq.s32.totalorder %v633, %v717
        %vm758 = vcmp.eq.s32.totalorder %v633, %v720
        %vm759 = vcmp.eq.s32.totalorder %v633, %v723
        %vm760 = vcmp.eq.s32.totalorder %v633, %v726
        %vm761 = vcmp.eq.s32.totalorder %v633, %v729
        %v762 = vsel %vm730, 1, 0
        %v763 = vsel %vm731, 1, 0
        %v764 = vsel %vm732, 1, 0
        %v765 = vsel %vm733, 1, 0
        %v766 = vsel %vm734, 1, 0
        %v767 = vsel %vm735, 1, 0
        %v768 = vsel %vm736, 1, 0
        %v769 = vsel %vm737, 1, 0
        %v770 = vsel %vm738, 1, 0
        %v771 = vsel %vm739, 1, 0
        %v772 = vsel %vm740, 1, 0
        %v773 = vsel %vm741, 1, 0
        %v774 = vsel %vm742, 1, 0
        %v775 = vsel %vm743, 1, 0
        %v776 = vsel %vm744, 1, 0
        %v777 = vsel %vm745, 1, 0
        %v778 = vsel %vm746, 1, 0
        %v779 = vsel %vm747, 1, 0
        %v780 = vsel %vm748, 1, 0
        %v781 = vsel %vm749, 1, 0
        %v782 = vsel %vm750, 1, 0
        %v783 = vsel %vm751, 1, 0
        %v784 = vsel %vm752, 1, 0
        %v785 = vsel %vm753, 1, 0
        %v786 = vsel %vm754, 1, 0
        %v787 = vsel %vm755, 1, 0
        %v788 = vsel %vm756, 1, 0
        %v789 = vsel %vm757, 1, 0
        %v790 = vsel %vm758, 1, 0
        %v791 = vsel %vm759, 1, 0
        %v792 = vsel %vm760, 1, 0
        %v793 = vsel %vm761, 1, 0
        %v794 = vcvt.s32.f32 %v762
        %v795 = vcvt.s32.f32 %v763
        %v796 = vcvt.s32.f32 %v764
        %v797 = vcvt.s32.f32 %v765
        %v798 = vcvt.s32.f32 %v766
        %v799 = vcvt.s32.f32 %v767
        %v800 = vcvt.s32.f32 %v768
        %v801 = vcvt.s32.f32 %v769
        %v802 = vcvt.s32.f32 %v770
        %v803 = vcvt.s32.f32 %v771
        %v804 = vcvt.s32.f32 %v772
        %v805 = vcvt.s32.f32 %v773
        %v806 = vcvt.s32.f32 %v774
        %v807 = vcvt.s32.f32 %v775
        %v808 = vcvt.s32.f32 %v776
        %v809 = vcvt.s32.f32 %v777
        %v810 = vcvt.s32.f32 %v778
        %v811 = vcvt.s32.f32 %v779
        %v812 = vcvt.s32.f32 %v780
        %v813 = vcvt.s32.f32 %v781
        %v814 = vcvt.s32.f32 %v782
        %v815 = vcvt.s32.f32 %v783
        %v816 = vcvt.s32.f32 %v784
        %v817 = vcvt.s32.f32 %v785
        %v818 = vcvt.s32.f32 %v786
        %v819 = vcvt.s32.f32 %v787
        %v820 = vcvt.s32.f32 %v788
        %v821 = vcvt.s32.f32 %v789
        %v822 = vcvt.s32.f32 %v790
        %v823 = vcvt.s32.f32 %v791
        %v824 = vcvt.s32.f32 %v792
        %v825 = vcvt.s32.f32 %v793
        %v826 = vadd.f32 %v794, 0.0
        %v827 = vadd.f32 %v795, 0.0
        %v828 = vadd.f32 %v796, 0.0
        %v829 = vadd.f32 %v797, 0.0
        %v830 = vadd.f32 %v798, 0.0
        %v831 = vadd.f32 %v799, 0.0
        %v832 = vadd.f32 %v800, 0.0
        %v833 = vadd.f32 %v801, 0.0
        %v834 = vadd.f32 %v802, 0.0
        %v835 = vadd.f32 %v803, 0.0
        %v836 = vadd.f32 %v804, 0.0
        %v837 = vadd.f32 %v805, 0.0
        %v838 = vadd.f32 %v806, 0.0
        %v839 = vadd.f32 %v807, 0.0
        %v840 = vadd.f32 %v808, 0.0
        %v841 = vadd.f32 %v809, 0.0
        %v842 = vadd.f32 %v810, 0.0
        %v843 = vadd.f32 %v811, 0.0
        %v844 = vadd.f32 %v812, 0.0
        %v845 = vadd.f32 %v813, 0.0
        %v846 = vadd.f32 %v814, 0.0
        %v847 = vadd.f32 %v815, 0.0
        %v848 = vadd.f32 %v816, 0.0
        %v849 = vadd.f32 %v817, 0.0
        %v850 = vadd.f32 %v818, 0.0
        %v851 = vadd.f32 %v819, 0.0
        %v852 = vadd.f32 %v820, 0.0
        %v853 = vadd.f32 %v821, 0.0
        %v854 = vadd.f32 %v822, 0.0
        %v855 = vadd.f32 %v823, 0.0
        %v856 = vadd.f32 %v824, 0.0
        %v857 = vadd.f32 %v825, 0.0
        %858 = vset.pattern.permute.xlu0 1
        %859 = vperm.xlu0 %858, %v600
        %v860 = vpop.permute.xlu0 %859
        %861 = vset.pattern.permute.xlu0 1
        %862 = vperm.xlu0 %861, %v601
        %v863 = vpop.permute.xlu0 %862
        %864 = vset.pattern.permute.xlu0 1
        %865 = vperm.xlu0 %864, %v602
        %v866 = vpop.permute.xlu0 %865
        %867 = vset.pattern.permute.xlu0 1
        %868 = vperm.xlu0 %867, %v603
        %v869 = vpop.permute.xlu0 %868
        %870 = vset.pattern.permute.xlu0 1
        %871 = vperm.xlu0 %870, %v604
        %v872 = vpop.permute.xlu0 %871
        %873 = vset.pattern.permute.xlu0 1
        %874 = vperm.xlu0 %873, %v605
        %v875 = vpop.permute.xlu0 %874
        %876 = vset.pattern.permute.xlu0 1
        %877 = vperm.xlu0 %876, %v606
        %v878 = vpop.permute.xlu0 %877
        %879 = vset.pattern.permute.xlu0 1
        %880 = vperm.xlu0 %879, %v607
        %v881 = vpop.permute.xlu0 %880
        %882 = vset.pattern.permute.xlu0 1
        %883 = vperm.xlu0 %882, %v608
        %v884 = vpop.permute.xlu0 %883
        %885 = vset.pattern.permute.xlu0 1
        %886 = vperm.xlu0 %885, %v609
        %v887 = vpop.permute.xlu0 %886
        %888 = vset.pattern.permute.xlu0 1
        %889 = vperm.xlu0 %888, %v610
        %v890 = vpop.permute.xlu0 %889
        %891 = vset.pattern.permute.xlu0 1
        %892 = vperm.xlu0 %891, %v611
        %v893 = vpop.permute.xlu0 %892
        %894 = vset.pattern.permute.xlu0 1
        %895 = vperm.xlu0 %894, %v612
        %v896 = vpop.permute.xlu0 %895
        %897 = vset.pattern.permute.xlu0 1
        %898 = vperm.xlu0 %897, %v613
        %v899 = vpop.permute.xlu0 %898
        %900 = vset.pattern.permute.xlu0 1
        %901 = vperm.xlu0 %900, %v614
        %v902 = vpop.permute.xlu0 %901
        %903 = vset.pattern.permute.xlu0 1
        %904 = vperm.xlu0 %903, %v615
        %v905 = vpop.permute.xlu0 %904
        %906 = vset.pattern.permute.xlu0 1
        %907 = vperm.xlu0 %906, %v616
        %v908 = vpop.permute.xlu0 %907
        %909 = vset.pattern.permute.xlu0 1
        %910 = vperm.xlu0 %909, %v617
        %v911 = vpop.permute.xlu0 %910
        %912 = vset.pattern.permute.xlu0 1
        %913 = vperm.xlu0 %912, %v618
        %v914 = vpop.permute.xlu0 %913
        %915 = vset.pattern.permute.xlu0 1
        %916 = vperm.xlu0 %915, %v619
        %v917 = vpop.permute.xlu0 %916
        %918 = vset.pattern.permute.xlu0 1
        %919 = vperm.xlu0 %918, %v620
        %v920 = vpop.permute.xlu0 %919
        %921 = vset.pattern.permute.xlu0 1
        %922 = vperm.xlu0 %921, %v621
        %v923 = vpop.permute.xlu0 %922
        %924 = vset.pattern.permute.xlu0 1
        %925 = vperm.xlu0 %924, %v622
        %v926 = vpop.permute.xlu0 %925
        %927 = vset.pattern.permute.xlu0 1
        %928 = vperm.xlu0 %927, %v623
        %v929 = vpop.permute.xlu0 %928
        %930 = vset.pattern.permute.xlu0 1
        %931 = vperm.xlu0 %930, %v624
        %v932 = vpop.permute.xlu0 %931
        %933 = vset.pattern.permute.xlu0 1
        %934 = vperm.xlu0 %933, %v625
        %v935 = vpop.permute.xlu0 %934
        %936 = vset.pattern.permute.xlu0 1
        %937 = vperm.xlu0 %936, %v626
        %v938 = vpop.permute.xlu0 %937
        %939 = vset.pattern.permute.xlu0 1
        %940 = vperm.xlu0 %939, %v627
        %v941 = vpop.permute.xlu0 %940
        %942 = vset.pattern.permute.xlu0 1
        %943 = vperm.xlu0 %942, %v628
        %v944 = vpop.permute.xlu0 %943
        %945 = vset.pattern.permute.xlu0 1
        %946 = vperm.xlu0 %945, %v629
        %v947 = vpop.permute.xlu0 %946
        %948 = vset.pattern.permute.xlu0 1
        %949 = vperm.xlu0 %948, %v630
        %v950 = vpop.permute.xlu0 %949
        %951 = vset.pattern.permute.xlu0 1
        %952 = vperm.xlu0 %951, %v631
        %v953 = vpop.permute.xlu0 %952
        %vm954 = vcmp.eq.s32.totalorder %v633, %v860
        %vm955 = vcmp.eq.s32.totalorder %v633, %v863
        %vm956 = vcmp.eq.s32.totalorder %v633, %v866
        %vm957 = vcmp.eq.s32.totalorder %v633, %v869
        %vm958 = vcmp.eq.s32.totalorder %v633, %v872
        %vm959 = vcmp.eq.s32.totalorder %v633, %v875
        %vm960 = vcmp.eq.s32.totalorder %v633, %v878
        %vm961 = vcmp.eq.s32.totalorder %v633, %v881
        %vm962 = vcmp.eq.s32.totalorder %v633, %v884
        %vm963 = vcmp.eq.s32.totalorder %v633, %v887
        %vm964 = vcmp.eq.s32.totalorder %v633, %v890
        %vm965 = vcmp.eq.s32.totalorder %v633, %v893
        %vm966 = vcmp.eq.s32.totalorder %v633, %v896
        %vm967 = vcmp.eq.s32.totalorder %v633, %v899
        %vm968 = vcmp.eq.s32.totalorder %v633, %v902
        %vm969 = vcmp.eq.s32.totalorder %v633, %v905
        %vm970 = vcmp.eq.s32.totalorder %v633, %v908
        %vm971 = vcmp.eq.s32.totalorder %v633, %v911
        %vm972 = vcmp.eq.s32.totalorder %v633, %v914
        %vm973 = vcmp.eq.s32.totalorder %v633, %v917
        %vm974 = vcmp.eq.s32.totalorder %v633, %v920
        %vm975 = vcmp.eq.s32.totalorder %v633, %v923
        %vm976 = vcmp.eq.s32.totalorder %v633, %v926
        %vm977 = vcmp.eq.s32.totalorder %v633, %v929
        %vm978 = vcmp.eq.s32.totalorder %v633, %v932
        %vm979 = vcmp.eq.s32.totalorder %v633, %v935
        %vm980 = vcmp.eq.s32.totalorder %v633, %v938
        %vm981 = vcmp.eq.s32.totalorder %v633, %v941
        %vm982 = vcmp.eq.s32.totalorder %v633, %v944
        %vm983 = vcmp.eq.s32.totalorder %v633, %v947
        %vm984 = vcmp.eq.s32.totalorder %v633, %v950
        %vm985 = vcmp.eq.s32.totalorder %v633, %v953
        %v986 = vsel %vm954, 1, 0
        %v987 = vsel %vm955, 1, 0
        %v988 = vsel %vm956, 1, 0
        %v989 = vsel %vm957, 1, 0
        %v990 = vsel %vm958, 1, 0
        %v991 = vsel %vm959, 1, 0
        %v992 = vsel %vm960, 1, 0
        %v993 = vsel %vm961, 1, 0
        %v994 = vsel %vm962, 1, 0
        %v995 = vsel %vm963, 1, 0
        %v996 = vsel %vm964, 1, 0
        %v997 = vsel %vm965, 1, 0
        %v998 = vsel %vm966, 1, 0
        %v999 = vsel %vm967, 1, 0
        %v1000 = vsel %vm968, 1, 0
        %v1001 = vsel %vm969, 1, 0
        %v1002 = vsel %vm970, 1, 0
        %v1003 = vsel %vm971, 1, 0
        %v1004 = vsel %vm972, 1, 0
        %v1005 = vsel %vm973, 1, 0
        %v1006 = vsel %vm974, 1, 0
        %v1007 = vsel %vm975, 1, 0
        %v1008 = vsel %vm976, 1, 0
        %v1009 = vsel %vm977, 1, 0
        %v1010 = vsel %vm978, 1, 0
        %v1011 = vsel %vm979, 1, 0
        %v1012 = vsel %vm980, 1, 0
        %v1013 = vsel %vm981, 1, 0
        %v1014 = vsel %vm982, 1, 0
        %v1015 = vsel %vm983, 1, 0
        %v1016 = vsel %vm984, 1, 0
        %v1017 = vsel %vm985, 1, 0
        %v1018 = vcvt.s32.f32 %v986
        %v1019 = vcvt.s32.f32 %v987
        %v1020 = vcvt.s32.f32 %v988
        %v1021 = vcvt.s32.f32 %v989
        %v1022 = vcvt.s32.f32 %v990
        %v1023 = vcvt.s32.f32 %v991
        %v1024 = vcvt.s32.f32 %v992
        %v1025 = vcvt.s32.f32 %v993
        %v1026 = vcvt.s32.f32 %v994
        %v1027 = vcvt.s32.f32 %v995
        %v1028 = vcvt.s32.f32 %v996
        %v1029 = vcvt.s32.f32 %v997
        %v1030 = vcvt.s32.f32 %v998
        %v1031 = vcvt.s32.f32 %v999
        %v1032 = vcvt.s32.f32 %v1000
        %v1033 = vcvt.s32.f32 %v1001
        %v1034 = vcvt.s32.f32 %v1002
        %v1035 = vcvt.s32.f32 %v1003
        %v1036 = vcvt.s32.f32 %v1004
        %v1037 = vcvt.s32.f32 %v1005
        %v1038 = vcvt.s32.f32 %v1006
        %v1039 = vcvt.s32.f32 %v1007
        %v1040 = vcvt.s32.f32 %v1008
        %v1041 = vcvt.s32.f32 %v1009
        %v1042 = vcvt.s32.f32 %v1010
        %v1043 = vcvt.s32.f32 %v1011
        %v1044 = vcvt.s32.f32 %v1012
        %v1045 = vcvt.s32.f32 %v1013
        %v1046 = vcvt.s32.f32 %v1014
        %v1047 = vcvt.s32.f32 %v1015
        %v1048 = vcvt.s32.f32 %v1016
        %v1049 = vcvt.s32.f32 %v1017
        %v1050 = vadd.f32 %v826, %v1018
        %v1051 = vadd.f32 %v827, %v1019
        %v1052 = vadd.f32 %v828, %v1020
        %v1053 = vadd.f32 %v829, %v1021
        %v1054 = vadd.f32 %v830, %v1022
        %v1055 = vadd.f32 %v831, %v1023
        %v1056 = vadd.f32 %v832, %v1024
        %v1057 = vadd.f32 %v833, %v1025
        %v1058 = vadd.f32 %v834, %v1026
        %v1059 = vadd.f32 %v835, %v1027
        %v1060 = vadd.f32 %v836, %v1028
        %v1061 = vadd.f32 %v837, %v1029
        %v1062 = vadd.f32 %v838, %v1030
        %v1063 = vadd.f32 %v839, %v1031
        %v1064 = vadd.f32 %v840, %v1032
        %v1065 = vadd.f32 %v841, %v1033
        %v1066 = vadd.f32 %v842, %v1034
        %v1067 = vadd.f32 %v843, %v1035
        %v1068 = vadd.f32 %v844, %v1036
        %v1069 = vadd.f32 %v845, %v1037
        %v1070 = vadd.f32 %v846, %v1038
        %v1071 = vadd.f32 %v847, %v1039
        %v1072 = vadd.f32 %v848, %v1040
        %v1073 = vadd.f32 %v849, %v1041
        %v1074 = vadd.f32 %v850, %v1042
        %v1075 = vadd.f32 %v851, %v1043
        %v1076 = vadd.f32 %v852, %v1044
        %v1077 = vadd.f32 %v853, %v1045
        %v1078 = vadd.f32 %v854, %v1046
        %v1079 = vadd.f32 %v855, %v1047
        %v1080 = vadd.f32 %v856, %v1048
        %v1081 = vadd.f32 %v857, %v1049
        %v1082 = vpack.c.bf16 %v1051, %v1050
        %v1083 = vpack.c.bf16 %v1053, %v1052
        %v1084 = vpack.c.bf16 %v1055, %v1054
        %v1085 = vpack.c.bf16 %v1057, %v1056
        %v1086 = vpack.c.bf16 %v1059, %v1058
        %v1087 = vpack.c.bf16 %v1061, %v1060
        %v1088 = vpack.c.bf16 %v1063, %v1062
        %v1089 = vpack.c.bf16 %v1065, %v1064
        %v1090 = vpack.c.bf16 %v1067, %v1066
        %v1091 = vpack.c.bf16 %v1069, %v1068
        %v1092 = vpack.c.bf16 %v1071, %v1070
        %v1093 = vpack.c.bf16 %v1073, %v1072
        %v1094 = vpack.c.bf16 %v1075, %v1074
        %v1095 = vpack.c.bf16 %v1077, %v1076
        %v1096 = vpack.c.bf16 %v1079, %v1078
        %v1097 = vpack.c.bf16 %v1081, %v1080
        %1098 = vset.pattern.permute.xlu0 2
        %1099 = vperm.xlu0 %1098, %v600
        %v1100 = vpop.permute.xlu0 %1099
        %1101 = vset.pattern.permute.xlu0 2
        %1102 = vperm.xlu0 %1101, %v601
        %v1103 = vpop.permute.xlu0 %1102
        %1104 = vset.pattern.permute.xlu0 2
        %1105 = vperm.xlu0 %1104, %v602
        %v1106 = vpop.permute.xlu0 %1105
        %1107 = vset.pattern.permute.xlu0 2
        %1108 = vperm.xlu0 %1107, %v603
        %v1109 = vpop.permute.xlu0 %1108
        %1110 = vset.pattern.permute.xlu0 2
        %1111 = vperm.xlu0 %1110, %v604
        %v1112 = vpop.permute.xlu0 %1111
        %1113 = vset.pattern.permute.xlu0 2
        %1114 = vperm.xlu0 %1113, %v605
        %v1115 = vpop.permute.xlu0 %1114
        %1116 = vset.pattern.permute.xlu0 2
        %1117 = vperm.xlu0 %1116, %v606
        %v1118 = vpop.permute.xlu0 %1117
        %1119 = vset.pattern.permute.xlu0 2
        %1120 = vperm.xlu0 %1119, %v607
        %v1121 = vpop.permute.xlu0 %1120
        %1122 = vset.pattern.permute.xlu0 2
        %1123 = vperm.xlu0 %1122, %v608
        %v1124 = vpop.permute.xlu0 %1123
        %1125 = vset.pattern.permute.xlu0 2
        %1126 = vperm.xlu0 %1125, %v609
        %v1127 = vpop.permute.xlu0 %1126
        %1128 = vset.pattern.permute.xlu0 2
        %1129 = vperm.xlu0 %1128, %v610
        %v1130 = vpop.permute.xlu0 %1129
        %1131 = vset.pattern.permute.xlu0 2
        %1132 = vperm.xlu0 %1131, %v611
        %v1133 = vpop.permute.xlu0 %1132
        %1134 = vset.pattern.permute.xlu0 2
        %1135 = vperm.xlu0 %1134, %v612
        %v1136 = vpop.permute.xlu0 %1135
        %1137 = vset.pattern.permute.xlu0 2
        %1138 = vperm.xlu0 %1137, %v613
        %v1139 = vpop.permute.xlu0 %1138
        %1140 = vset.pattern.permute.xlu0 2
        %1141 = vperm.xlu0 %1140, %v614
        %v1142 = vpop.permute.xlu0 %1141
        %1143 = vset.pattern.permute.xlu0 2
        %1144 = vperm.xlu0 %1143, %v615
        %v1145 = vpop.permute.xlu0 %1144
        %1146 = vset.pattern.permute.xlu0 2
        %1147 = vperm.xlu0 %1146, %v616
        %v1148 = vpop.permute.xlu0 %1147
        %1149 = vset.pattern.permute.xlu0 2
        %1150 = vperm.xlu0 %1149, %v617
        %v1151 = vpop.permute.xlu0 %1150
        %1152 = vset.pattern.permute.xlu0 2
        %1153 = vperm.xlu0 %1152, %v618
        %v1154 = vpop.permute.xlu0 %1153
        %1155 = vset.pattern.permute.xlu0 2
        %1156 = vperm.xlu0 %1155, %v619
        %v1157 = vpop.permute.xlu0 %1156
        %1158 = vset.pattern.permute.xlu0 2
        %1159 = vperm.xlu0 %1158, %v620
        %v1160 = vpop.permute.xlu0 %1159
        %1161 = vset.pattern.permute.xlu0 2
        %1162 = vperm.xlu0 %1161, %v621
        %v1163 = vpop.permute.xlu0 %1162
        %1164 = vset.pattern.permute.xlu0 2
        %1165 = vperm.xlu0 %1164, %v622
        %v1166 = vpop.permute.xlu0 %1165
        %1167 = vset.pattern.permute.xlu0 2
        %1168 = vperm.xlu0 %1167, %v623
        %v1169 = vpop.permute.xlu0 %1168
        %1170 = vset.pattern.permute.xlu0 2
        %1171 = vperm.xlu0 %1170, %v624
        %v1172 = vpop.permute.xlu0 %1171
        %1173 = vset.pattern.permute.xlu0 2
        %1174 = vperm.xlu0 %1173, %v625
        %v1175 = vpop.permute.xlu0 %1174
        %1176 = vset.pattern.permute.xlu0 2
        %1177 = vperm.xlu0 %1176, %v626
        %v1178 = vpop.permute.xlu0 %1177
        %1179 = vset.pattern.permute.xlu0 2
        %1180 = vperm.xlu0 %1179, %v627
        %v1181 = vpop.permute.xlu0 %1180
        %1182 = vset.pattern.permute.xlu0 2
        %1183 = vperm.xlu0 %1182, %v628
        %v1184 = vpop.permute.xlu0 %1183
        %1185 = vset.pattern.permute.xlu0 2
        %1186 = vperm.xlu0 %1185, %v629
        %v1187 = vpop.permute.xlu0 %1186
        %1188 = vset.pattern.permute.xlu0 2
        %1189 = vperm.xlu0 %1188, %v630
        %v1190 = vpop.permute.xlu0 %1189
        %1191 = vset.pattern.permute.xlu0 2
        %1192 = vperm.xlu0 %1191, %v631
        %v1193 = vpop.permute.xlu0 %1192
        %vm1194 = vcmp.eq.s32.totalorder %v633, %v1100
        %vm1195 = vcmp.eq.s32.totalorder %v633, %v1103
        %vm1196 = vcmp.eq.s32.totalorder %v633, %v1106
        %vm1197 = vcmp.eq.s32.totalorder %v633, %v1109
        %vm1198 = vcmp.eq.s32.totalorder %v633, %v1112
        %vm1199 = vcmp.eq.s32.totalorder %v633, %v1115
        %vm1200 = vcmp.eq.s32.totalorder %v633, %v1118
        %vm1201 = vcmp.eq.s32.totalorder %v633, %v1121
        %vm1202 = vcmp.eq.s32.totalorder %v633, %v1124
        %vm1203 = vcmp.eq.s32.totalorder %v633, %v1127
        %vm1204 = vcmp.eq.s32.totalorder %v633, %v1130
        %vm1205 = vcmp.eq.s32.totalorder %v633, %v1133
        %vm1206 = vcmp.eq.s32.totalorder %v633, %v1136
        %vm1207 = vcmp.eq.s32.totalorder %v633, %v1139
        %vm1208 = vcmp.eq.s32.totalorder %v633, %v1142
        %vm1209 = vcmp.eq.s32.totalorder %v633, %v1145
        %vm1210 = vcmp.eq.s32.totalorder %v633, %v1148
        %vm1211 = vcmp.eq.s32.totalorder %v633, %v1151
        %vm1212 = vcmp.eq.s32.totalorder %v633, %v1154
        %vm1213 = vcmp.eq.s32.totalorder %v633, %v1157
        %vm1214 = vcmp.eq.s32.totalorder %v633, %v1160
        %vm1215 = vcmp.eq.s32.totalorder %v633, %v1163
        %vm1216 = vcmp.eq.s32.totalorder %v633, %v1166
        %vm1217 = vcmp.eq.s32.totalorder %v633, %v1169
        %vm1218 = vcmp.eq.s32.totalorder %v633, %v1172
        %vm1219 = vcmp.eq.s32.totalorder %v633, %v1175
        %vm1220 = vcmp.eq.s32.totalorder %v633, %v1178
        %vm1221 = vcmp.eq.s32.totalorder %v633, %v1181
        %vm1222 = vcmp.eq.s32.totalorder %v633, %v1184
        %vm1223 = vcmp.eq.s32.totalorder %v633, %v1187
        %vm1224 = vcmp.eq.s32.totalorder %v633, %v1190
        %vm1225 = vcmp.eq.s32.totalorder %v633, %v1193
        %v1226 = vsel %vm1194, 1, 0
        %v1227 = vsel %vm1195, 1, 0
        %v1228 = vsel %vm1196, 1, 0
        %v1229 = vsel %vm1197, 1, 0
        %v1230 = vsel %vm1198, 1, 0
        %v1231 = vsel %vm1199, 1, 0
        %v1232 = vsel %vm1200, 1, 0
        %v1233 = vsel %vm1201, 1, 0
        %v1234 = vsel %vm1202, 1, 0
        %v1235 = vsel %vm1203, 1, 0
        %v1236 = vsel %vm1204, 1, 0
        %v1237 = vsel %vm1205, 1, 0
        %v1238 = vsel %vm1206, 1, 0
        %v1239 = vsel %vm1207, 1, 0
        %v1240 = vsel %vm1208, 1, 0
        %v1241 = vsel %vm1209, 1, 0
        %v1242 = vsel %vm1210, 1, 0
        %v1243 = vsel %vm1211, 1, 0
        %v1244 = vsel %vm1212, 1, 0
        %v1245 = vsel %vm1213, 1, 0
        %v1246 = vsel %vm1214, 1, 0
        %v1247 = vsel %vm1215, 1, 0
        %v1248 = vsel %vm1216, 1, 0
        %v1249 = vsel %vm1217, 1, 0
        %v1250 = vsel %vm1218, 1, 0
        %v1251 = vsel %vm1219, 1, 0
        %v1252 = vsel %vm1220, 1, 0
        %v1253 = vsel %vm1221, 1, 0
        %v1254 = vsel %vm1222, 1, 0
        %v1255 = vsel %vm1223, 1, 0
        %v1256 = vsel %vm1224, 1, 0
        %v1257 = vsel %vm1225, 1, 0
        %v1258 = vcvt.s32.f32 %v1226
        %v1259 = vcvt.s32.f32 %v1227
        %v1260 = vcvt.s32.f32 %v1228
        %v1261 = vcvt.s32.f32 %v1229
        %v1262 = vcvt.s32.f32 %v1230
        %v1263 = vcvt.s32.f32 %v1231
        %v1264 = vcvt.s32.f32 %v1232
        %v1265 = vcvt.s32.f32 %v1233
        %v1266 = vcvt.s32.f32 %v1234
        %v1267 = vcvt.s32.f32 %v1235
        %v1268 = vcvt.s32.f32 %v1236
        %v1269 = vcvt.s32.f32 %v1237
        %v1270 = vcvt.s32.f32 %v1238
        %v1271 = vcvt.s32.f32 %v1239
        %v1272 = vcvt.s32.f32 %v1240
        %v1273 = vcvt.s32.f32 %v1241
        %v1274 = vcvt.s32.f32 %v1242
        %v1275 = vcvt.s32.f32 %v1243
        %v1276 = vcvt.s32.f32 %v1244
        %v1277 = vcvt.s32.f32 %v1245
        %v1278 = vcvt.s32.f32 %v1246
        %v1279 = vcvt.s32.f32 %v1247
        %v1280 = vcvt.s32.f32 %v1248
        %v1281 = vcvt.s32.f32 %v1249
        %v1282 = vcvt.s32.f32 %v1250
        %v1283 = vcvt.s32.f32 %v1251
        %v1284 = vcvt.s32.f32 %v1252
        %v1285 = vcvt.s32.f32 %v1253
        %v1286 = vcvt.s32.f32 %v1254
        %v1287 = vcvt.s32.f32 %v1255
        %v1288 = vcvt.s32.f32 %v1256
        %v1289 = vcvt.s32.f32 %v1257
        %v1290 = vadd.f32 %v1258, 0.0
        %v1291 = vadd.f32 %v1259, 0.0
        %v1292 = vadd.f32 %v1260, 0.0
        %v1293 = vadd.f32 %v1261, 0.0
        %v1294 = vadd.f32 %v1262, 0.0
        %v1295 = vadd.f32 %v1263, 0.0
        %v1296 = vadd.f32 %v1264, 0.0
        %v1297 = vadd.f32 %v1265, 0.0
        %v1298 = vadd.f32 %v1266, 0.0
        %v1299 = vadd.f32 %v1267, 0.0
        %v1300 = vadd.f32 %v1268, 0.0
        %v1301 = vadd.f32 %v1269, 0.0
        %v1302 = vadd.f32 %v1270, 0.0
        %v1303 = vadd.f32 %v1271, 0.0
        %v1304 = vadd.f32 %v1272, 0.0
        %v1305 = vadd.f32 %v1273, 0.0
        %v1306 = vadd.f32 %v1274, 0.0
        %v1307 = vadd.f32 %v1275, 0.0
        %v1308 = vadd.f32 %v1276, 0.0
        %v1309 = vadd.f32 %v1277, 0.0
        %v1310 = vadd.f32 %v1278, 0.0
        %v1311 = vadd.f32 %v1279, 0.0
        %v1312 = vadd.f32 %v1280, 0.0
        %v1313 = vadd.f32 %v1281, 0.0
        %v1314 = vadd.f32 %v1282, 0.0
        %v1315 = vadd.f32 %v1283, 0.0
        %v1316 = vadd.f32 %v1284, 0.0
        %v1317 = vadd.f32 %v1285, 0.0
        %v1318 = vadd.f32 %v1286, 0.0
        %v1319 = vadd.f32 %v1287, 0.0
        %v1320 = vadd.f32 %v1288, 0.0
        %v1321 = vadd.f32 %v1289, 0.0
        %1322 = vset.pattern.permute.xlu0 3
        %1323 = vperm.xlu0 %1322, %v600
        %v1324 = vpop.permute.xlu0 %1323
        %1325 = vset.pattern.permute.xlu0 3
        %1326 = vperm.xlu0 %1325, %v601
        %v1327 = vpop.permute.xlu0 %1326
        %1328 = vset.pattern.permute.xlu0 3
        %1329 = vperm.xlu0 %1328, %v602
        %v1330 = vpop.permute.xlu0 %1329
        %1331 = vset.pattern.permute.xlu0 3
        %1332 = vperm.xlu0 %1331, %v603
        %v1333 = vpop.permute.xlu0 %1332
        %1334 = vset.pattern.permute.xlu0 3
        %1335 = vperm.xlu0 %1334, %v604
        %v1336 = vpop.permute.xlu0 %1335
        %1337 = vset.pattern.permute.xlu0 3
        %1338 = vperm.xlu0 %1337, %v605
        %v1339 = vpop.permute.xlu0 %1338
        %1340 = vset.pattern.permute.xlu0 3
        %1341 = vperm.xlu0 %1340, %v606
        %v1342 = vpop.permute.xlu0 %1341
        %1343 = vset.pattern.permute.xlu0 3
        %1344 = vperm.xlu0 %1343, %v607
        %v1345 = vpop.permute.xlu0 %1344
        %1346 = vset.pattern.permute.xlu0 3
        %1347 = vperm.xlu0 %1346, %v608
        %v1348 = vpop.permute.xlu0 %1347
        %1349 = vset.pattern.permute.xlu0 3
        %1350 = vperm.xlu0 %1349, %v609
        %v1351 = vpop.permute.xlu0 %1350
        %1352 = vset.pattern.permute.xlu0 3
        %1353 = vperm.xlu0 %1352, %v610
        %v1354 = vpop.permute.xlu0 %1353
        %1355 = vset.pattern.permute.xlu0 3
        %1356 = vperm.xlu0 %1355, %v611
        %v1357 = vpop.permute.xlu0 %1356
        %1358 = vset.pattern.permute.xlu0 3
        %1359 = vperm.xlu0 %1358, %v612
        %v1360 = vpop.permute.xlu0 %1359
        %1361 = vset.pattern.permute.xlu0 3
        %1362 = vperm.xlu0 %1361, %v613
        %v1363 = vpop.permute.xlu0 %1362
        %1364 = vset.pattern.permute.xlu0 3
        %1365 = vperm.xlu0 %1364, %v614
        %v1366 = vpop.permute.xlu0 %1365
        %1367 = vset.pattern.permute.xlu0 3
        %1368 = vperm.xlu0 %1367, %v615
        %v1369 = vpop.permute.xlu0 %1368
        %1370 = vset.pattern.permute.xlu0 3
        %1371 = vperm.xlu0 %1370, %v616
        %v1372 = vpop.permute.xlu0 %1371
        %1373 = vset.pattern.permute.xlu0 3
        %1374 = vperm.xlu0 %1373, %v617
        %v1375 = vpop.permute.xlu0 %1374
        %1376 = vset.pattern.permute.xlu0 3
        %1377 = vperm.xlu0 %1376, %v618
        %v1378 = vpop.permute.xlu0 %1377
        %1379 = vset.pattern.permute.xlu0 3
        %1380 = vperm.xlu0 %1379, %v619
        %v1381 = vpop.permute.xlu0 %1380
        %1382 = vset.pattern.permute.xlu0 3
        %1383 = vperm.xlu0 %1382, %v620
        %v1384 = vpop.permute.xlu0 %1383
        %1385 = vset.pattern.permute.xlu0 3
        %1386 = vperm.xlu0 %1385, %v621
        %v1387 = vpop.permute.xlu0 %1386
        %1388 = vset.pattern.permute.xlu0 3
        %1389 = vperm.xlu0 %1388, %v622
        %v1390 = vpop.permute.xlu0 %1389
        %1391 = vset.pattern.permute.xlu0 3
        %1392 = vperm.xlu0 %1391, %v623
        %v1393 = vpop.permute.xlu0 %1392
        %1394 = vset.pattern.permute.xlu0 3
        %1395 = vperm.xlu0 %1394, %v624
        %v1396 = vpop.permute.xlu0 %1395
        %1397 = vset.pattern.permute.xlu0 3
        %1398 = vperm.xlu0 %1397, %v625
        %v1399 = vpop.permute.xlu0 %1398
        %1400 = vset.pattern.permute.xlu0 3
        %1401 = vperm.xlu0 %1400, %v626
        %v1402 = vpop.permute.xlu0 %1401
        %1403 = vset.pattern.permute.xlu0 3
        %1404 = vperm.xlu0 %1403, %v627
        %v1405 = vpop.permute.xlu0 %1404
        %1406 = vset.pattern.permute.xlu0 3
        %1407 = vperm.xlu0 %1406, %v628
        %v1408 = vpop.permute.xlu0 %1407
        %1409 = vset.pattern.permute.xlu0 3
        %1410 = vperm.xlu0 %1409, %v629
        %v1411 = vpop.permute.xlu0 %1410
        %1412 = vset.pattern.permute.xlu0 3
        %1413 = vperm.xlu0 %1412, %v630
        %v1414 = vpop.permute.xlu0 %1413
        %1415 = vset.pattern.permute.xlu0 3
        %1416 = vperm.xlu0 %1415, %v631
        %v1417 = vpop.permute.xlu0 %1416
        %vm1418 = vcmp.eq.s32.totalorder %v633, %v1324
        %vm1419 = vcmp.eq.s32.totalorder %v633, %v1327
        %vm1420 = vcmp.eq.s32.totalorder %v633, %v1330
        %vm1421 = vcmp.eq.s32.totalorder %v633, %v1333
        %vm1422 = vcmp.eq.s32.totalorder %v633, %v1336
        %vm1423 = vcmp.eq.s32.totalorder %v633, %v1339
        %vm1424 = vcmp.eq.s32.totalorder %v633, %v1342
        %vm1425 = vcmp.eq.s32.totalorder %v633, %v1345
        %vm1426 = vcmp.eq.s32.totalorder %v633, %v1348
        %vm1427 = vcmp.eq.s32.totalorder %v633, %v1351
        %vm1428 = vcmp.eq.s32.totalorder %v633, %v1354
        %vm1429 = vcmp.eq.s32.totalorder %v633, %v1357
        %vm1430 = vcmp.eq.s32.totalorder %v633, %v1360
        %vm1431 = vcmp.eq.s32.totalorder %v633, %v1363
        %vm1432 = vcmp.eq.s32.totalorder %v633, %v1366
        %vm1433 = vcmp.eq.s32.totalorder %v633, %v1369
        %vm1434 = vcmp.eq.s32.totalorder %v633, %v1372
        %vm1435 = vcmp.eq.s32.totalorder %v633, %v1375
        %vm1436 = vcmp.eq.s32.totalorder %v633, %v1378
        %vm1437 = vcmp.eq.s32.totalorder %v633, %v1381
        %vm1438 = vcmp.eq.s32.totalorder %v633, %v1384
        %vm1439 = vcmp.eq.s32.totalorder %v633, %v1387
        %vm1440 = vcmp.eq.s32.totalorder %v633, %v1390
        %vm1441 = vcmp.eq.s32.totalorder %v633, %v1393
        %vm1442 = vcmp.eq.s32.totalorder %v633, %v1396
        %vm1443 = vcmp.eq.s32.totalorder %v633, %v1399
        %vm1444 = vcmp.eq.s32.totalorder %v633, %v1402
        %vm1445 = vcmp.eq.s32.totalorder %v633, %v1405
        %vm1446 = vcmp.eq.s32.totalorder %v633, %v1408
        %vm1447 = vcmp.eq.s32.totalorder %v633, %v1411
        %vm1448 = vcmp.eq.s32.totalorder %v633, %v1414
        %vm1449 = vcmp.eq.s32.totalorder %v633, %v1417
        %v1450 = vsel %vm1418, 1, 0
        %v1451 = vsel %vm1419, 1, 0
        %v1452 = vsel %vm1420, 1, 0
        %v1453 = vsel %vm1421, 1, 0
        %v1454 = vsel %vm1422, 1, 0
        %v1455 = vsel %vm1423, 1, 0
        %v1456 = vsel %vm1424, 1, 0
        %v1457 = vsel %vm1425, 1, 0
        %v1458 = vsel %vm1426, 1, 0
        %v1459 = vsel %vm1427, 1, 0
        %v1460 = vsel %vm1428, 1, 0
        %v1461 = vsel %vm1429, 1, 0
        %v1462 = vsel %vm1430, 1, 0
        %v1463 = vsel %vm1431, 1, 0
        %v1464 = vsel %vm1432, 1, 0
        %v1465 = vsel %vm1433, 1, 0
        %v1466 = vsel %vm1434, 1, 0
        %v1467 = vsel %vm1435, 1, 0
        %v1468 = vsel %vm1436, 1, 0
        %v1469 = vsel %vm1437, 1, 0
        %v1470 = vsel %vm1438, 1, 0
        %v1471 = vsel %vm1439, 1, 0
        %v1472 = vsel %vm1440, 1, 0
        %v1473 = vsel %vm1441, 1, 0
        %v1474 = vsel %vm1442, 1, 0
        %v1475 = vsel %vm1443, 1, 0
        %v1476 = vsel %vm1444, 1, 0
        %v1477 = vsel %vm1445, 1, 0
        %v1478 = vsel %vm1446, 1, 0
        %v1479 = vsel %vm1447, 1, 0
        %v1480 = vsel %vm1448, 1, 0
        %v1481 = vsel %vm1449, 1, 0
        %v1482 = vcvt.s32.f32 %v1450
        %v1483 = vcvt.s32.f32 %v1451
        %v1484 = vcvt.s32.f32 %v1452
        %v1485 = vcvt.s32.f32 %v1453
        %v1486 = vcvt.s32.f32 %v1454
        %v1487 = vcvt.s32.f32 %v1455
        %v1488 = vcvt.s32.f32 %v1456
        %v1489 = vcvt.s32.f32 %v1457
        %v1490 = vcvt.s32.f32 %v1458
        %v1491 = vcvt.s32.f32 %v1459
        %v1492 = vcvt.s32.f32 %v1460
        %v1493 = vcvt.s32.f32 %v1461
        %v1494 = vcvt.s32.f32 %v1462
        %v1495 = vcvt.s32.f32 %v1463
        %v1496 = vcvt.s32.f32 %v1464
        %v1497 = vcvt.s32.f32 %v1465
        %v1498 = vcvt.s32.f32 %v1466
        %v1499 = vcvt.s32.f32 %v1467
        %v1500 = vcvt.s32.f32 %v1468
        %v1501 = vcvt.s32.f32 %v1469
        %v1502 = vcvt.s32.f32 %v1470
        %v1503 = vcvt.s32.f32 %v1471
        %v1504 = vcvt.s32.f32 %v1472
        %v1505 = vcvt.s32.f32 %v1473
        %v1506 = vcvt.s32.f32 %v1474
        %v1507 = vcvt.s32.f32 %v1475
        %v1508 = vcvt.s32.f32 %v1476
        %v1509 = vcvt.s32.f32 %v1477
        %v1510 = vcvt.s32.f32 %v1478
        %v1511 = vcvt.s32.f32 %v1479
        %v1512 = vcvt.s32.f32 %v1480
        %v1513 = vcvt.s32.f32 %v1481
        %v1514 = vadd.f32 %v1290, %v1482
        %v1515 = vadd.f32 %v1291, %v1483
        %v1516 = vadd.f32 %v1292, %v1484
        %v1517 = vadd.f32 %v1293, %v1485
        %v1518 = vadd.f32 %v1294, %v1486
        %v1519 = vadd.f32 %v1295, %v1487
        %v1520 = vadd.f32 %v1296, %v1488
        %v1521 = vadd.f32 %v1297, %v1489
        %v1522 = vadd.f32 %v1298, %v1490
        %v1523 = vadd.f32 %v1299, %v1491
        %v1524 = vadd.f32 %v1300, %v1492
        %v1525 = vadd.f32 %v1301, %v1493
        %v1526 = vadd.f32 %v1302, %v1494
        %v1527 = vadd.f32 %v1303, %v1495
        %v1528 = vadd.f32 %v1304, %v1496
        %v1529 = vadd.f32 %v1305, %v1497
        %v1530 = vadd.f32 %v1306, %v1498
        %v1531 = vadd.f32 %v1307, %v1499
        %v1532 = vadd.f32 %v1308, %v1500
        %v1533 = vadd.f32 %v1309, %v1501
        %v1534 = vadd.f32 %v1310, %v1502
        %v1535 = vadd.f32 %v1311, %v1503
        %v1536 = vadd.f32 %v1312, %v1504
        %v1537 = vadd.f32 %v1313, %v1505
        %v1538 = vadd.f32 %v1314, %v1506
        %v1539 = vadd.f32 %v1315, %v1507
        %v1540 = vadd.f32 %v1316, %v1508
        %v1541 = vadd.f32 %v1317, %v1509
        %v1542 = vadd.f32 %v1318, %v1510
        %v1543 = vadd.f32 %v1319, %v1511
        %v1544 = vadd.f32 %v1320, %v1512
        %v1545 = vadd.f32 %v1321, %v1513
        %v1546 = vpack.c.bf16 %v1515, %v1514
        %v1547 = vpack.c.bf16 %v1517, %v1516
        %v1548 = vpack.c.bf16 %v1519, %v1518
        %v1549 = vpack.c.bf16 %v1521, %v1520
        %v1550 = vpack.c.bf16 %v1523, %v1522
        %v1551 = vpack.c.bf16 %v1525, %v1524
        %v1552 = vpack.c.bf16 %v1527, %v1526
        %v1553 = vpack.c.bf16 %v1529, %v1528
        %v1554 = vpack.c.bf16 %v1531, %v1530
        %v1555 = vpack.c.bf16 %v1533, %v1532
        %v1556 = vpack.c.bf16 %v1535, %v1534
        %v1557 = vpack.c.bf16 %v1537, %v1536
        %v1558 = vpack.c.bf16 %v1539, %v1538
        %v1559 = vpack.c.bf16 %v1541, %v1540
        %v1560 = vpack.c.bf16 %v1543, %v1542
        %v1561 = vpack.c.bf16 %v1545, %v1544
        %1562 = vset.pattern.permute.xlu0 4
        %1563 = vperm.xlu0 %1562, %v600
        %v1564 = vpop.permute.xlu0 %1563
        %1565 = vset.pattern.permute.xlu0 4
        %1566 = vperm.xlu0 %1565, %v601
        %v1567 = vpop.permute.xlu0 %1566
        %1568 = vset.pattern.permute.xlu0 4
        %1569 = vperm.xlu0 %1568, %v602
        %v1570 = vpop.permute.xlu0 %1569
        %1571 = vset.pattern.permute.xlu0 4
        %1572 = vperm.xlu0 %1571, %v603
        %v1573 = vpop.permute.xlu0 %1572
        %1574 = vset.pattern.permute.xlu0 4
        %1575 = vperm.xlu0 %1574, %v604
        %v1576 = vpop.permute.xlu0 %1575
        %1577 = vset.pattern.permute.xlu0 4
        %1578 = vperm.xlu0 %1577, %v605
        %v1579 = vpop.permute.xlu0 %1578
        %1580 = vset.pattern.permute.xlu0 4
        %1581 = vperm.xlu0 %1580, %v606
        %v1582 = vpop.permute.xlu0 %1581
        %1583 = vset.pattern.permute.xlu0 4
        %1584 = vperm.xlu0 %1583, %v607
        %v1585 = vpop.permute.xlu0 %1584
        %1586 = vset.pattern.permute.xlu0 4
        %1587 = vperm.xlu0 %1586, %v608
        %v1588 = vpop.permute.xlu0 %1587
        %1589 = vset.pattern.permute.xlu0 4
        %1590 = vperm.xlu0 %1589, %v609
        %v1591 = vpop.permute.xlu0 %1590
        %1592 = vset.pattern.permute.xlu0 4
        %1593 = vperm.xlu0 %1592, %v610
        %v1594 = vpop.permute.xlu0 %1593
        %1595 = vset.pattern.permute.xlu0 4
        %1596 = vperm.xlu0 %1595, %v611
        %v1597 = vpop.permute.xlu0 %1596
        %1598 = vset.pattern.permute.xlu0 4
        %1599 = vperm.xlu0 %1598, %v612
        %v1600 = vpop.permute.xlu0 %1599
        %1601 = vset.pattern.permute.xlu0 4
        %1602 = vperm.xlu0 %1601, %v613
        %v1603 = vpop.permute.xlu0 %1602
        %1604 = vset.pattern.permute.xlu0 4
        %1605 = vperm.xlu0 %1604, %v614
        %v1606 = vpop.permute.xlu0 %1605
        %1607 = vset.pattern.permute.xlu0 4
        %1608 = vperm.xlu0 %1607, %v615
        %v1609 = vpop.permute.xlu0 %1608
        %1610 = vset.pattern.permute.xlu0 4
        %1611 = vperm.xlu0 %1610, %v616
        %v1612 = vpop.permute.xlu0 %1611
        %1613 = vset.pattern.permute.xlu0 4
        %1614 = vperm.xlu0 %1613, %v617
        %v1615 = vpop.permute.xlu0 %1614
        %1616 = vset.pattern.permute.xlu0 4
        %1617 = vperm.xlu0 %1616, %v618
        %v1618 = vpop.permute.xlu0 %1617
        %1619 = vset.pattern.permute.xlu0 4
        %1620 = vperm.xlu0 %1619, %v619
        %v1621 = vpop.permute.xlu0 %1620
        %1622 = vset.pattern.permute.xlu0 4
        %1623 = vperm.xlu0 %1622, %v620
        %v1624 = vpop.permute.xlu0 %1623
        %1625 = vset.pattern.permute.xlu0 4
        %1626 = vperm.xlu0 %1625, %v621
        %v1627 = vpop.permute.xlu0 %1626
        %1628 = vset.pattern.permute.xlu0 4
        %1629 = vperm.xlu0 %1628, %v622
        %v1630 = vpop.permute.xlu0 %1629
        %1631 = vset.pattern.permute.xlu0 4
        %1632 = vperm.xlu0 %1631, %v623
        %v1633 = vpop.permute.xlu0 %1632
        %1634 = vset.pattern.permute.xlu0 4
        %1635 = vperm.xlu0 %1634, %v624
        %v1636 = vpop.permute.xlu0 %1635
        %1637 = vset.pattern.permute.xlu0 4
        %1638 = vperm.xlu0 %1637, %v625
        %v1639 = vpop.permute.xlu0 %1638
        %1640 = vset.pattern.permute.xlu0 4
        %1641 = vperm.xlu0 %1640, %v626
        %v1642 = vpop.permute.xlu0 %1641
        %1643 = vset.pattern.permute.xlu0 4
        %1644 = vperm.xlu0 %1643, %v627
        %v1645 = vpop.permute.xlu0 %1644
        %1646 = vset.pattern.permute.xlu0 4
        %1647 = vperm.xlu0 %1646, %v628
        %v1648 = vpop.permute.xlu0 %1647
        %1649 = vset.pattern.permute.xlu0 4
        %1650 = vperm.xlu0 %1649, %v629
        %v1651 = vpop.permute.xlu0 %1650
        %1652 = vset.pattern.permute.xlu0 4
        %1653 = vperm.xlu0 %1652, %v630
        %v1654 = vpop.permute.xlu0 %1653
        %1655 = vset.pattern.permute.xlu0 4
        %1656 = vperm.xlu0 %1655, %v631
        %v1657 = vpop.permute.xlu0 %1656
        %vm1658 = vcmp.eq.s32.totalorder %v633, %v1564
        %vm1659 = vcmp.eq.s32.totalorder %v633, %v1567
        %vm1660 = vcmp.eq.s32.totalorder %v633, %v1570
        %vm1661 = vcmp.eq.s32.totalorder %v633, %v1573
        %vm1662 = vcmp.eq.s32.totalorder %v633, %v1576
        %vm1663 = vcmp.eq.s32.totalorder %v633, %v1579
        %vm1664 = vcmp.eq.s32.totalorder %v633, %v1582
        %vm1665 = vcmp.eq.s32.totalorder %v633, %v1585
        %vm1666 = vcmp.eq.s32.totalorder %v633, %v1588
        %vm1667 = vcmp.eq.s32.totalorder %v633, %v1591
        %vm1668 = vcmp.eq.s32.totalorder %v633, %v1594
        %vm1669 = vcmp.eq.s32.totalorder %v633, %v1597
        %vm1670 = vcmp.eq.s32.totalorder %v633, %v1600
        %vm1671 = vcmp.eq.s32.totalorder %v633, %v1603
        %vm1672 = vcmp.eq.s32.totalorder %v633, %v1606
        %vm1673 = vcmp.eq.s32.totalorder %v633, %v1609
        %vm1674 = vcmp.eq.s32.totalorder %v633, %v1612
        %vm1675 = vcmp.eq.s32.totalorder %v633, %v1615
        %vm1676 = vcmp.eq.s32.totalorder %v633, %v1618
        %vm1677 = vcmp.eq.s32.totalorder %v633, %v1621
        %vm1678 = vcmp.eq.s32.totalorder %v633, %v1624
        %vm1679 = vcmp.eq.s32.totalorder %v633, %v1627
        %vm1680 = vcmp.eq.s32.totalorder %v633, %v1630
        %vm1681 = vcmp.eq.s32.totalorder %v633, %v1633
        %vm1682 = vcmp.eq.s32.totalorder %v633, %v1636
        %vm1683 = vcmp.eq.s32.totalorder %v633, %v1639
        %vm1684 = vcmp.eq.s32.totalorder %v633, %v1642
        %vm1685 = vcmp.eq.s32.totalorder %v633, %v1645
        %vm1686 = vcmp.eq.s32.totalorder %v633, %v1648
        %vm1687 = vcmp.eq.s32.totalorder %v633, %v1651
        %vm1688 = vcmp.eq.s32.totalorder %v633, %v1654
        %vm1689 = vcmp.eq.s32.totalorder %v633, %v1657
        %v1690 = vsel %vm1658, 1, 0
        %v1691 = vsel %vm1659, 1, 0
        %v1692 = vsel %vm1660, 1, 0
        %v1693 = vsel %vm1661, 1, 0
        %v1694 = vsel %vm1662, 1, 0
        %v1695 = vsel %vm1663, 1, 0
        %v1696 = vsel %vm1664, 1, 0
        %v1697 = vsel %vm1665, 1, 0
        %v1698 = vsel %vm1666, 1, 0
        %v1699 = vsel %vm1667, 1, 0
        %v1700 = vsel %vm1668, 1, 0
        %v1701 = vsel %vm1669, 1, 0
        %v1702 = vsel %vm1670, 1, 0
        %v1703 = vsel %vm1671, 1, 0
        %v1704 = vsel %vm1672, 1, 0
        %v1705 = vsel %vm1673, 1, 0
        %v1706 = vsel %vm1674, 1, 0
        %v1707 = vsel %vm1675, 1, 0
        %v1708 = vsel %vm1676, 1, 0
        %v1709 = vsel %vm1677, 1, 0
        %v1710 = vsel %vm1678, 1, 0
        %v1711 = vsel %vm1679, 1, 0
        %v1712 = vsel %vm1680, 1, 0
        %v1713 = vsel %vm1681, 1, 0
        %v1714 = vsel %vm1682, 1, 0
        %v1715 = vsel %vm1683, 1, 0
        %v1716 = vsel %vm1684, 1, 0
        %v1717 = vsel %vm1685, 1, 0
        %v1718 = vsel %vm1686, 1, 0
        %v1719 = vsel %vm1687, 1, 0
        %v1720 = vsel %vm1688, 1, 0
        %v1721 = vsel %vm1689, 1, 0
        %v1722 = vcvt.s32.f32 %v1690
        %v1723 = vcvt.s32.f32 %v1691
        %v1724 = vcvt.s32.f32 %v1692
        %v1725 = vcvt.s32.f32 %v1693
        %v1726 = vcvt.s32.f32 %v1694
        %v1727 = vcvt.s32.f32 %v1695
        %v1728 = vcvt.s32.f32 %v1696
        %v1729 = vcvt.s32.f32 %v1697
        %v1730 = vcvt.s32.f32 %v1698
        %v1731 = vcvt.s32.f32 %v1699
        %v1732 = vcvt.s32.f32 %v1700
        %v1733 = vcvt.s32.f32 %v1701
        %v1734 = vcvt.s32.f32 %v1702
        %v1735 = vcvt.s32.f32 %v1703
        %v1736 = vcvt.s32.f32 %v1704
        %v1737 = vcvt.s32.f32 %v1705
        %v1738 = vcvt.s32.f32 %v1706
        %v1739 = vcvt.s32.f32 %v1707
        %v1740 = vcvt.s32.f32 %v1708
        %v1741 = vcvt.s32.f32 %v1709
        %v1742 = vcvt.s32.f32 %v1710
        %v1743 = vcvt.s32.f32 %v1711
        %v1744 = vcvt.s32.f32 %v1712
        %v1745 = vcvt.s32.f32 %v1713
        %v1746 = vcvt.s32.f32 %v1714
        %v1747 = vcvt.s32.f32 %v1715
        %v1748 = vcvt.s32.f32 %v1716
        %v1749 = vcvt.s32.f32 %v1717
        %v1750 = vcvt.s32.f32 %v1718
        %v1751 = vcvt.s32.f32 %v1719
        %v1752 = vcvt.s32.f32 %v1720
        %v1753 = vcvt.s32.f32 %v1721
        %v1754 = vadd.f32 %v1722, 0.0
        %v1755 = vadd.f32 %v1723, 0.0
        %v1756 = vadd.f32 %v1724, 0.0
        %v1757 = vadd.f32 %v1725, 0.0
        %v1758 = vadd.f32 %v1726, 0.0
        %v1759 = vadd.f32 %v1727, 0.0
        %v1760 = vadd.f32 %v1728, 0.0
        %v1761 = vadd.f32 %v1729, 0.0
        %v1762 = vadd.f32 %v1730, 0.0
        %v1763 = vadd.f32 %v1731, 0.0
        %v1764 = vadd.f32 %v1732, 0.0
        %v1765 = vadd.f32 %v1733, 0.0
        %v1766 = vadd.f32 %v1734, 0.0
        %v1767 = vadd.f32 %v1735, 0.0
        %v1768 = vadd.f32 %v1736, 0.0
        %v1769 = vadd.f32 %v1737, 0.0
        %v1770 = vadd.f32 %v1738, 0.0
        %v1771 = vadd.f32 %v1739, 0.0
        %v1772 = vadd.f32 %v1740, 0.0
        %v1773 = vadd.f32 %v1741, 0.0
        %v1774 = vadd.f32 %v1742, 0.0
        %v1775 = vadd.f32 %v1743, 0.0
        %v1776 = vadd.f32 %v1744, 0.0
        %v1777 = vadd.f32 %v1745, 0.0
        %v1778 = vadd.f32 %v1746, 0.0
        %v1779 = vadd.f32 %v1747, 0.0
        %v1780 = vadd.f32 %v1748, 0.0
        %v1781 = vadd.f32 %v1749, 0.0
        %v1782 = vadd.f32 %v1750, 0.0
        %v1783 = vadd.f32 %v1751, 0.0
        %v1784 = vadd.f32 %v1752, 0.0
        %v1785 = vadd.f32 %v1753, 0.0
        %1786 = vset.pattern.permute.xlu0 5
        %1787 = vperm.xlu0 %1786, %v600
        %v1788 = vpop.permute.xlu0 %1787
        %1789 = vset.pattern.permute.xlu0 5
        %1790 = vperm.xlu0 %1789, %v601
        %v1791 = vpop.permute.xlu0 %1790
        %1792 = vset.pattern.permute.xlu0 5
        %1793 = vperm.xlu0 %1792, %v602
        %v1794 = vpop.permute.xlu0 %1793
        %1795 = vset.pattern.permute.xlu0 5
        %1796 = vperm.xlu0 %1795, %v603
        %v1797 = vpop.permute.xlu0 %1796
        %1798 = vset.pattern.permute.xlu0 5
        %1799 = vperm.xlu0 %1798, %v604
        %v1800 = vpop.permute.xlu0 %1799
        %1801 = vset.pattern.permute.xlu0 5
        %1802 = vperm.xlu0 %1801, %v605
        %v1803 = vpop.permute.xlu0 %1802
        %1804 = vset.pattern.permute.xlu0 5
        %1805 = vperm.xlu0 %1804, %v606
        %v1806 = vpop.permute.xlu0 %1805
        %1807 = vset.pattern.permute.xlu0 5
        %1808 = vperm.xlu0 %1807, %v607
        %v1809 = vpop.permute.xlu0 %1808
        %1810 = vset.pattern.permute.xlu0 5
        %1811 = vperm.xlu0 %1810, %v608
        %v1812 = vpop.permute.xlu0 %1811
        %1813 = vset.pattern.permute.xlu0 5
        %1814 = vperm.xlu0 %1813, %v609
        %v1815 = vpop.permute.xlu0 %1814
        %1816 = vset.pattern.permute.xlu0 5
        %1817 = vperm.xlu0 %1816, %v610
        %v1818 = vpop.permute.xlu0 %1817
        %1819 = vset.pattern.permute.xlu0 5
        %1820 = vperm.xlu0 %1819, %v611
        %v1821 = vpop.permute.xlu0 %1820
        %1822 = vset.pattern.permute.xlu0 5
        %1823 = vperm.xlu0 %1822, %v612
        %v1824 = vpop.permute.xlu0 %1823
        %1825 = vset.pattern.permute.xlu0 5
        %1826 = vperm.xlu0 %1825, %v613
        %v1827 = vpop.permute.xlu0 %1826
        %1828 = vset.pattern.permute.xlu0 5
        %1829 = vperm.xlu0 %1828, %v614
        %v1830 = vpop.permute.xlu0 %1829
        %1831 = vset.pattern.permute.xlu0 5
        %1832 = vperm.xlu0 %1831, %v615
        %v1833 = vpop.permute.xlu0 %1832
        %1834 = vset.pattern.permute.xlu0 5
        %1835 = vperm.xlu0 %1834, %v616
        %v1836 = vpop.permute.xlu0 %1835
        %1837 = vset.pattern.permute.xlu0 5
        %1838 = vperm.xlu0 %1837, %v617
        %v1839 = vpop.permute.xlu0 %1838
        %1840 = vset.pattern.permute.xlu0 5
        %1841 = vperm.xlu0 %1840, %v618
        %v1842 = vpop.permute.xlu0 %1841
        %1843 = vset.pattern.permute.xlu0 5
        %1844 = vperm.xlu0 %1843, %v619
        %v1845 = vpop.permute.xlu0 %1844
        %1846 = vset.pattern.permute.xlu0 5
        %1847 = vperm.xlu0 %1846, %v620
        %v1848 = vpop.permute.xlu0 %1847
        %1849 = vset.pattern.permute.xlu0 5
        %1850 = vperm.xlu0 %1849, %v621
        %v1851 = vpop.permute.xlu0 %1850
        %1852 = vset.pattern.permute.xlu0 5
        %1853 = vperm.xlu0 %1852, %v622
        %v1854 = vpop.permute.xlu0 %1853
        %1855 = vset.pattern.permute.xlu0 5
        %1856 = vperm.xlu0 %1855, %v623
        %v1857 = vpop.permute.xlu0 %1856
        %1858 = vset.pattern.permute.xlu0 5
        %1859 = vperm.xlu0 %1858, %v624
        %v1860 = vpop.permute.xlu0 %1859
        %1861 = vset.pattern.permute.xlu0 5
        %1862 = vperm.xlu0 %1861, %v625
        %v1863 = vpop.permute.xlu0 %1862
        %1864 = vset.pattern.permute.xlu0 5
        %1865 = vperm.xlu0 %1864, %v626
        %v1866 = vpop.permute.xlu0 %1865
        %1867 = vset.pattern.permute.xlu0 5
        %1868 = vperm.xlu0 %1867, %v627
        %v1869 = vpop.permute.xlu0 %1868
        %1870 = vset.pattern.permute.xlu0 5
        %1871 = vperm.xlu0 %1870, %v628
        %v1872 = vpop.permute.xlu0 %1871
        %1873 = vset.pattern.permute.xlu0 5
        %1874 = vperm.xlu0 %1873, %v629
        %v1875 = vpop.permute.xlu0 %1874
        %1876 = vset.pattern.permute.xlu0 5
        %1877 = vperm.xlu0 %1876, %v630
        %v1878 = vpop.permute.xlu0 %1877
        %1879 = vset.pattern.permute.xlu0 5
        %1880 = vperm.xlu0 %1879, %v631
        %v1881 = vpop.permute.xlu0 %1880
        %vm1882 = vcmp.eq.s32.totalorder %v633, %v1788
        %vm1883 = vcmp.eq.s32.totalorder %v633, %v1791
        %vm1884 = vcmp.eq.s32.totalorder %v633, %v1794
        %vm1885 = vcmp.eq.s32.totalorder %v633, %v1797
        %vm1886 = vcmp.eq.s32.totalorder %v633, %v1800
        %vm1887 = vcmp.eq.s32.totalorder %v633, %v1803
        %vm1888 = vcmp.eq.s32.totalorder %v633, %v1806
        %vm1889 = vcmp.eq.s32.totalorder %v633, %v1809
        %vm1890 = vcmp.eq.s32.totalorder %v633, %v1812
        %vm1891 = vcmp.eq.s32.totalorder %v633, %v1815
        %vm1892 = vcmp.eq.s32.totalorder %v633, %v1818
        %vm1893 = vcmp.eq.s32.totalorder %v633, %v1821
        %vm1894 = vcmp.eq.s32.totalorder %v633, %v1824
        %vm1895 = vcmp.eq.s32.totalorder %v633, %v1827
        %vm1896 = vcmp.eq.s32.totalorder %v633, %v1830
        %vm1897 = vcmp.eq.s32.totalorder %v633, %v1833
        %vm1898 = vcmp.eq.s32.totalorder %v633, %v1836
        %vm1899 = vcmp.eq.s32.totalorder %v633, %v1839
        %vm1900 = vcmp.eq.s32.totalorder %v633, %v1842
        %vm1901 = vcmp.eq.s32.totalorder %v633, %v1845
        %vm1902 = vcmp.eq.s32.totalorder %v633, %v1848
        %vm1903 = vcmp.eq.s32.totalorder %v633, %v1851
        %vm1904 = vcmp.eq.s32.totalorder %v633, %v1854
        %vm1905 = vcmp.eq.s32.totalorder %v633, %v1857
        %vm1906 = vcmp.eq.s32.totalorder %v633, %v1860
        %vm1907 = vcmp.eq.s32.totalorder %v633, %v1863
        %vm1908 = vcmp.eq.s32.totalorder %v633, %v1866
        %vm1909 = vcmp.eq.s32.totalorder %v633, %v1869
        %vm1910 = vcmp.eq.s32.totalorder %v633, %v1872
        %vm1911 = vcmp.eq.s32.totalorder %v633, %v1875
        %vm1912 = vcmp.eq.s32.totalorder %v633, %v1878
        %vm1913 = vcmp.eq.s32.totalorder %v633, %v1881
        %v1914 = vsel %vm1882, 1, 0
        %v1915 = vsel %vm1883, 1, 0
        %v1916 = vsel %vm1884, 1, 0
        %v1917 = vsel %vm1885, 1, 0
        %v1918 = vsel %vm1886, 1, 0
        %v1919 = vsel %vm1887, 1, 0
        %v1920 = vsel %vm1888, 1, 0
        %v1921 = vsel %vm1889, 1, 0
        %v1922 = vsel %vm1890, 1, 0
        %v1923 = vsel %vm1891, 1, 0
        %v1924 = vsel %vm1892, 1, 0
        %v1925 = vsel %vm1893, 1, 0
        %v1926 = vsel %vm1894, 1, 0
        %v1927 = vsel %vm1895, 1, 0
        %v1928 = vsel %vm1896, 1, 0
        %v1929 = vsel %vm1897, 1, 0
        %v1930 = vsel %vm1898, 1, 0
        %v1931 = vsel %vm1899, 1, 0
        %v1932 = vsel %vm1900, 1, 0
        %v1933 = vsel %vm1901, 1, 0
        %v1934 = vsel %vm1902, 1, 0
        %v1935 = vsel %vm1903, 1, 0
        %v1936 = vsel %vm1904, 1, 0
        %v1937 = vsel %vm1905, 1, 0
        %v1938 = vsel %vm1906, 1, 0
        %v1939 = vsel %vm1907, 1, 0
        %v1940 = vsel %vm1908, 1, 0
        %v1941 = vsel %vm1909, 1, 0
        %v1942 = vsel %vm1910, 1, 0
        %v1943 = vsel %vm1911, 1, 0
        %v1944 = vsel %vm1912, 1, 0
        %v1945 = vsel %vm1913, 1, 0
        %v1946 = vcvt.s32.f32 %v1914
        %v1947 = vcvt.s32.f32 %v1915
        %v1948 = vcvt.s32.f32 %v1916
        %v1949 = vcvt.s32.f32 %v1917
        %v1950 = vcvt.s32.f32 %v1918
        %v1951 = vcvt.s32.f32 %v1919
        %v1952 = vcvt.s32.f32 %v1920
        %v1953 = vcvt.s32.f32 %v1921
        %v1954 = vcvt.s32.f32 %v1922
        %v1955 = vcvt.s32.f32 %v1923
        %v1956 = vcvt.s32.f32 %v1924
        %v1957 = vcvt.s32.f32 %v1925
        %v1958 = vcvt.s32.f32 %v1926
        %v1959 = vcvt.s32.f32 %v1927
        %v1960 = vcvt.s32.f32 %v1928
        %v1961 = vcvt.s32.f32 %v1929
        %v1962 = vcvt.s32.f32 %v1930
        %v1963 = vcvt.s32.f32 %v1931
        %v1964 = vcvt.s32.f32 %v1932
        %v1965 = vcvt.s32.f32 %v1933
        %v1966 = vcvt.s32.f32 %v1934
        %v1967 = vcvt.s32.f32 %v1935
        %v1968 = vcvt.s32.f32 %v1936
        %v1969 = vcvt.s32.f32 %v1937
        %v1970 = vcvt.s32.f32 %v1938
        %v1971 = vcvt.s32.f32 %v1939
        %v1972 = vcvt.s32.f32 %v1940
        %v1973 = vcvt.s32.f32 %v1941
        %v1974 = vcvt.s32.f32 %v1942
        %v1975 = vcvt.s32.f32 %v1943
        %v1976 = vcvt.s32.f32 %v1944
        %v1977 = vcvt.s32.f32 %v1945
        %v1978 = vadd.f32 %v1754, %v1946
        %v1979 = vadd.f32 %v1755, %v1947
        %v1980 = vadd.f32 %v1756, %v1948
        %v1981 = vadd.f32 %v1757, %v1949
        %v1982 = vadd.f32 %v1758, %v1950
        %v1983 = vadd.f32 %v1759, %v1951
        %v1984 = vadd.f32 %v1760, %v1952
        %v1985 = vadd.f32 %v1761, %v1953
        %v1986 = vadd.f32 %v1762, %v1954
        %v1987 = vadd.f32 %v1763, %v1955
        %v1988 = vadd.f32 %v1764, %v1956
        %v1989 = vadd.f32 %v1765, %v1957
        %v1990 = vadd.f32 %v1766, %v1958
        %v1991 = vadd.f32 %v1767, %v1959
        %v1992 = vadd.f32 %v1768, %v1960
        %v1993 = vadd.f32 %v1769, %v1961
        %v1994 = vadd.f32 %v1770, %v1962
        %v1995 = vadd.f32 %v1771, %v1963
        %v1996 = vadd.f32 %v1772, %v1964
        %v1997 = vadd.f32 %v1773, %v1965
        %v1998 = vadd.f32 %v1774, %v1966
        %v1999 = vadd.f32 %v1775, %v1967
        %v2000 = vadd.f32 %v1776, %v1968
        %v2001 = vadd.f32 %v1777, %v1969
        %v2002 = vadd.f32 %v1778, %v1970
        %v2003 = vadd.f32 %v1779, %v1971
        %v2004 = vadd.f32 %v1780, %v1972
        %v2005 = vadd.f32 %v1781, %v1973
        %v2006 = vadd.f32 %v1782, %v1974
        %v2007 = vadd.f32 %v1783, %v1975
        %v2008 = vadd.f32 %v1784, %v1976
        %v2009 = vadd.f32 %v1785, %v1977
        %v2010 = vpack.c.bf16 %v1979, %v1978
        %v2011 = vpack.c.bf16 %v1981, %v1980
        %v2012 = vpack.c.bf16 %v1983, %v1982
        %v2013 = vpack.c.bf16 %v1985, %v1984
        %v2014 = vpack.c.bf16 %v1987, %v1986
        %v2015 = vpack.c.bf16 %v1989, %v1988
        %v2016 = vpack.c.bf16 %v1991, %v1990
        %v2017 = vpack.c.bf16 %v1993, %v1992
        %v2018 = vpack.c.bf16 %v1995, %v1994
        %v2019 = vpack.c.bf16 %v1997, %v1996
        %v2020 = vpack.c.bf16 %v1999, %v1998
        %v2021 = vpack.c.bf16 %v2001, %v2000
        %v2022 = vpack.c.bf16 %v2003, %v2002
        %v2023 = vpack.c.bf16 %v2005, %v2004
        %v2024 = vpack.c.bf16 %v2007, %v2006
        %v2025 = vpack.c.bf16 %v2009, %v2008
        %v2026 = vld [vmem:[%s3] sm:$0xff]
        %v2027 = vld [vmem:[%s3 + $0x8] sm:$0xf]
        %v2028 = vld [vmem:[%s3 + $0xc] sm:$0xff]
        %v2029 = vld [vmem:[%s3 + $0x14] sm:$0xf]
        %v2030 = vld [vmem:[%s3 + $0x18] sm:$0xff]
        %v2031 = vld [vmem:[%s3 + $0x20] sm:$0xf]
        %v2032 = vld [vmem:[%s3 + $0x24] sm:$0xff]
        %v2033 = vld [vmem:[%s3 + $0x2c] sm:$0xf]
        %v2034 = vld [vmem:[%s3 + $0x30] sm:$0xff]
        %v2035 = vld [vmem:[%s3 + $0x38] sm:$0xf]
        %v2036 = vld [vmem:[%s3 + $0x3c] sm:$0xff]
        %v2037 = vld [vmem:[%s3 + $0x44] sm:$0xf]
        %v2038 = vld [vmem:[%s3 + $0x48] sm:$0xff]
        %v2039 = vld [vmem:[%s3 + $0x50] sm:$0xf]
        %v2040 = vld [vmem:[%s3 + $0x54] sm:$0xff]
        %v2041 = vld [vmem:[%s3 + $0x5c] sm:$0xf]
        %v2042 = vld [vmem:[%s3 + $0x60] sm:$0xff]
        %v2043 = vld [vmem:[%s3 + $0x68] sm:$0xf]
        %v2044 = vld [vmem:[%s3 + $0x6c] sm:$0xff]
        %v2045 = vld [vmem:[%s3 + $0x74] sm:$0xf]
        %v2046 = vld [vmem:[%s3 + $0x78] sm:$0xff]
        %v2047 = vld [vmem:[%s3 + $0x80] sm:$0xf]
        %v2048 = vld [vmem:[%s3 + $0x84] sm:$0xff]
        %v2049 = vld [vmem:[%s3 + $0x8c] sm:$0xf]
        %v2050 = vld [vmem:[%s3 + $0x90] sm:$0xff]
        %v2051 = vld [vmem:[%s3 + $0x98] sm:$0xf]
        %v2052 = vld [vmem:[%s3 + $0x9c] sm:$0xff]
        %v2053 = vld [vmem:[%s3 + $0xa4] sm:$0xf]
        %v2054 = vld [vmem:[%s3 + $0xa8] sm:$0xff]
        %v2055 = vld [vmem:[%s3 + $0xb0] sm:$0xf]
        %v2056 = vld [vmem:[%s3 + $0xb4] sm:$0xff]
        %v2057 = vld [vmem:[%s3 + $0xbc] sm:$0xf]
        %v2058 = vld [vmem:[%s3 + $0xc0] sm:$0xff]
        %v2059 = vld [vmem:[%s3 + $0xc8] sm:$0xf]
        %v2060 = vld [vmem:[%s3 + $0xcc] sm:$0xff]
        %v2061 = vld [vmem:[%s3 + $0xd4] sm:$0xf]
        %v2062 = vld [vmem:[%s3 + $0xd8] sm:$0xff]
        %v2063 = vld [vmem:[%s3 + $0xe0] sm:$0xf]
        %v2064 = vld [vmem:[%s3 + $0xe4] sm:$0xff]
        %v2065 = vld [vmem:[%s3 + $0xec] sm:$0xf]
        %v2066 = vld [vmem:[%s3 + $0xf0] sm:$0xff]
        %v2067 = vld [vmem:[%s3 + $0xf8] sm:$0xf]
        %v2068 = vld [vmem:[%s3 + $0xfc] sm:$0xff]
        %v2069 = vld [vmem:[%s3 + $0x104] sm:$0xf]
        %v2070 = vld [vmem:[%s3 + $0x108] sm:$0xff]
        %v2071 = vld [vmem:[%s3 + $0x110] sm:$0xf]
        %v2072 = vld [vmem:[%s3 + $0x114] sm:$0xff]
        %v2073 = vld [vmem:[%s3 + $0x11c] sm:$0xf]
        %v2074 = vld [vmem:[%s3 + $0x120] sm:$0xff]
        %v2075 = vld [vmem:[%s3 + $0x128] sm:$0xf]
        %v2076 = vld [vmem:[%s3 + $0x12c] sm:$0xff]
        %v2077 = vld [vmem:[%s3 + $0x134] sm:$0xf]
        %v2078 = vld [vmem:[%s3 + $0x138] sm:$0xff]
        %v2079 = vld [vmem:[%s3 + $0x140] sm:$0xf]
        %v2080 = vld [vmem:[%s3 + $0x144] sm:$0xff]
        %v2081 = vld [vmem:[%s3 + $0x14c] sm:$0xf]
        %v2082 = vld [vmem:[%s3 + $0x150] sm:$0xff]
        %v2083 = vld [vmem:[%s3 + $0x158] sm:$0xf]
        %v2084 = vld [vmem:[%s3 + $0x15c] sm:$0xff]
        %v2085 = vld [vmem:[%s3 + $0x164] sm:$0xf]
        %v2086 = vld [vmem:[%s3 + $0x168] sm:$0xff]
        %v2087 = vld [vmem:[%s3 + $0x170] sm:$0xf]
        %v2088 = vld [vmem:[%s3 + $0x174] sm:$0xff]
        %v2089 = vld [vmem:[%s3 + $0x17c] sm:$0xf]
        %v2090 = vld [vmem:[%s3 + $0x180] sm:$0xff]
        %v2091 = vld [vmem:[%s3 + $0x188] sm:$0xf]
        %v2092 = vld [vmem:[%s3 + $0x18c] sm:$0xff]
        %v2093 = vld [vmem:[%s3 + $0x194] sm:$0xf]
        %v2094 = vld [vmem:[%s3 + $0x198] sm:$0xff]
        %v2095 = vld [vmem:[%s3 + $0x1a0] sm:$0xf]
        %v2096 = vld [vmem:[%s3 + $0x1a4] sm:$0xff]
        %v2097 = vld [vmem:[%s3 + $0x1ac] sm:$0xf]
        %v2098 = vld [vmem:[%s3 + $0x1b0] sm:$0xff]
        %v2099 = vld [vmem:[%s3 + $0x1b8] sm:$0xf]
        %v2100 = vld [vmem:[%s3 + $0x1bc] sm:$0xff]
        %v2101 = vld [vmem:[%s3 + $0x1c4] sm:$0xf]
        %v2102 = vld [vmem:[%s3 + $0x1c8] sm:$0xff]
        %v2103 = vld [vmem:[%s3 + $0x1d0] sm:$0xf]
        %v2104 = vld [vmem:[%s3 + $0x1d4] sm:$0xff]
        %v2105 = vld [vmem:[%s3 + $0x1dc] sm:$0xf]
        %v2106 = vld [vmem:[%s3 + $0x1e0] sm:$0xff]
        %v2107 = vld [vmem:[%s3 + $0x1e8] sm:$0xf]
        %v2108 = vld [vmem:[%s3 + $0x1ec] sm:$0xff]
        %v2109 = vld [vmem:[%s3 + $0x1f4] sm:$0xf]
        %v2110 = vld [vmem:[%s3 + $0x1f8] sm:$0xff]
        %v2111 = vld [vmem:[%s3 + $0x200] sm:$0xf]
        %v2112 = vld [vmem:[%s3 + $0x204] sm:$0xff]
        %v2113 = vld [vmem:[%s3 + $0x20c] sm:$0xf]
        %v2114 = vld [vmem:[%s3 + $0x210] sm:$0xff]
        %v2115 = vld [vmem:[%s3 + $0x218] sm:$0xf]
        %v2116 = vld [vmem:[%s3 + $0x21c] sm:$0xff]
        %v2117 = vld [vmem:[%s3 + $0x224] sm:$0xf]
        %v2118 = vld [vmem:[%s3 + $0x228] sm:$0xff]
        %v2119 = vld [vmem:[%s3 + $0x230] sm:$0xf]
        %v2120 = vld [vmem:[%s3 + $0x234] sm:$0xff]
        %v2121 = vld [vmem:[%s3 + $0x23c] sm:$0xf]
        %v2122 = vld [vmem:[%s3 + $0x240] sm:$0xff]
        %v2123 = vld [vmem:[%s3 + $0x248] sm:$0xf]
        %v2124 = vld [vmem:[%s3 + $0x24c] sm:$0xff]
        %v2125 = vld [vmem:[%s3 + $0x254] sm:$0xf]
        %v2126 = vld [vmem:[%s3 + $0x258] sm:$0xff]
        %v2127 = vld [vmem:[%s3 + $0x260] sm:$0xf]
        %v2128 = vld [vmem:[%s3 + $0x264] sm:$0xff]
        %v2129 = vld [vmem:[%s3 + $0x26c] sm:$0xf]
        %v2130 = vld [vmem:[%s3 + $0x270] sm:$0xff]
        %v2131 = vld [vmem:[%s3 + $0x278] sm:$0xf]
        %v2132 = vld [vmem:[%s3 + $0x27c] sm:$0xff]
        %v2133 = vld [vmem:[%s3 + $0x284] sm:$0xf]
        %v2134 = vld [vmem:[%s3 + $0x288] sm:$0xff]
        %v2135 = vld [vmem:[%s3 + $0x290] sm:$0xf]
        %v2136 = vld [vmem:[%s3 + $0x294] sm:$0xff]
        %v2137 = vld [vmem:[%s3 + $0x29c] sm:$0xf]
        %v2138 = vld [vmem:[%s3 + $0x2a0] sm:$0xff]
        %v2139 = vld [vmem:[%s3 + $0x2a8] sm:$0xf]
        %v2140 = vld [vmem:[%s3 + $0x2ac] sm:$0xff]
        %v2141 = vld [vmem:[%s3 + $0x2b4] sm:$0xf]
        %v2142 = vld [vmem:[%s3 + $0x2b8] sm:$0xff]
        %v2143 = vld [vmem:[%s3 + $0x2c0] sm:$0xf]
        %v2144 = vld [vmem:[%s3 + $0x2c4] sm:$0xff]
        %v2145 = vld [vmem:[%s3 + $0x2cc] sm:$0xf]
        %v2146 = vld [vmem:[%s3 + $0x2d0] sm:$0xff]
        %v2147 = vld [vmem:[%s3 + $0x2d8] sm:$0xf]
        %v2148 = vld [vmem:[%s3 + $0x2dc] sm:$0xff]
        %v2149 = vld [vmem:[%s3 + $0x2e4] sm:$0xf]
        %v2150 = vld [vmem:[%s3 + $0x2e8] sm:$0xff]
        %v2151 = vld [vmem:[%s3 + $0x2f0] sm:$0xf]
        %v2152 = vld [vmem:[%s3 + $0x2f4] sm:$0xff]
        %v2153 = vld [vmem:[%s3 + $0x2fc] sm:$0xf]
        %v2155 = vlaneseq
        %v2156 = vshrl.u32 %v2155, 7
        %v2157 = vsub.s32 0, %v2156
        %v2158 = vrot.slane %v277, %v2157
        %v2159 = vlaneseq
        %v2160 = vshrl.u32 %v2159, 7
        %v2161 = vsub.s32 1, %v2160
        %v2162 = vrot.slane %v277, %v2161
        %v2163 = vlaneseq
        %v2164 = vshrl.u32 %v2163, 7
        %v2165 = vsub.s32 2, %v2164
        %v2166 = vrot.slane %v277, %v2165
        %v2298 = vunpack.c.l.b16 %v2026
        %v2299 = vunpack.c.h.b16 %v2026
        %v2300 = vunpack.c.l.b16 %v2027
        %v2301 = vunpack.c.l.b16 %v2028
        %v2302 = vunpack.c.h.b16 %v2028
        %v2303 = vunpack.c.l.b16 %v2029
        %v2304 = vunpack.c.l.b16 %v2030
        %v2305 = vunpack.c.h.b16 %v2030
        %v2306 = vunpack.c.l.b16 %v2031
        %v2307 = vunpack.c.l.b16 %v2032
        %v2308 = vunpack.c.h.b16 %v2032
        %v2309 = vunpack.c.l.b16 %v2033
        %v2310 = vunpack.c.l.b16 %v2034
        %v2311 = vunpack.c.h.b16 %v2034
        %v2312 = vunpack.c.l.b16 %v2035
        %v2313 = vunpack.c.l.b16 %v2036
        %v2314 = vunpack.c.h.b16 %v2036
        %v2315 = vunpack.c.l.b16 %v2037
        %v2316 = vunpack.c.l.b16 %v2038
        %v2317 = vunpack.c.h.b16 %v2038
        %v2318 = vunpack.c.l.b16 %v2039
        %v2319 = vunpack.c.l.b16 %v2040
        %v2320 = vunpack.c.h.b16 %v2040
        %v2321 = vunpack.c.l.b16 %v2041
        %v2322 = vunpack.c.l.b16 %v2042
        %v2323 = vunpack.c.h.b16 %v2042
        %v2324 = vunpack.c.l.b16 %v2043
        %v2325 = vunpack.c.l.b16 %v2044
        %v2326 = vunpack.c.h.b16 %v2044
        %v2327 = vunpack.c.l.b16 %v2045
        %v2328 = vunpack.c.l.b16 %v2046
        %v2329 = vunpack.c.h.b16 %v2046
        %v2330 = vunpack.c.l.b16 %v2047
        %v2331 = vunpack.c.l.b16 %v2048
        %v2332 = vunpack.c.h.b16 %v2048
        %v2333 = vunpack.c.l.b16 %v2049
        %v2334 = vunpack.c.l.b16 %v2050
        %v2335 = vunpack.c.h.b16 %v2050
        %v2336 = vunpack.c.l.b16 %v2051
        %v2337 = vunpack.c.l.b16 %v2052
        %v2338 = vunpack.c.h.b16 %v2052
        %v2339 = vunpack.c.l.b16 %v2053
        %v2340 = vunpack.c.l.b16 %v2054
        %v2341 = vunpack.c.h.b16 %v2054
        %v2342 = vunpack.c.l.b16 %v2055
        %v2343 = vunpack.c.l.b16 %v2056
        %v2344 = vunpack.c.h.b16 %v2056
        %v2345 = vunpack.c.l.b16 %v2057
        %v2346 = vunpack.c.l.b16 %v2058
        %v2347 = vunpack.c.h.b16 %v2058
        %v2348 = vunpack.c.l.b16 %v2059
        %v2349 = vunpack.c.l.b16 %v2060
        %v2350 = vunpack.c.h.b16 %v2060
        %v2351 = vunpack.c.l.b16 %v2061
        %v2352 = vunpack.c.l.b16 %v2062
        %v2353 = vunpack.c.h.b16 %v2062
        %v2354 = vunpack.c.l.b16 %v2063
        %v2355 = vunpack.c.l.b16 %v2064
        %v2356 = vunpack.c.h.b16 %v2064
        %v2357 = vunpack.c.l.b16 %v2065
        %v2358 = vunpack.c.l.b16 %v2066
        %v2359 = vunpack.c.h.b16 %v2066
        %v2360 = vunpack.c.l.b16 %v2067
        %v2361 = vunpack.c.l.b16 %v2068
        %v2362 = vunpack.c.h.b16 %v2068
        %v2363 = vunpack.c.l.b16 %v2069
        %v2364 = vunpack.c.l.b16 %v2070
        %v2365 = vunpack.c.h.b16 %v2070
        %v2366 = vunpack.c.l.b16 %v2071
        %v2367 = vunpack.c.l.b16 %v2072
        %v2368 = vunpack.c.h.b16 %v2072
        %v2369 = vunpack.c.l.b16 %v2073
        %v2370 = vunpack.c.l.b16 %v2074
        %v2371 = vunpack.c.h.b16 %v2074
        %v2372 = vunpack.c.l.b16 %v2075
        %v2373 = vunpack.c.l.b16 %v2076
        %v2374 = vunpack.c.h.b16 %v2076
        %v2375 = vunpack.c.l.b16 %v2077
        %v2376 = vunpack.c.l.b16 %v2078
        %v2377 = vunpack.c.h.b16 %v2078
        %v2378 = vunpack.c.l.b16 %v2079
        %v2379 = vunpack.c.l.b16 %v2080
        %v2380 = vunpack.c.h.b16 %v2080
        %v2381 = vunpack.c.l.b16 %v2081
        %v2382 = vunpack.c.l.b16 %v2082
        %v2383 = vunpack.c.h.b16 %v2082
        %v2384 = vunpack.c.l.b16 %v2083
        %v2385 = vunpack.c.l.b16 %v2084
        %v2386 = vunpack.c.h.b16 %v2084
        %v2387 = vunpack.c.l.b16 %v2085
        %v2388 = vunpack.c.l.b16 %v2086
        %v2389 = vunpack.c.h.b16 %v2086
        %v2390 = vunpack.c.l.b16 %v2087
        %v2391 = vunpack.c.l.b16 %v2088
        %v2392 = vunpack.c.h.b16 %v2088
        %v2393 = vunpack.c.l.b16 %v2089
        %v2394 = vunpack.c.l.b16 %v2090
        %v2395 = vunpack.c.h.b16 %v2090
        %v2396 = vunpack.c.l.b16 %v2091
        %v2397 = vunpack.c.l.b16 %v2092
        %v2398 = vunpack.c.h.b16 %v2092
        %v2399 = vunpack.c.l.b16 %v2093
        %v2400 = vunpack.c.l.b16 %v2094
        %v2401 = vunpack.c.h.b16 %v2094
        %v2402 = vunpack.c.l.b16 %v2095
        %v2403 = vunpack.c.l.b16 %v2096
        %v2404 = vunpack.c.h.b16 %v2096
        %v2405 = vunpack.c.l.b16 %v2097
        %v2406 = vunpack.c.l.b16 %v2098
        %v2407 = vunpack.c.h.b16 %v2098
        %v2408 = vunpack.c.l.b16 %v2099
        %v2409 = vunpack.c.l.b16 %v2100
        %v2410 = vunpack.c.h.b16 %v2100
        %v2411 = vunpack.c.l.b16 %v2101
        %v2412 = vunpack.c.l.b16 %v2102
        %v2413 = vunpack.c.h.b16 %v2102
        %v2414 = vunpack.c.l.b16 %v2103
        %v2415 = vunpack.c.l.b16 %v2104
        %v2416 = vunpack.c.h.b16 %v2104
        %v2417 = vunpack.c.l.b16 %v2105
        %v2418 = vunpack.c.l.b16 %v2106
        %v2419 = vunpack.c.h.b16 %v2106
        %v2420 = vunpack.c.l.b16 %v2107
        %v2421 = vunpack.c.l.b16 %v2108
        %v2422 = vunpack.c.h.b16 %v2108
        %v2423 = vunpack.c.l.b16 %v2109
        %v2424 = vunpack.c.l.b16 %v2110
        %v2425 = vunpack.c.h.b16 %v2110
        %v2426 = vunpack.c.l.b16 %v2111
        %v2427 = vunpack.c.l.b16 %v2112
        %v2428 = vunpack.c.h.b16 %v2112
        %v2429 = vunpack.c.l.b16 %v2113
        %v2430 = vunpack.c.l.b16 %v2114
        %v2431 = vunpack.c.h.b16 %v2114
        %v2432 = vunpack.c.l.b16 %v2115
        %v2433 = vunpack.c.l.b16 %v2116
        %v2434 = vunpack.c.h.b16 %v2116
        %v2435 = vunpack.c.l.b16 %v2117
        %v2436 = vunpack.c.l.b16 %v2118
        %v2437 = vunpack.c.h.b16 %v2118
        %v2438 = vunpack.c.l.b16 %v2119
        %v2439 = vunpack.c.l.b16 %v2120
        %v2440 = vunpack.c.h.b16 %v2120
        %v2441 = vunpack.c.l.b16 %v2121
        %v2442 = vunpack.c.l.b16 %v2122
        %v2443 = vunpack.c.h.b16 %v2122
        %v2444 = vunpack.c.l.b16 %v2123
        %v2445 = vunpack.c.l.b16 %v2124
        %v2446 = vunpack.c.h.b16 %v2124
        %v2447 = vunpack.c.l.b16 %v2125
        %v2448 = vunpack.c.l.b16 %v2126
        %v2449 = vunpack.c.h.b16 %v2126
        %v2450 = vunpack.c.l.b16 %v2127
        %v2451 = vunpack.c.l.b16 %v2128
        %v2452 = vunpack.c.h.b16 %v2128
        %v2453 = vunpack.c.l.b16 %v2129
        %v2454 = vunpack.c.l.b16 %v2130
        %v2455 = vunpack.c.h.b16 %v2130
        %v2456 = vunpack.c.l.b16 %v2131
        %v2457 = vunpack.c.l.b16 %v2132
        %v2458 = vunpack.c.h.b16 %v2132
        %v2459 = vunpack.c.l.b16 %v2133
        %v2460 = vunpack.c.l.b16 %v2134
        %v2461 = vunpack.c.h.b16 %v2134
        %v2462 = vunpack.c.l.b16 %v2135
        %v2463 = vunpack.c.l.b16 %v2136
        %v2464 = vunpack.c.h.b16 %v2136
        %v2465 = vunpack.c.l.b16 %v2137
        %v2466 = vunpack.c.l.b16 %v2138
        %v2467 = vunpack.c.h.b16 %v2138
        %v2468 = vunpack.c.l.b16 %v2139
        %v2469 = vunpack.c.l.b16 %v2140
        %v2470 = vunpack.c.h.b16 %v2140
        %v2471 = vunpack.c.l.b16 %v2141
        %v2472 = vunpack.c.l.b16 %v2142
        %v2473 = vunpack.c.h.b16 %v2142
        %v2474 = vunpack.c.l.b16 %v2143
        %v2475 = vunpack.c.l.b16 %v2144
        %v2476 = vunpack.c.h.b16 %v2144
        %v2477 = vunpack.c.l.b16 %v2145
        %v2478 = vunpack.c.l.b16 %v2146
        %v2479 = vunpack.c.h.b16 %v2146
        %v2480 = vunpack.c.l.b16 %v2147
        %v2481 = vunpack.c.l.b16 %v2148
        %v2482 = vunpack.c.h.b16 %v2148
        %v2483 = vunpack.c.l.b16 %v2149
        %v2484 = vunpack.c.l.b16 %v2150
        %v2485 = vunpack.c.h.b16 %v2150
        %v2486 = vunpack.c.l.b16 %v2151
        %v2487 = vunpack.c.l.b16 %v2152
        %v2488 = vunpack.c.h.b16 %v2152
        %v2489 = vunpack.c.l.b16 %v2153
        %v2490 = vpack.c.b16 %v2301, %v2298
        %v2491 = vpack.c.b16 %v2302, %v2299
        %v2492 = vpack.c.b16 %v2303, %v2300
        %v2493 = vpack.c.b16 %v2307, %v2304
        %v2494 = vpack.c.b16 %v2308, %v2305
        %v2495 = vpack.c.b16 %v2309, %v2306
        %v2496 = vpack.c.b16 %v2313, %v2310
        %v2497 = vpack.c.b16 %v2314, %v2311
        %v2498 = vpack.c.b16 %v2315, %v2312
        %v2499 = vpack.c.b16 %v2319, %v2316
        %v2500 = vpack.c.b16 %v2320, %v2317
        %v2501 = vpack.c.b16 %v2321, %v2318
        %v2502 = vpack.c.b16 %v2325, %v2322
        %v2503 = vpack.c.b16 %v2326, %v2323
        %v2504 = vpack.c.b16 %v2327, %v2324
        %v2505 = vpack.c.b16 %v2331, %v2328
        %v2506 = vpack.c.b16 %v2332, %v2329
        %v2507 = vpack.c.b16 %v2333, %v2330
        %v2508 = vpack.c.b16 %v2337, %v2334
        %v2509 = vpack.c.b16 %v2338, %v2335
        %v2510 = vpack.c.b16 %v2339, %v2336
        %v2511 = vpack.c.b16 %v2343, %v2340
        %v2512 = vpack.c.b16 %v2344, %v2341
        %v2513 = vpack.c.b16 %v2345, %v2342
        %v2514 = vpack.c.b16 %v2349, %v2346
        %v2515 = vpack.c.b16 %v2350, %v2347
        %v2516 = vpack.c.b16 %v2351, %v2348
        %v2517 = vpack.c.b16 %v2355, %v2352
        %v2518 = vpack.c.b16 %v2356, %v2353
        %v2519 = vpack.c.b16 %v2357, %v2354
        %v2520 = vpack.c.b16 %v2361, %v2358
        %v2521 = vpack.c.b16 %v2362, %v2359
        %v2522 = vpack.c.b16 %v2363, %v2360
        %v2523 = vpack.c.b16 %v2367, %v2364
        %v2524 = vpack.c.b16 %v2368, %v2365
        %v2525 = vpack.c.b16 %v2369, %v2366
        %v2526 = vpack.c.b16 %v2373, %v2370
        %v2527 = vpack.c.b16 %v2374, %v2371
        %v2528 = vpack.c.b16 %v2375, %v2372
        %v2529 = vpack.c.b16 %v2379, %v2376
        %v2530 = vpack.c.b16 %v2380, %v2377
        %v2531 = vpack.c.b16 %v2381, %v2378
        %v2532 = vpack.c.b16 %v2385, %v2382
        %v2533 = vpack.c.b16 %v2386, %v2383
        %v2534 = vpack.c.b16 %v2387, %v2384
        %v2535 = vpack.c.b16 %v2391, %v2388
        %v2536 = vpack.c.b16 %v2392, %v2389
        %v2537 = vpack.c.b16 %v2393, %v2390
        %v2538 = vpack.c.b16 %v2397, %v2394
        %v2539 = vpack.c.b16 %v2398, %v2395
        %v2540 = vpack.c.b16 %v2399, %v2396
        %v2541 = vpack.c.b16 %v2403, %v2400
        %v2542 = vpack.c.b16 %v2404, %v2401
        %v2543 = vpack.c.b16 %v2405, %v2402
        %v2544 = vpack.c.b16 %v2409, %v2406
        %v2545 = vpack.c.b16 %v2410, %v2407
        %v2546 = vpack.c.b16 %v2411, %v2408
        %v2547 = vpack.c.b16 %v2415, %v2412
        %v2548 = vpack.c.b16 %v2416, %v2413
        %v2549 = vpack.c.b16 %v2417, %v2414
        %v2550 = vpack.c.b16 %v2421, %v2418
        %v2551 = vpack.c.b16 %v2422, %v2419
        %v2552 = vpack.c.b16 %v2423, %v2420
        %v2553 = vpack.c.b16 %v2427, %v2424
        %v2554 = vpack.c.b16 %v2428, %v2425
        %v2555 = vpack.c.b16 %v2429, %v2426
        %v2556 = vpack.c.b16 %v2433, %v2430
        %v2557 = vpack.c.b16 %v2434, %v2431
        %v2558 = vpack.c.b16 %v2435, %v2432
        %v2559 = vpack.c.b16 %v2439, %v2436
        %v2560 = vpack.c.b16 %v2440, %v2437
        %v2561 = vpack.c.b16 %v2441, %v2438
        %v2562 = vpack.c.b16 %v2445, %v2442
        %v2563 = vpack.c.b16 %v2446, %v2443
        %v2564 = vpack.c.b16 %v2447, %v2444
        %v2565 = vpack.c.b16 %v2451, %v2448
        %v2566 = vpack.c.b16 %v2452, %v2449
        %v2567 = vpack.c.b16 %v2453, %v2450
        %v2568 = vpack.c.b16 %v2457, %v2454
        %v2569 = vpack.c.b16 %v2458, %v2455
        %v2570 = vpack.c.b16 %v2459, %v2456
        %v2571 = vpack.c.b16 %v2463, %v2460
        %v2572 = vpack.c.b16 %v2464, %v2461
        %v2573 = vpack.c.b16 %v2465, %v2462
        %v2574 = vpack.c.b16 %v2469, %v2466
        %v2575 = vpack.c.b16 %v2470, %v2467
        %v2576 = vpack.c.b16 %v2471, %v2468
        %v2577 = vpack.c.b16 %v2475, %v2472
        %v2578 = vpack.c.b16 %v2476, %v2473
        %v2579 = vpack.c.b16 %v2477, %v2474
        %v2580 = vpack.c.b16 %v2481, %v2478
        %v2581 = vpack.c.b16 %v2482, %v2479
        %v2582 = vpack.c.b16 %v2483, %v2480
        %v2583 = vpack.c.b16 %v2487, %v2484
        %v2584 = vpack.c.b16 %v2488, %v2485
        %v2585 = vpack.c.b16 %v2489, %v2486
        %2682 = vmatprep.subr.bf16.mxu0 %v2512
        %2683 = vmatpush1.bf16.msra.mxu0 %v2511
        %2684 = vmatprep.subr.bf16.mxu0 %v2509
        %2685 = vmatpush1.bf16.msra.mxu0 %v2508
        %2686 = vmatprep.subr.bf16.mxu0 %v2506
        %2687 = vmatpush1.bf16.msra.mxu0 %v2505
        %2688 = vmatprep.subr.bf16.mxu0 %v2503
        %2689 = vmatpush1.bf16.msra.mxu0 %v2502
        %2690 = vmatprep.subr.bf16.mxu0 %v2500
        %2691 = vmatpush1.bf16.msra.mxu0 %v2499
        %2692 = vmatprep.subr.bf16.mxu0 %v2497
        %2693 = vmatpush1.bf16.msra.mxu0 %v2496
        %2694 = vmatprep.subr.bf16.mxu0 %v2494
        %2695 = vmatpush1.bf16.msra.mxu0 %v2493
        %2696 = vmatprep.subr.bf16.mxu0 %v2491
        %2697 = vmatpush1.bf16.msra.mxu0 %v2490
        %2698 = vmatprep.subr.bf16.mxu0 %v2536
        %2699 = vmatpush2.bf16.msra.mxu0 %v2535
        %2700 = vmatprep.subr.bf16.mxu0 %v2533
        %2701 = vmatpush2.bf16.msra.mxu0 %v2532
        %2702 = vmatprep.subr.bf16.mxu0 %v2530
        %2703 = vmatpush2.bf16.msra.mxu0 %v2529
        %2704 = vmatprep.subr.bf16.mxu0 %v2527
        %2705 = vmatpush2.bf16.msra.mxu0 %v2526
        %2706 = vmatprep.subr.bf16.mxu0 %v2524
        %2707 = vmatpush2.bf16.msra.mxu0 %v2523
        %2708 = vmatprep.subr.bf16.mxu0 %v2521
        %2709 = vmatpush2.bf16.msra.mxu0 %v2520
        %2710 = vmatprep.subr.bf16.mxu0 %v2518
        %2711 = vmatpush2.bf16.msra.mxu0 %v2517
        %2712 = vmatprep.subr.bf16.mxu0 %v2515
        %2713 = vmatpush2.bf16.msra.mxu0 %v2514
        %2714 = vmatprep.mubr.bf16.mxu0 %v1082
        %2715 = vmatmul.mubr.bf16.gmra.mxu0 %v584
        %v2716 = vpop.f32.mrf.mxu0
        %v2717 = vadd.f32 %v2158, %v2716
        %v2718 = vpop.f32.mrf.mxu0
        %v2719 = vadd.f32 %v2162, %v2718
        %v2720 = vpop.f32.mrf.mxu0
        %v2721 = vadd.f32 %v2158, %v2720
        %v2722 = vpop.f32.mrf.mxu0
        %v2723 = vadd.f32 %v2162, %v2722
        %2724 = vmatprep.mubr.bf16.mxu0 %v1083
        %2725 = vmatmul.mubr.bf16.gmra.mxu0 %v585
        %v2726 = vpop.f32.mrf.mxu0
        %v2727 = vadd.f32 %v2158, %v2726
        %v2728 = vpop.f32.mrf.mxu0
        %v2729 = vadd.f32 %v2162, %v2728
        %v2730 = vpop.f32.mrf.mxu0
        %v2731 = vadd.f32 %v2158, %v2730
        %v2732 = vpop.f32.mrf.mxu0
        %v2733 = vadd.f32 %v2162, %v2732
        %2734 = vmatprep.mubr.bf16.mxu0 %v1084
        %2735 = vmatmul.mubr.bf16.gmra.mxu0 %v586
        %v2736 = vpop.f32.mrf.mxu0
        %v2737 = vadd.f32 %v2158, %v2736
        %v2738 = vpop.f32.mrf.mxu0
        %v2739 = vadd.f32 %v2162, %v2738
        %v2740 = vpop.f32.mrf.mxu0
        %v2741 = vadd.f32 %v2158, %v2740
        %v2742 = vpop.f32.mrf.mxu0
        %v2743 = vadd.f32 %v2162, %v2742
        %2744 = vmatprep.mubr.bf16.mxu0 %v1085
        %2745 = vmatmul.mubr.bf16.gmra.mxu0 %v587
        %v2746 = vpop.f32.mrf.mxu0
        %v2747 = vadd.f32 %v2158, %v2746
        %v2748 = vpop.f32.mrf.mxu0
        %v2749 = vadd.f32 %v2162, %v2748
        %v2750 = vpop.f32.mrf.mxu0
        %v2751 = vadd.f32 %v2158, %v2750
        %v2752 = vpop.f32.mrf.mxu0
        %v2753 = vadd.f32 %v2162, %v2752
        %2754 = vmatprep.mubr.bf16.mxu0 %v1086
        %2755 = vmatmul.mubr.bf16.gmra.mxu0 %v588
        %v2756 = vpop.f32.mrf.mxu0
        %v2757 = vadd.f32 %v2158, %v2756
        %v2758 = vpop.f32.mrf.mxu0
        %v2759 = vadd.f32 %v2162, %v2758
        %v2760 = vpop.f32.mrf.mxu0
        %v2761 = vadd.f32 %v2158, %v2760
        %v2762 = vpop.f32.mrf.mxu0
        %v2763 = vadd.f32 %v2162, %v2762
        %2764 = vmatprep.mubr.bf16.mxu0 %v1087
        %2765 = vmatmul.mubr.bf16.gmra.mxu0 %v589
        %v2766 = vpop.f32.mrf.mxu0
        %v2767 = vadd.f32 %v2158, %v2766
        %v2768 = vpop.f32.mrf.mxu0
        %v2769 = vadd.f32 %v2162, %v2768
        %v2770 = vpop.f32.mrf.mxu0
        %v2771 = vadd.f32 %v2158, %v2770
        %v2772 = vpop.f32.mrf.mxu0
        %v2773 = vadd.f32 %v2162, %v2772
        %2774 = vmatprep.mubr.bf16.mxu0 %v1088
        %2775 = vmatmul.mubr.bf16.gmra.mxu0 %v590
        %v2776 = vpop.f32.mrf.mxu0
        %v2777 = vadd.f32 %v2158, %v2776
        %v2778 = vpop.f32.mrf.mxu0
        %v2779 = vadd.f32 %v2162, %v2778
        %v2780 = vpop.f32.mrf.mxu0
        %v2781 = vadd.f32 %v2158, %v2780
        %v2782 = vpop.f32.mrf.mxu0
        %v2783 = vadd.f32 %v2162, %v2782
        %2784 = vmatprep.mubr.bf16.mxu0 %v1089
        %2785 = vmatmul.mubr.bf16.gmra.mxu0 %v591
        %v2786 = vpop.f32.mrf.mxu0
        %v2787 = vadd.f32 %v2158, %v2786
        %v2788 = vpop.f32.mrf.mxu0
        %v2789 = vadd.f32 %v2162, %v2788
        %v2790 = vpop.f32.mrf.mxu0
        %v2791 = vadd.f32 %v2158, %v2790
        %v2792 = vpop.f32.mrf.mxu0
        %v2793 = vadd.f32 %v2162, %v2792
        %2794 = vmatprep.mubr.bf16.mxu0 %v1090
        %2795 = vmatmul.mubr.bf16.gmra.mxu0 %v592
        %v2796 = vpop.f32.mrf.mxu0
        %v2797 = vadd.f32 %v2158, %v2796
        %v2798 = vpop.f32.mrf.mxu0
        %v2799 = vadd.f32 %v2162, %v2798
        %v2800 = vpop.f32.mrf.mxu0
        %v2801 = vadd.f32 %v2158, %v2800
        %v2802 = vpop.f32.mrf.mxu0
        %v2803 = vadd.f32 %v2162, %v2802
        %2804 = vmatprep.mubr.bf16.mxu0 %v1091
        %2805 = vmatmul.mubr.bf16.gmra.mxu0 %v593
        %v2806 = vpop.f32.mrf.mxu0
        %v2807 = vadd.f32 %v2158, %v2806
        %v2808 = vpop.f32.mrf.mxu0
        %v2809 = vadd.f32 %v2162, %v2808
        %v2810 = vpop.f32.mrf.mxu0
        %v2811 = vadd.f32 %v2158, %v2810
        %v2812 = vpop.f32.mrf.mxu0
        %v2813 = vadd.f32 %v2162, %v2812
        %2814 = vmatprep.mubr.bf16.mxu0 %v1092
        %2815 = vmatmul.mubr.bf16.gmra.mxu0 %v594
        %v2816 = vpop.f32.mrf.mxu0
        %v2817 = vadd.f32 %v2158, %v2816
        %v2818 = vpop.f32.mrf.mxu0
        %v2819 = vadd.f32 %v2162, %v2818
        %v2820 = vpop.f32.mrf.mxu0
        %v2821 = vadd.f32 %v2158, %v2820
        %v2822 = vpop.f32.mrf.mxu0
        %v2823 = vadd.f32 %v2162, %v2822
        %2824 = vmatprep.mubr.bf16.mxu0 %v1093
        %2825 = vmatmul.mubr.bf16.gmra.mxu0 %v595
        %v2826 = vpop.f32.mrf.mxu0
        %v2827 = vadd.f32 %v2158, %v2826
        %v2828 = vpop.f32.mrf.mxu0
        %v2829 = vadd.f32 %v2162, %v2828
        %v2830 = vpop.f32.mrf.mxu0
        %v2831 = vadd.f32 %v2158, %v2830
        %v2832 = vpop.f32.mrf.mxu0
        %v2833 = vadd.f32 %v2162, %v2832
        %2834 = vmatprep.mubr.bf16.mxu0 %v1094
        %2835 = vmatmul.mubr.bf16.gmra.mxu0 %v596
        %v2836 = vpop.f32.mrf.mxu0
        %v2837 = vadd.f32 %v2158, %v2836
        %v2838 = vpop.f32.mrf.mxu0
        %v2839 = vadd.f32 %v2162, %v2838
        %v2840 = vpop.f32.mrf.mxu0
        %v2841 = vadd.f32 %v2158, %v2840
        %v2842 = vpop.f32.mrf.mxu0
        %v2843 = vadd.f32 %v2162, %v2842
        %2844 = vmatprep.mubr.bf16.mxu0 %v1095
        %2845 = vmatmul.mubr.bf16.gmra.mxu0 %v597
        %v2846 = vpop.f32.mrf.mxu0
        %v2847 = vadd.f32 %v2158, %v2846
        %v2848 = vpop.f32.mrf.mxu0
        %v2849 = vadd.f32 %v2162, %v2848
        %v2850 = vpop.f32.mrf.mxu0
        %v2851 = vadd.f32 %v2158, %v2850
        %v2852 = vpop.f32.mrf.mxu0
        %v2853 = vadd.f32 %v2162, %v2852
        %2854 = vmatprep.mubr.bf16.mxu0 %v1096
        %2855 = vmatmul.mubr.bf16.gmra.mxu0 %v598
        %v2856 = vpop.f32.mrf.mxu0
        %v2857 = vadd.f32 %v2158, %v2856
        %v2858 = vpop.f32.mrf.mxu0
        %v2859 = vadd.f32 %v2162, %v2858
        %v2860 = vpop.f32.mrf.mxu0
        %v2861 = vadd.f32 %v2158, %v2860
        %v2862 = vpop.f32.mrf.mxu0
        %v2863 = vadd.f32 %v2162, %v2862
        %2864 = vmatprep.mubr.bf16.mxu0 %v1097
        %2865 = vmatmul.mubr.bf16.gmra.mxu0 %v599
        %v2866 = vpop.f32.mrf.mxu0
        %v2867 = vadd.f32 %v2158, %v2866
        %v2868 = vpop.f32.mrf.mxu0
        %v2869 = vadd.f32 %v2162, %v2868
        %v2870 = vpop.f32.mrf.mxu0
        %v2871 = vadd.f32 %v2158, %v2870
        %v2872 = vpop.f32.mrf.mxu0
        %v2873 = vadd.f32 %v2162, %v2872
        %2874 = vdwg.mxu0
        %2875 = vmatprep.subr.bf16.mxu0 %v2560
        %2876 = vmatpush1.bf16.msra.mxu0 %v2559
        %2877 = vmatprep.subr.bf16.mxu0 %v2557
        %2878 = vmatpush1.bf16.msra.mxu0 %v2556
        %2879 = vmatprep.subr.bf16.mxu0 %v2554
        %2880 = vmatpush1.bf16.msra.mxu0 %v2553
        %2881 = vmatprep.subr.bf16.mxu0 %v2551
        %2882 = vmatpush1.bf16.msra.mxu0 %v2550
        %2883 = vmatprep.subr.bf16.mxu0 %v2548
        %2884 = vmatpush1.bf16.msra.mxu0 %v2547
        %2885 = vmatprep.subr.bf16.mxu0 %v2545
        %2886 = vmatpush1.bf16.msra.mxu0 %v2544
        %2887 = vmatprep.subr.bf16.mxu0 %v2542
        %2888 = vmatpush1.bf16.msra.mxu0 %v2541
        %2889 = vmatprep.subr.bf16.mxu0 %v2539
        %2890 = vmatpush1.bf16.msra.mxu0 %v2538
        %2891 = vmatprep.subr.bf16.mxu0 %v2584
        %2892 = vmatpush2.bf16.msra.mxu0 %v2583
        %2893 = vmatprep.subr.bf16.mxu0 %v2581
        %2894 = vmatpush2.bf16.msra.mxu0 %v2580
        %2895 = vmatprep.subr.bf16.mxu0 %v2578
        %2896 = vmatpush2.bf16.msra.mxu0 %v2577
        %2897 = vmatprep.subr.bf16.mxu0 %v2575
        %2898 = vmatpush2.bf16.msra.mxu0 %v2574
        %2899 = vmatprep.subr.bf16.mxu0 %v2572
        %2900 = vmatpush2.bf16.msra.mxu0 %v2571
        %2901 = vmatprep.subr.bf16.mxu0 %v2569
        %2902 = vmatpush2.bf16.msra.mxu0 %v2568
        %2903 = vmatprep.subr.bf16.mxu0 %v2566
        %2904 = vmatpush2.bf16.msra.mxu0 %v2565
        %2905 = vmatprep.subr.bf16.mxu0 %v2563
        %2906 = vmatpush2.bf16.msra.mxu0 %v2562
        %2907 = vmatprep.mubr.bf16.mxu0 %v2010
        %2908 = vmatmul.mubr.bf16.gmra.mxu0 %v1546
        %v2909 = vpop.f32.mrf.mxu0
        %v2910 = vadd.f32 %v2717, %v2909
        %v2911 = vpop.f32.mrf.mxu0
        %v2912 = vadd.f32 %v2719, %v2911
        %v2913 = vpop.f32.mrf.mxu0
        %v2914 = vadd.f32 %v2721, %v2913
        %v2915 = vpop.f32.mrf.mxu0
        %v2916 = vadd.f32 %v2723, %v2915
        %2917 = vmatprep.mubr.bf16.mxu0 %v2011
        %2918 = vmatmul.mubr.bf16.gmra.mxu0 %v1547
        %v2919 = vpop.f32.mrf.mxu0
        %v2920 = vadd.f32 %v2727, %v2919
        %v2921 = vpop.f32.mrf.mxu0
        %v2922 = vadd.f32 %v2729, %v2921
        %v2923 = vpop.f32.mrf.mxu0
        %v2924 = vadd.f32 %v2731, %v2923
        %v2925 = vpop.f32.mrf.mxu0
        %v2926 = vadd.f32 %v2733, %v2925
        %2927 = vmatprep.mubr.bf16.mxu0 %v2012
        %2928 = vmatmul.mubr.bf16.gmra.mxu0 %v1548
        %v2929 = vpop.f32.mrf.mxu0
        %v2930 = vadd.f32 %v2737, %v2929
        %v2931 = vpop.f32.mrf.mxu0
        %v2932 = vadd.f32 %v2739, %v2931
        %v2933 = vpop.f32.mrf.mxu0
        %v2934 = vadd.f32 %v2741, %v2933
        %v2935 = vpop.f32.mrf.mxu0
        %v2936 = vadd.f32 %v2743, %v2935
        %2937 = vmatprep.mubr.bf16.mxu0 %v2013
        %2938 = vmatmul.mubr.bf16.gmra.mxu0 %v1549
        %v2939 = vpop.f32.mrf.mxu0
        %v2940 = vadd.f32 %v2747, %v2939
        %v2941 = vpop.f32.mrf.mxu0
        %v2942 = vadd.f32 %v2749, %v2941
        %v2943 = vpop.f32.mrf.mxu0
        %v2944 = vadd.f32 %v2751, %v2943
        %v2945 = vpop.f32.mrf.mxu0
        %v2946 = vadd.f32 %v2753, %v2945
        %2947 = vmatprep.mubr.bf16.mxu0 %v2014
        %2948 = vmatmul.mubr.bf16.gmra.mxu0 %v1550
        %v2949 = vpop.f32.mrf.mxu0
        %v2950 = vadd.f32 %v2757, %v2949
        %v2951 = vpop.f32.mrf.mxu0
        %v2952 = vadd.f32 %v2759, %v2951
        %v2953 = vpop.f32.mrf.mxu0
        %v2954 = vadd.f32 %v2761, %v2953
        %v2955 = vpop.f32.mrf.mxu0
        %v2956 = vadd.f32 %v2763, %v2955
        %2957 = vmatprep.mubr.bf16.mxu0 %v2015
        %2958 = vmatmul.mubr.bf16.gmra.mxu0 %v1551
        %v2959 = vpop.f32.mrf.mxu0
        %v2960 = vadd.f32 %v2767, %v2959
        %v2961 = vpop.f32.mrf.mxu0
        %v2962 = vadd.f32 %v2769, %v2961
        %v2963 = vpop.f32.mrf.mxu0
        %v2964 = vadd.f32 %v2771, %v2963
        %v2965 = vpop.f32.mrf.mxu0
        %v2966 = vadd.f32 %v2773, %v2965
        %2967 = vmatprep.mubr.bf16.mxu0 %v2016
        %2968 = vmatmul.mubr.bf16.gmra.mxu0 %v1552
        %v2969 = vpop.f32.mrf.mxu0
        %v2970 = vadd.f32 %v2777, %v2969
        %v2971 = vpop.f32.mrf.mxu0
        %v2972 = vadd.f32 %v2779, %v2971
        %v2973 = vpop.f32.mrf.mxu0
        %v2974 = vadd.f32 %v2781, %v2973
        %v2975 = vpop.f32.mrf.mxu0
        %v2976 = vadd.f32 %v2783, %v2975
        %2977 = vmatprep.mubr.bf16.mxu0 %v2017
        %2978 = vmatmul.mubr.bf16.gmra.mxu0 %v1553
        %v2979 = vpop.f32.mrf.mxu0
        %v2980 = vadd.f32 %v2787, %v2979
        %v2981 = vpop.f32.mrf.mxu0
        %v2982 = vadd.f32 %v2789, %v2981
        %v2983 = vpop.f32.mrf.mxu0
        %v2984 = vadd.f32 %v2791, %v2983
        %v2985 = vpop.f32.mrf.mxu0
        %v2986 = vadd.f32 %v2793, %v2985
        %2987 = vmatprep.mubr.bf16.mxu0 %v2018
        %2988 = vmatmul.mubr.bf16.gmra.mxu0 %v1554
        %v2989 = vpop.f32.mrf.mxu0
        %v2990 = vadd.f32 %v2797, %v2989
        %v2991 = vpop.f32.mrf.mxu0
        %v2992 = vadd.f32 %v2799, %v2991
        %v2993 = vpop.f32.mrf.mxu0
        %v2994 = vadd.f32 %v2801, %v2993
        %v2995 = vpop.f32.mrf.mxu0
        %v2996 = vadd.f32 %v2803, %v2995
        %2997 = vmatprep.mubr.bf16.mxu0 %v2019
        %2998 = vmatmul.mubr.bf16.gmra.mxu0 %v1555
        %v2999 = vpop.f32.mrf.mxu0
        %v3000 = vadd.f32 %v2807, %v2999
        %v3001 = vpop.f32.mrf.mxu0
        %v3002 = vadd.f32 %v2809, %v3001
        %v3003 = vpop.f32.mrf.mxu0
        %v3004 = vadd.f32 %v2811, %v3003
        %v3005 = vpop.f32.mrf.mxu0
        %v3006 = vadd.f32 %v2813, %v3005
        %3007 = vmatprep.mubr.bf16.mxu0 %v2020
        %3008 = vmatmul.mubr.bf16.gmra.mxu0 %v1556
        %v3009 = vpop.f32.mrf.mxu0
        %v3010 = vadd.f32 %v2817, %v3009
        %v3011 = vpop.f32.mrf.mxu0
        %v3012 = vadd.f32 %v2819, %v3011
        %v3013 = vpop.f32.mrf.mxu0
        %v3014 = vadd.f32 %v2821, %v3013
        %v3015 = vpop.f32.mrf.mxu0
        %v3016 = vadd.f32 %v2823, %v3015
        %3017 = vmatprep.mubr.bf16.mxu0 %v2021
        %3018 = vmatmul.mubr.bf16.gmra.mxu0 %v1557
        %v3019 = vpop.f32.mrf.mxu0
        %v3020 = vadd.f32 %v2827, %v3019
        %v3021 = vpop.f32.mrf.mxu0
        %v3022 = vadd.f32 %v2829, %v3021
        %v3023 = vpop.f32.mrf.mxu0
        %v3024 = vadd.f32 %v2831, %v3023
        %v3025 = vpop.f32.mrf.mxu0
        %v3026 = vadd.f32 %v2833, %v3025
        %3027 = vmatprep.mubr.bf16.mxu0 %v2022
        %3028 = vmatmul.mubr.bf16.gmra.mxu0 %v1558
        %v3029 = vpop.f32.mrf.mxu0
        %v3030 = vadd.f32 %v2837, %v3029
        %v3031 = vpop.f32.mrf.mxu0
        %v3032 = vadd.f32 %v2839, %v3031
        %v3033 = vpop.f32.mrf.mxu0
        %v3034 = vadd.f32 %v2841, %v3033
        %v3035 = vpop.f32.mrf.mxu0
        %v3036 = vadd.f32 %v2843, %v3035
        %3037 = vmatprep.mubr.bf16.mxu0 %v2023
        %3038 = vmatmul.mubr.bf16.gmra.mxu0 %v1559
        %v3039 = vpop.f32.mrf.mxu0
        %v3040 = vadd.f32 %v2847, %v3039
        %v3041 = vpop.f32.mrf.mxu0
        %v3042 = vadd.f32 %v2849, %v3041
        %v3043 = vpop.f32.mrf.mxu0
        %v3044 = vadd.f32 %v2851, %v3043
        %v3045 = vpop.f32.mrf.mxu0
        %v3046 = vadd.f32 %v2853, %v3045
        %3047 = vmatprep.mubr.bf16.mxu0 %v2024
        %3048 = vmatmul.mubr.bf16.gmra.mxu0 %v1560
        %v3049 = vpop.f32.mrf.mxu0
        %v3050 = vadd.f32 %v2857, %v3049
        %v3051 = vpop.f32.mrf.mxu0
        %v3052 = vadd.f32 %v2859, %v3051
        %v3053 = vpop.f32.mrf.mxu0
        %v3054 = vadd.f32 %v2861, %v3053
        %v3055 = vpop.f32.mrf.mxu0
        %v3056 = vadd.f32 %v2863, %v3055
        %3057 = vmatprep.mubr.bf16.mxu0 %v2025
        %3058 = vmatmul.mubr.bf16.gmra.mxu0 %v1561
        %v3059 = vpop.f32.mrf.mxu0
        %v3060 = vadd.f32 %v2867, %v3059
        %v3061 = vpop.f32.mrf.mxu0
        %v3062 = vadd.f32 %v2869, %v3061
        %v3063 = vpop.f32.mrf.mxu0
        %v3064 = vadd.f32 %v2871, %v3063
        %v3065 = vpop.f32.mrf.mxu0
        %v3066 = vadd.f32 %v2873, %v3065
        %3067 = vdwg.mxu0
        %3068 = vmatprep.subr.bf16.mxu0 0
        %3069 = vmatpush1.bf16.msra.mxu0 %v2513
        %3070 = vmatprep.subr.bf16.mxu0 0
        %3071 = vmatpush1.bf16.msra.mxu0 %v2510
        %3072 = vmatprep.subr.bf16.mxu0 0
        %3073 = vmatpush1.bf16.msra.mxu0 %v2507
        %3074 = vmatprep.subr.bf16.mxu0 0
        %3075 = vmatpush1.bf16.msra.mxu0 %v2504
        %3076 = vmatprep.subr.bf16.mxu0 0
        %3077 = vmatpush1.bf16.msra.mxu0 %v2501
        %3078 = vmatprep.subr.bf16.mxu0 0
        %3079 = vmatpush1.bf16.msra.mxu0 %v2498
        %3080 = vmatprep.subr.bf16.mxu0 0
        %3081 = vmatpush1.bf16.msra.mxu0 %v2495
        %3082 = vmatprep.subr.bf16.mxu0 0
        %3083 = vmatpush1.bf16.msra.mxu0 %v2492
        %3084 = vmatprep.subr.bf16.mxu0 0
        %3085 = vmatpush2.bf16.msra.mxu0 %v2537
        %3086 = vmatprep.subr.bf16.mxu0 0
        %3087 = vmatpush2.bf16.msra.mxu0 %v2534
        %3088 = vmatprep.subr.bf16.mxu0 0
        %3089 = vmatpush2.bf16.msra.mxu0 %v2531
        %3090 = vmatprep.subr.bf16.mxu0 0
        %3091 = vmatpush2.bf16.msra.mxu0 %v2528
        %3092 = vmatprep.subr.bf16.mxu0 0
        %3093 = vmatpush2.bf16.msra.mxu0 %v2525
        %3094 = vmatprep.subr.bf16.mxu0 0
        %3095 = vmatpush2.bf16.msra.mxu0 %v2522
        %3096 = vmatprep.subr.bf16.mxu0 0
        %3097 = vmatpush2.bf16.msra.mxu0 %v2519
        %3098 = vmatprep.subr.bf16.mxu0 0
        %3099 = vmatpush2.bf16.msra.mxu0 %v2516
        %3100 = vmatprep.mubr.bf16.mxu0 %v1082
        %3101 = vmatmul.mubr.bf16.gmra.mxu0 %v584
        %v3102 = vpop.f32.mrf.mxu0
        %v3103 = vadd.f32 %v2166, %v3102
        %v3104 = vpop.f32.mrf.mxu0
        %v3105 = vpop.f32.mrf.mxu0
        %v3106 = vadd.f32 %v2166, %v3105
        %v3107 = vpop.f32.mrf.mxu0
        %3108 = vmatprep.mubr.bf16.mxu0 %v1083
        %3109 = vmatmul.mubr.bf16.gmra.mxu0 %v585
        %v3110 = vpop.f32.mrf.mxu0
        %v3111 = vadd.f32 %v2166, %v3110
        %v3112 = vpop.f32.mrf.mxu0
        %v3113 = vpop.f32.mrf.mxu0
        %v3114 = vadd.f32 %v2166, %v3113
        %v3115 = vpop.f32.mrf.mxu0
        %3116 = vmatprep.mubr.bf16.mxu0 %v1084
        %3117 = vmatmul.mubr.bf16.gmra.mxu0 %v586
        %v3118 = vpop.f32.mrf.mxu0
        %v3119 = vadd.f32 %v2166, %v3118
        %v3120 = vpop.f32.mrf.mxu0
        %v3121 = vpop.f32.mrf.mxu0
        %v3122 = vadd.f32 %v2166, %v3121
        %v3123 = vpop.f32.mrf.mxu0
        %3124 = vmatprep.mubr.bf16.mxu0 %v1085
        %3125 = vmatmul.mubr.bf16.gmra.mxu0 %v587
        %v3126 = vpop.f32.mrf.mxu0
        %v3127 = vadd.f32 %v2166, %v3126
        %v3128 = vpop.f32.mrf.mxu0
        %v3129 = vpop.f32.mrf.mxu0
        %v3130 = vadd.f32 %v2166, %v3129
        %v3131 = vpop.f32.mrf.mxu0
        %3132 = vmatprep.mubr.bf16.mxu0 %v1086
        %3133 = vmatmul.mubr.bf16.gmra.mxu0 %v588
        %v3134 = vpop.f32.mrf.mxu0
        %v3135 = vadd.f32 %v2166, %v3134
        %v3136 = vpop.f32.mrf.mxu0
        %v3137 = vpop.f32.mrf.mxu0
        %v3138 = vadd.f32 %v2166, %v3137
        %v3139 = vpop.f32.mrf.mxu0
        %3140 = vmatprep.mubr.bf16.mxu0 %v1087
        %3141 = vmatmul.mubr.bf16.gmra.mxu0 %v589
        %v3142 = vpop.f32.mrf.mxu0
        %v3143 = vadd.f32 %v2166, %v3142
        %v3144 = vpop.f32.mrf.mxu0
        %v3145 = vpop.f32.mrf.mxu0
        %v3146 = vadd.f32 %v2166, %v3145
        %v3147 = vpop.f32.mrf.mxu0
        %3148 = vmatprep.mubr.bf16.mxu0 %v1088
        %3149 = vmatmul.mubr.bf16.gmra.mxu0 %v590
        %v3150 = vpop.f32.mrf.mxu0
        %v3151 = vadd.f32 %v2166, %v3150
        %v3152 = vpop.f32.mrf.mxu0
        %v3153 = vpop.f32.mrf.mxu0
        %v3154 = vadd.f32 %v2166, %v3153
        %v3155 = vpop.f32.mrf.mxu0
        %3156 = vmatprep.mubr.bf16.mxu0 %v1089
        %3157 = vmatmul.mubr.bf16.gmra.mxu0 %v591
        %v3158 = vpop.f32.mrf.mxu0
        %v3159 = vadd.f32 %v2166, %v3158
        %v3160 = vpop.f32.mrf.mxu0
        %v3161 = vpop.f32.mrf.mxu0
        %v3162 = vadd.f32 %v2166, %v3161
        %v3163 = vpop.f32.mrf.mxu0
        %3164 = vmatprep.mubr.bf16.mxu0 %v1090
        %3165 = vmatmul.mubr.bf16.gmra.mxu0 %v592
        %v3166 = vpop.f32.mrf.mxu0
        %v3167 = vadd.f32 %v2166, %v3166
        %v3168 = vpop.f32.mrf.mxu0
        %v3169 = vpop.f32.mrf.mxu0
        %v3170 = vadd.f32 %v2166, %v3169
        %v3171 = vpop.f32.mrf.mxu0
        %3172 = vmatprep.mubr.bf16.mxu0 %v1091
        %3173 = vmatmul.mubr.bf16.gmra.mxu0 %v593
        %v3174 = vpop.f32.mrf.mxu0
        %v3175 = vadd.f32 %v2166, %v3174
        %v3176 = vpop.f32.mrf.mxu0
        %v3177 = vpop.f32.mrf.mxu0
        %v3178 = vadd.f32 %v2166, %v3177
        %v3179 = vpop.f32.mrf.mxu0
        %3180 = vmatprep.mubr.bf16.mxu0 %v1092
        %3181 = vmatmul.mubr.bf16.gmra.mxu0 %v594
        %v3182 = vpop.f32.mrf.mxu0
        %v3183 = vadd.f32 %v2166, %v3182
        %v3184 = vpop.f32.mrf.mxu0
        %v3185 = vpop.f32.mrf.mxu0
        %v3186 = vadd.f32 %v2166, %v3185
        %v3187 = vpop.f32.mrf.mxu0
        %3188 = vmatprep.mubr.bf16.mxu0 %v1093
        %3189 = vmatmul.mubr.bf16.gmra.mxu0 %v595
        %v3190 = vpop.f32.mrf.mxu0
        %v3191 = vadd.f32 %v2166, %v3190
        %v3192 = vpop.f32.mrf.mxu0
        %v3193 = vpop.f32.mrf.mxu0
        %v3194 = vadd.f32 %v2166, %v3193
        %v3195 = vpop.f32.mrf.mxu0
        %3196 = vmatprep.mubr.bf16.mxu0 %v1094
        %3197 = vmatmul.mubr.bf16.gmra.mxu0 %v596
        %v3198 = vpop.f32.mrf.mxu0
        %v3199 = vadd.f32 %v2166, %v3198
        %v3200 = vpop.f32.mrf.mxu0
        %v3201 = vpop.f32.mrf.mxu0
        %v3202 = vadd.f32 %v2166, %v3201
        %v3203 = vpop.f32.mrf.mxu0
        %3204 = vmatprep.mubr.bf16.mxu0 %v1095
        %3205 = vmatmul.mubr.bf16.gmra.mxu0 %v597
        %v3206 = vpop.f32.mrf.mxu0
        %v3207 = vadd.f32 %v2166, %v3206
        %v3208 = vpop.f32.mrf.mxu0
        %v3209 = vpop.f32.mrf.mxu0
        %v3210 = vadd.f32 %v2166, %v3209
        %v3211 = vpop.f32.mrf.mxu0
        %3212 = vmatprep.mubr.bf16.mxu0 %v1096
        %3213 = vmatmul.mubr.bf16.gmra.mxu0 %v598
        %v3214 = vpop.f32.mrf.mxu0
        %v3215 = vadd.f32 %v2166, %v3214
        %v3216 = vpop.f32.mrf.mxu0
        %v3217 = vpop.f32.mrf.mxu0
        %v3218 = vadd.f32 %v2166, %v3217
        %v3219 = vpop.f32.mrf.mxu0
        %3220 = vmatprep.mubr.bf16.mxu0 %v1097
        %3221 = vmatmul.mubr.bf16.gmra.mxu0 %v599
        %v3222 = vpop.f32.mrf.mxu0
        %v3223 = vadd.f32 %v2166, %v3222
        %v3224 = vpop.f32.mrf.mxu0
        %v3225 = vpop.f32.mrf.mxu0
        %v3226 = vadd.f32 %v2166, %v3225
        %v3227 = vpop.f32.mrf.mxu0
        %3228 = vdwg.mxu0
        %3229 = vmatprep.subr.bf16.mxu0 0
        %3230 = vmatpush1.bf16.msra.mxu0 %v2561
        %3231 = vmatprep.subr.bf16.mxu0 0
        %3232 = vmatpush1.bf16.msra.mxu0 %v2558
        %3233 = vmatprep.subr.bf16.mxu0 0
        %3234 = vmatpush1.bf16.msra.mxu0 %v2555
        %3235 = vmatprep.subr.bf16.mxu0 0
        %3236 = vmatpush1.bf16.msra.mxu0 %v2552
        %3237 = vmatprep.subr.bf16.mxu0 0
        %3238 = vmatpush1.bf16.msra.mxu0 %v2549
        %3239 = vmatprep.subr.bf16.mxu0 0
        %3240 = vmatpush1.bf16.msra.mxu0 %v2546
        %3241 = vmatprep.subr.bf16.mxu0 0
        %3242 = vmatpush1.bf16.msra.mxu0 %v2543
        %3243 = vmatprep.subr.bf16.mxu0 0
        %3244 = vmatpush1.bf16.msra.mxu0 %v2540
        %3245 = vmatprep.subr.bf16.mxu0 0
        %3246 = vmatpush2.bf16.msra.mxu0 %v2585
        %3247 = vmatprep.subr.bf16.mxu0 0
        %3248 = vmatpush2.bf16.msra.mxu0 %v2582
        %3249 = vmatprep.subr.bf16.mxu0 0
        %3250 = vmatpush2.bf16.msra.mxu0 %v2579
        %3251 = vmatprep.subr.bf16.mxu0 0
        %3252 = vmatpush2.bf16.msra.mxu0 %v2576
        %3253 = vmatprep.subr.bf16.mxu0 0
        %3254 = vmatpush2.bf16.msra.mxu0 %v2573
        %3255 = vmatprep.subr.bf16.mxu0 0
        %3256 = vmatpush2.bf16.msra.mxu0 %v2570
        %3257 = vmatprep.subr.bf16.mxu0 0
        %3258 = vmatpush2.bf16.msra.mxu0 %v2567
        %3259 = vmatprep.subr.bf16.mxu0 0
        %3260 = vmatpush2.bf16.msra.mxu0 %v2564
        %3261 = vmatprep.mubr.bf16.mxu0 %v2010
        %3262 = vmatmul.mubr.bf16.gmra.mxu0 %v1546
        %v3263 = vpop.f32.mrf.mxu0
        %v3264 = vadd.f32 %v3103, %v3263
        %v3265 = vpop.f32.mrf.mxu0
        %v3266 = vpop.f32.mrf.mxu0
        %v3267 = vadd.f32 %v3106, %v3266
        %v3268 = vpop.f32.mrf.mxu0
        %3269 = vmatprep.mubr.bf16.mxu0 %v2011
        %3270 = vmatmul.mubr.bf16.gmra.mxu0 %v1547
        %v3271 = vpop.f32.mrf.mxu0
        %v3272 = vadd.f32 %v3111, %v3271
        %v3273 = vpop.f32.mrf.mxu0
        %v3274 = vpop.f32.mrf.mxu0
        %v3275 = vadd.f32 %v3114, %v3274
        %v3276 = vpop.f32.mrf.mxu0
        %3277 = vmatprep.mubr.bf16.mxu0 %v2012
        %3278 = vmatmul.mubr.bf16.gmra.mxu0 %v1548
        %v3279 = vpop.f32.mrf.mxu0
        %v3280 = vadd.f32 %v3119, %v3279
        %v3281 = vpop.f32.mrf.mxu0
        %v3282 = vpop.f32.mrf.mxu0
        %v3283 = vadd.f32 %v3122, %v3282
        %v3284 = vpop.f32.mrf.mxu0
        %3285 = vmatprep.mubr.bf16.mxu0 %v2013
        %3286 = vmatmul.mubr.bf16.gmra.mxu0 %v1549
        %v3287 = vpop.f32.mrf.mxu0
        %v3288 = vadd.f32 %v3127, %v3287
        %v3289 = vpop.f32.mrf.mxu0
        %v3290 = vpop.f32.mrf.mxu0
        %v3291 = vadd.f32 %v3130, %v3290
        %v3292 = vpop.f32.mrf.mxu0
        %3293 = vmatprep.mubr.bf16.mxu0 %v2014
        %3294 = vmatmul.mubr.bf16.gmra.mxu0 %v1550
        %v3295 = vpop.f32.mrf.mxu0
        %v3296 = vadd.f32 %v3135, %v3295
        %v3297 = vpop.f32.mrf.mxu0
        %v3298 = vpop.f32.mrf.mxu0
        %v3299 = vadd.f32 %v3138, %v3298
        %v3300 = vpop.f32.mrf.mxu0
        %3301 = vmatprep.mubr.bf16.mxu0 %v2015
        %3302 = vmatmul.mubr.bf16.gmra.mxu0 %v1551
        %v3303 = vpop.f32.mrf.mxu0
        %v3304 = vadd.f32 %v3143, %v3303
        %v3305 = vpop.f32.mrf.mxu0
        %v3306 = vpop.f32.mrf.mxu0
        %v3307 = vadd.f32 %v3146, %v3306
        %v3308 = vpop.f32.mrf.mxu0
        %3309 = vmatprep.mubr.bf16.mxu0 %v2016
        %3310 = vmatmul.mubr.bf16.gmra.mxu0 %v1552
        %v3311 = vpop.f32.mrf.mxu0
        %v3312 = vadd.f32 %v3151, %v3311
        %v3313 = vpop.f32.mrf.mxu0
        %v3314 = vpop.f32.mrf.mxu0
        %v3315 = vadd.f32 %v3154, %v3314
        %v3316 = vpop.f32.mrf.mxu0
        %3317 = vmatprep.mubr.bf16.mxu0 %v2017
        %3318 = vmatmul.mubr.bf16.gmra.mxu0 %v1553
        %v3319 = vpop.f32.mrf.mxu0
        %v3320 = vadd.f32 %v3159, %v3319
        %v3321 = vpop.f32.mrf.mxu0
        %v3322 = vpop.f32.mrf.mxu0
        %v3323 = vadd.f32 %v3162, %v3322
        %v3324 = vpop.f32.mrf.mxu0
        %3325 = vmatprep.mubr.bf16.mxu0 %v2018
        %3326 = vmatmul.mubr.bf16.gmra.mxu0 %v1554
        %v3327 = vpop.f32.mrf.mxu0
        %v3328 = vadd.f32 %v3167, %v3327
        %v3329 = vpop.f32.mrf.mxu0
        %v3330 = vpop.f32.mrf.mxu0
        %v3331 = vadd.f32 %v3170, %v3330
        %v3332 = vpop.f32.mrf.mxu0
        %3333 = vmatprep.mubr.bf16.mxu0 %v2019
        %3334 = vmatmul.mubr.bf16.gmra.mxu0 %v1555
        %v3335 = vpop.f32.mrf.mxu0
        %v3336 = vadd.f32 %v3175, %v3335
        %v3337 = vpop.f32.mrf.mxu0
        %v3338 = vpop.f32.mrf.mxu0
        %v3339 = vadd.f32 %v3178, %v3338
        %v3340 = vpop.f32.mrf.mxu0
        %3341 = vmatprep.mubr.bf16.mxu0 %v2020
        %3342 = vmatmul.mubr.bf16.gmra.mxu0 %v1556
        %v3343 = vpop.f32.mrf.mxu0
        %v3344 = vadd.f32 %v3183, %v3343
        %v3345 = vpop.f32.mrf.mxu0
        %v3346 = vpop.f32.mrf.mxu0
        %v3347 = vadd.f32 %v3186, %v3346
        %v3348 = vpop.f32.mrf.mxu0
        %3349 = vmatprep.mubr.bf16.mxu0 %v2021
        %3350 = vmatmul.mubr.bf16.gmra.mxu0 %v1557
        %v3351 = vpop.f32.mrf.mxu0
        %v3352 = vadd.f32 %v3191, %v3351
        %v3353 = vpop.f32.mrf.mxu0
        %v3354 = vpop.f32.mrf.mxu0
        %v3355 = vadd.f32 %v3194, %v3354
        %v3356 = vpop.f32.mrf.mxu0
        %3357 = vmatprep.mubr.bf16.mxu0 %v2022
        %3358 = vmatmul.mubr.bf16.gmra.mxu0 %v1558
        %v3359 = vpop.f32.mrf.mxu0
        %v3360 = vadd.f32 %v3199, %v3359
        %v3361 = vpop.f32.mrf.mxu0
        %v3362 = vpop.f32.mrf.mxu0
        %v3363 = vadd.f32 %v3202, %v3362
        %v3364 = vpop.f32.mrf.mxu0
        %3365 = vmatprep.mubr.bf16.mxu0 %v2023
        %3366 = vmatmul.mubr.bf16.gmra.mxu0 %v1559
        %v3367 = vpop.f32.mrf.mxu0
        %v3368 = vadd.f32 %v3207, %v3367
        %v3369 = vpop.f32.mrf.mxu0
        %v3370 = vpop.f32.mrf.mxu0
        %v3371 = vadd.f32 %v3210, %v3370
        %v3372 = vpop.f32.mrf.mxu0
        %3373 = vmatprep.mubr.bf16.mxu0 %v2024
        %3374 = vmatmul.mubr.bf16.gmra.mxu0 %v1560
        %v3375 = vpop.f32.mrf.mxu0
        %v3376 = vadd.f32 %v3215, %v3375
        %v3377 = vpop.f32.mrf.mxu0
        %v3378 = vpop.f32.mrf.mxu0
        %v3379 = vadd.f32 %v3218, %v3378
        %v3380 = vpop.f32.mrf.mxu0
        %3381 = vmatprep.mubr.bf16.mxu0 %v2025
        %3382 = vmatmul.mubr.bf16.gmra.mxu0 %v1561
        %v3383 = vpop.f32.mrf.mxu0
        %v3384 = vadd.f32 %v3223, %v3383
        %v3385 = vpop.f32.mrf.mxu0
        %v3386 = vpop.f32.mrf.mxu0
        %v3387 = vadd.f32 %v3226, %v3386
        %v3388 = vpop.f32.mrf.mxu0
        %3389 = vdwg.mxu0
        %v3390 = vmul.f32 %v2910, %v2912
        %v3391 = vmul.f32 %v2914, %v2916
        %v3392 = vmul.f32 %v2920, %v2922
        %v3393 = vmul.f32 %v2924, %v2926
        %v3394 = vmul.f32 %v2930, %v2932
        %v3395 = vmul.f32 %v2934, %v2936
        %v3396 = vmul.f32 %v2940, %v2942
        %v3397 = vmul.f32 %v2944, %v2946
        %v3398 = vmul.f32 %v2950, %v2952
        %v3399 = vmul.f32 %v2954, %v2956
        %v3400 = vmul.f32 %v2960, %v2962
        %v3401 = vmul.f32 %v2964, %v2966
        %v3402 = vmul.f32 %v2970, %v2972
        %v3403 = vmul.f32 %v2974, %v2976
        %v3404 = vmul.f32 %v2980, %v2982
        %v3405 = vmul.f32 %v2984, %v2986
        %v3406 = vmul.f32 %v2990, %v2992
        %v3407 = vmul.f32 %v2994, %v2996
        %v3408 = vmul.f32 %v3000, %v3002
        %v3409 = vmul.f32 %v3004, %v3006
        %v3410 = vmul.f32 %v3010, %v3012
        %v3411 = vmul.f32 %v3014, %v3016
        %v3412 = vmul.f32 %v3020, %v3022
        %v3413 = vmul.f32 %v3024, %v3026
        %v3414 = vmul.f32 %v3030, %v3032
        %v3415 = vmul.f32 %v3034, %v3036
        %v3416 = vmul.f32 %v3040, %v3042
        %v3417 = vmul.f32 %v3044, %v3046
        %v3418 = vmul.f32 %v3050, %v3052
        %v3419 = vmul.f32 %v3054, %v3056
        %v3420 = vmul.f32 %v3060, %v3062
        %v3421 = vmul.f32 %v3064, %v3066
        %v3422 = vpack.c.bf16 %v3391, %v3390
        %v3423 = vpack.c.bf16 %v3393, %v3392
        %v3424 = vpack.c.bf16 %v3395, %v3394
        %v3425 = vpack.c.bf16 %v3397, %v3396
        %v3426 = vpack.c.bf16 %v3399, %v3398
        %v3427 = vpack.c.bf16 %v3401, %v3400
        %v3428 = vpack.c.bf16 %v3403, %v3402
        %v3429 = vpack.c.bf16 %v3405, %v3404
        %v3430 = vpack.c.bf16 %v3407, %v3406
        %v3431 = vpack.c.bf16 %v3409, %v3408
        %v3432 = vpack.c.bf16 %v3411, %v3410
        %v3433 = vpack.c.bf16 %v3413, %v3412
        %v3434 = vpack.c.bf16 %v3415, %v3414
        %v3435 = vpack.c.bf16 %v3417, %v3416
        %v3436 = vpack.c.bf16 %v3419, %v3418
        %v3437 = vpack.c.bf16 %v3421, %v3420
        %v3438 = vld [vmem:[%s4] sm:$0xf]
        %v3439 = vld [vmem:[%s4 + $0x4] sm:$0xf]
        %v3440 = vld [vmem:[%s4 + $0x8] sm:$0xf]
        %v3441 = vld [vmem:[%s4 + $0xc] sm:$0xf]
        %v3442 = vld [vmem:[%s4 + $0x10] sm:$0xf]
        %v3443 = vld [vmem:[%s4 + $0x14] sm:$0xf]
        %v3444 = vld [vmem:[%s4 + $0x18] sm:$0xf]
        %v3445 = vld [vmem:[%s4 + $0x1c] sm:$0xf]
        %v3446 = vld [vmem:[%s4 + $0x20] sm:$0xf]
        %v3447 = vld [vmem:[%s4 + $0x24] sm:$0xf]
        %v3448 = vld [vmem:[%s4 + $0x28] sm:$0xf]
        %v3449 = vld [vmem:[%s4 + $0x2c] sm:$0xf]
        %v3450 = vld [vmem:[%s4 + $0x30] sm:$0xf]
        %v3451 = vld [vmem:[%s4 + $0x34] sm:$0xf]
        %v3452 = vld [vmem:[%s4 + $0x38] sm:$0xf]
        %v3453 = vld [vmem:[%s4 + $0x3c] sm:$0xf]
        %v3470 = vunpack.c.l.b16 %v3438
        %v3471 = vunpack.c.l.b16 %v3439
        %v3472 = vunpack.c.l.b16 %v3440
        %v3473 = vunpack.c.l.b16 %v3441
        %v3474 = vunpack.c.l.b16 %v3442
        %v3475 = vunpack.c.l.b16 %v3443
        %v3476 = vunpack.c.l.b16 %v3444
        %v3477 = vunpack.c.l.b16 %v3445
        %v3478 = vunpack.c.l.b16 %v3446
        %v3479 = vunpack.c.l.b16 %v3447
        %v3480 = vunpack.c.l.b16 %v3448
        %v3481 = vunpack.c.l.b16 %v3449
        %v3482 = vunpack.c.l.b16 %v3450
        %v3483 = vunpack.c.l.b16 %v3451
        %v3484 = vunpack.c.l.b16 %v3452
        %v3485 = vunpack.c.l.b16 %v3453
        %v3486 = vpack.c.b16 %v3471, %v3470
        %v3487 = vpack.c.b16 %v3473, %v3472
        %v3488 = vpack.c.b16 %v3475, %v3474
        %v3489 = vpack.c.b16 %v3477, %v3476
        %v3490 = vpack.c.b16 %v3479, %v3478
        %v3491 = vpack.c.b16 %v3481, %v3480
        %v3492 = vpack.c.b16 %v3483, %v3482
        %v3493 = vpack.c.b16 %v3485, %v3484
        %3502 = vmatprep.subr.bf16.mxu0 0
        %3503 = vmatpush1.bf16.msra.mxu0 %v3493
        %3504 = vmatprep.subr.bf16.mxu0 0
        %3505 = vmatpush1.bf16.msra.mxu0 %v3492
        %3506 = vmatprep.subr.bf16.mxu0 0
        %3507 = vmatpush1.bf16.msra.mxu0 %v3491
        %3508 = vmatprep.subr.bf16.mxu0 0
        %3509 = vmatpush1.bf16.msra.mxu0 %v3490
        %3510 = vmatprep.subr.bf16.mxu0 0
        %3511 = vmatpush1.bf16.msra.mxu0 %v3489
        %3512 = vmatprep.subr.bf16.mxu0 0
        %3513 = vmatpush1.bf16.msra.mxu0 %v3488
        %3514 = vmatprep.subr.bf16.mxu0 0
        %3515 = vmatpush1.bf16.msra.mxu0 %v3487
        %3516 = vmatprep.subr.bf16.mxu0 0
        %3517 = vmatpush1.bf16.msra.mxu0 %v3486
        %3518 = vmatprep.subr.bf16.mxu0 0
        %3519 = vmatpush2.bf16.msra.mxu0 0
        %3520 = vmatprep.subr.bf16.mxu0 0
        %3521 = vmatpush2.bf16.msra.mxu0 0
        %3522 = vmatprep.subr.bf16.mxu0 0
        %3523 = vmatpush2.bf16.msra.mxu0 0
        %3524 = vmatprep.subr.bf16.mxu0 0
        %3525 = vmatpush2.bf16.msra.mxu0 0
        %3526 = vmatprep.subr.bf16.mxu0 0
        %3527 = vmatpush2.bf16.msra.mxu0 0
        %3528 = vmatprep.subr.bf16.mxu0 0
        %3529 = vmatpush2.bf16.msra.mxu0 0
        %3530 = vmatprep.subr.bf16.mxu0 0
        %3531 = vmatpush2.bf16.msra.mxu0 0
        %3532 = vmatprep.subr.bf16.mxu0 0
        %3533 = vmatpush2.bf16.msra.mxu0 0
        %3534 = vmatprep.mubr.bf16.mxu0 0
        %3535 = vmatmul.mubr.bf16.gmra.mxu0 %v3422
        %v3536 = vpop.f32.mrf.mxu0
        %v3537 = vadd.f32 0.0, %v3536
        %v3538 = vpop.f32.mrf.mxu0
        %v3539 = vpop.f32.mrf.mxu0
        %v3540 = vadd.f32 0.0, %v3539
        %v3541 = vpop.f32.mrf.mxu0
        %3542 = vmatprep.mubr.bf16.mxu0 0
        %3543 = vmatmul.mubr.bf16.gmra.mxu0 %v3423
        %v3544 = vpop.f32.mrf.mxu0
        %v3545 = vadd.f32 0.0, %v3544
        %v3546 = vpop.f32.mrf.mxu0
        %v3547 = vpop.f32.mrf.mxu0
        %v3548 = vadd.f32 0.0, %v3547
        %v3549 = vpop.f32.mrf.mxu0
        %3550 = vmatprep.mubr.bf16.mxu0 0
        %3551 = vmatmul.mubr.bf16.gmra.mxu0 %v3424
        %v3552 = vpop.f32.mrf.mxu0
        %v3553 = vadd.f32 0.0, %v3552
        %v3554 = vpop.f32.mrf.mxu0
        %v3555 = vpop.f32.mrf.mxu0
        %v3556 = vadd.f32 0.0, %v3555
        %v3557 = vpop.f32.mrf.mxu0
        %3558 = vmatprep.mubr.bf16.mxu0 0
        %3559 = vmatmul.mubr.bf16.gmra.mxu0 %v3425
        %v3560 = vpop.f32.mrf.mxu0
        %v3561 = vadd.f32 0.0, %v3560
        %v3562 = vpop.f32.mrf.mxu0
        %v3563 = vpop.f32.mrf.mxu0
        %v3564 = vadd.f32 0.0, %v3563
        %v3565 = vpop.f32.mrf.mxu0
        %3566 = vmatprep.mubr.bf16.mxu0 0
        %3567 = vmatmul.mubr.bf16.gmra.mxu0 %v3426
        %v3568 = vpop.f32.mrf.mxu0
        %v3569 = vadd.f32 0.0, %v3568
        %v3570 = vpop.f32.mrf.mxu0
        %v3571 = vpop.f32.mrf.mxu0
        %v3572 = vadd.f32 0.0, %v3571
        %v3573 = vpop.f32.mrf.mxu0
        %3574 = vmatprep.mubr.bf16.mxu0 0
        %3575 = vmatmul.mubr.bf16.gmra.mxu0 %v3427
        %v3576 = vpop.f32.mrf.mxu0
        %v3577 = vadd.f32 0.0, %v3576
        %v3578 = vpop.f32.mrf.mxu0
        %v3579 = vpop.f32.mrf.mxu0
        %v3580 = vadd.f32 0.0, %v3579
        %v3581 = vpop.f32.mrf.mxu0
        %3582 = vmatprep.mubr.bf16.mxu0 0
        %3583 = vmatmul.mubr.bf16.gmra.mxu0 %v3428
        %v3584 = vpop.f32.mrf.mxu0
        %v3585 = vadd.f32 0.0, %v3584
        %v3586 = vpop.f32.mrf.mxu0
        %v3587 = vpop.f32.mrf.mxu0
        %v3588 = vadd.f32 0.0, %v3587
        %v3589 = vpop.f32.mrf.mxu0
        %3590 = vmatprep.mubr.bf16.mxu0 0
        %3591 = vmatmul.mubr.bf16.gmra.mxu0 %v3429
        %v3592 = vpop.f32.mrf.mxu0
        %v3593 = vadd.f32 0.0, %v3592
        %v3594 = vpop.f32.mrf.mxu0
        %v3595 = vpop.f32.mrf.mxu0
        %v3596 = vadd.f32 0.0, %v3595
        %v3597 = vpop.f32.mrf.mxu0
        %3598 = vmatprep.mubr.bf16.mxu0 0
        %3599 = vmatmul.mubr.bf16.gmra.mxu0 %v3430
        %v3600 = vpop.f32.mrf.mxu0
        %v3601 = vadd.f32 0.0, %v3600
        %v3602 = vpop.f32.mrf.mxu0
        %v3603 = vpop.f32.mrf.mxu0
        %v3604 = vadd.f32 0.0, %v3603
        %v3605 = vpop.f32.mrf.mxu0
        %3606 = vmatprep.mubr.bf16.mxu0 0
        %3607 = vmatmul.mubr.bf16.gmra.mxu0 %v3431
        %v3608 = vpop.f32.mrf.mxu0
        %v3609 = vadd.f32 0.0, %v3608
        %v3610 = vpop.f32.mrf.mxu0
        %v3611 = vpop.f32.mrf.mxu0
        %v3612 = vadd.f32 0.0, %v3611
        %v3613 = vpop.f32.mrf.mxu0
        %3614 = vmatprep.mubr.bf16.mxu0 0
        %3615 = vmatmul.mubr.bf16.gmra.mxu0 %v3432
        %v3616 = vpop.f32.mrf.mxu0
        %v3617 = vadd.f32 0.0, %v3616
        %v3618 = vpop.f32.mrf.mxu0
        %v3619 = vpop.f32.mrf.mxu0
        %v3620 = vadd.f32 0.0, %v3619
        %v3621 = vpop.f32.mrf.mxu0
        %3622 = vmatprep.mubr.bf16.mxu0 0
        %3623 = vmatmul.mubr.bf16.gmra.mxu0 %v3433
        %v3624 = vpop.f32.mrf.mxu0
        %v3625 = vadd.f32 0.0, %v3624
        %v3626 = vpop.f32.mrf.mxu0
        %v3627 = vpop.f32.mrf.mxu0
        %v3628 = vadd.f32 0.0, %v3627
        %v3629 = vpop.f32.mrf.mxu0
        %3630 = vmatprep.mubr.bf16.mxu0 0
        %3631 = vmatmul.mubr.bf16.gmra.mxu0 %v3434
        %v3632 = vpop.f32.mrf.mxu0
        %v3633 = vadd.f32 0.0, %v3632
        %v3634 = vpop.f32.mrf.mxu0
        %v3635 = vpop.f32.mrf.mxu0
        %v3636 = vadd.f32 0.0, %v3635
        %v3637 = vpop.f32.mrf.mxu0
        %3638 = vmatprep.mubr.bf16.mxu0 0
        %3639 = vmatmul.mubr.bf16.gmra.mxu0 %v3435
        %v3640 = vpop.f32.mrf.mxu0
        %v3641 = vadd.f32 0.0, %v3640
        %v3642 = vpop.f32.mrf.mxu0
        %v3643 = vpop.f32.mrf.mxu0
        %v3644 = vadd.f32 0.0, %v3643
        %v3645 = vpop.f32.mrf.mxu0
        %3646 = vmatprep.mubr.bf16.mxu0 0
        %3647 = vmatmul.mubr.bf16.gmra.mxu0 %v3436
        %v3648 = vpop.f32.mrf.mxu0
        %v3649 = vadd.f32 0.0, %v3648
        %v3650 = vpop.f32.mrf.mxu0
        %v3651 = vpop.f32.mrf.mxu0
        %v3652 = vadd.f32 0.0, %v3651
        %v3653 = vpop.f32.mrf.mxu0
        %3654 = vmatprep.mubr.bf16.mxu0 0
        %3655 = vmatmul.mubr.bf16.gmra.mxu0 %v3437
        %v3656 = vpop.f32.mrf.mxu0
        %v3657 = vadd.f32 0.0, %v3656
        %v3658 = vpop.f32.mrf.mxu0
        %v3659 = vpop.f32.mrf.mxu0
        %v3660 = vadd.f32 0.0, %v3659
        %v3661 = vpop.f32.mrf.mxu0
        %3662 = vdwg.mxu0
        %v3663 = vadd.f32 %v3264, %v3537
        %v3664 = vadd.f32 %v3267, %v3540
        %v3665 = vadd.f32 %v3272, %v3545
        %v3666 = vadd.f32 %v3275, %v3548
        %v3667 = vadd.f32 %v3280, %v3553
        %v3668 = vadd.f32 %v3283, %v3556
        %v3669 = vadd.f32 %v3288, %v3561
        %v3670 = vadd.f32 %v3291, %v3564
        %v3671 = vadd.f32 %v3296, %v3569
        %v3672 = vadd.f32 %v3299, %v3572
        %v3673 = vadd.f32 %v3304, %v3577
        %v3674 = vadd.f32 %v3307, %v3580
        %v3675 = vadd.f32 %v3312, %v3585
        %v3676 = vadd.f32 %v3315, %v3588
        %v3677 = vadd.f32 %v3320, %v3593
        %v3678 = vadd.f32 %v3323, %v3596
        %v3679 = vadd.f32 %v3328, %v3601
        %v3680 = vadd.f32 %v3331, %v3604
        %v3681 = vadd.f32 %v3336, %v3609
        %v3682 = vadd.f32 %v3339, %v3612
        %v3683 = vadd.f32 %v3344, %v3617
        %v3684 = vadd.f32 %v3347, %v3620
        %v3685 = vadd.f32 %v3352, %v3625
        %v3686 = vadd.f32 %v3355, %v3628
        %v3687 = vadd.f32 %v3360, %v3633
        %v3688 = vadd.f32 %v3363, %v3636
        %v3689 = vadd.f32 %v3368, %v3641
        %v3690 = vadd.f32 %v3371, %v3644
        %v3691 = vadd.f32 %v3376, %v3649
        %v3692 = vadd.f32 %v3379, %v3652
        %v3693 = vadd.f32 %v3384, %v3657
        %v3694 = vadd.f32 %v3387, %v3660
        %v3695 = vmax.f32 %v3663, 0.0
        %v3696 = vmax.f32 %v3664, 0.0
        %v3697 = vmax.f32 %v3665, 0.0
        %v3698 = vmax.f32 %v3666, 0.0
        %v3699 = vmax.f32 %v3667, 0.0
        %v3700 = vmax.f32 %v3668, 0.0
        %v3701 = vmax.f32 %v3669, 0.0
        %v3702 = vmax.f32 %v3670, 0.0
        %v3703 = vmax.f32 %v3671, 0.0
        %v3704 = vmax.f32 %v3672, 0.0
        %v3705 = vmax.f32 %v3673, 0.0
        %v3706 = vmax.f32 %v3674, 0.0
        %v3707 = vmax.f32 %v3675, 0.0
        %v3708 = vmax.f32 %v3676, 0.0
        %v3709 = vmax.f32 %v3677, 0.0
        %v3710 = vmax.f32 %v3678, 0.0
        %v3711 = vmax.f32 %v3679, 0.0
        %v3712 = vmax.f32 %v3680, 0.0
        %v3713 = vmax.f32 %v3681, 0.0
        %v3714 = vmax.f32 %v3682, 0.0
        %v3715 = vmax.f32 %v3683, 0.0
        %v3716 = vmax.f32 %v3684, 0.0
        %v3717 = vmax.f32 %v3685, 0.0
        %v3718 = vmax.f32 %v3686, 0.0
        %v3719 = vmax.f32 %v3687, 0.0
        %v3720 = vmax.f32 %v3688, 0.0
        %v3721 = vmax.f32 %v3689, 0.0
        %v3722 = vmax.f32 %v3690, 0.0
        %v3723 = vmax.f32 %v3691, 0.0
        %v3724 = vmax.f32 %v3692, 0.0
        %v3725 = vmax.f32 %v3693, 0.0
        %v3726 = vmax.f32 %v3694, 0.0
        %v3727 = vpack.c.bf16 %v3696, %v3695
        %v3728 = vpack.c.bf16 %v3698, %v3697
        %v3729 = vpack.c.bf16 %v3700, %v3699
        %v3730 = vpack.c.bf16 %v3702, %v3701
        %v3731 = vpack.c.bf16 %v3704, %v3703
        %v3732 = vpack.c.bf16 %v3706, %v3705
        %v3733 = vpack.c.bf16 %v3708, %v3707
        %v3734 = vpack.c.bf16 %v3710, %v3709
        %v3735 = vpack.c.bf16 %v3712, %v3711
        %v3736 = vpack.c.bf16 %v3714, %v3713
        %v3737 = vpack.c.bf16 %v3716, %v3715
        %v3738 = vpack.c.bf16 %v3718, %v3717
        %v3739 = vpack.c.bf16 %v3720, %v3719
        %v3740 = vpack.c.bf16 %v3722, %v3721
        %v3741 = vpack.c.bf16 %v3724, %v3723
        %v3742 = vpack.c.bf16 %v3726, %v3725
        %v3743 = vld [vmem:[%s4 + $0x40] sm:$0xf]
        %v3744 = vld [vmem:[%s4 + $0x44] sm:$0xf]
        %v3745 = vld [vmem:[%s4 + $0x48] sm:$0xf]
        %v3746 = vld [vmem:[%s4 + $0x4c] sm:$0xf]
        %v3747 = vld [vmem:[%s4 + $0x50] sm:$0xf]
        %v3748 = vld [vmem:[%s4 + $0x54] sm:$0xf]
        %v3749 = vld [vmem:[%s4 + $0x58] sm:$0xf]
        %v3750 = vld [vmem:[%s4 + $0x5c] sm:$0xf]
        %v3751 = vld [vmem:[%s4 + $0x60] sm:$0xf]
        %v3752 = vld [vmem:[%s4 + $0x64] sm:$0xf]
        %v3753 = vld [vmem:[%s4 + $0x68] sm:$0xf]
        %v3754 = vld [vmem:[%s4 + $0x6c] sm:$0xf]
        %v3755 = vld [vmem:[%s4 + $0x70] sm:$0xf]
        %v3756 = vld [vmem:[%s4 + $0x74] sm:$0xf]
        %v3757 = vld [vmem:[%s4 + $0x78] sm:$0xf]
        %v3758 = vld [vmem:[%s4 + $0x7c] sm:$0xf]
        %v3760 = vlaneseq
        %v3761 = vshrl.u32 %v3760, 7
        %v3762 = vsub.s32 0, %v3761
        %v3763 = vrot.slane %v278, %v3762
        %v3781 = vunpack.c.l.b16 %v3743
        %v3782 = vunpack.c.l.b16 %v3744
        %v3783 = vunpack.c.l.b16 %v3745
        %v3784 = vunpack.c.l.b16 %v3746
        %v3785 = vunpack.c.l.b16 %v3747
        %v3786 = vunpack.c.l.b16 %v3748
        %v3787 = vunpack.c.l.b16 %v3749
        %v3788 = vunpack.c.l.b16 %v3750
        %v3789 = vunpack.c.l.b16 %v3751
        %v3790 = vunpack.c.l.b16 %v3752
        %v3791 = vunpack.c.l.b16 %v3753
        %v3792 = vunpack.c.l.b16 %v3754
        %v3793 = vunpack.c.l.b16 %v3755
        %v3794 = vunpack.c.l.b16 %v3756
        %v3795 = vunpack.c.l.b16 %v3757
        %v3796 = vunpack.c.l.b16 %v3758
        %v3797 = vpack.c.b16 %v3782, %v3781
        %v3798 = vpack.c.b16 %v3784, %v3783
        %v3799 = vpack.c.b16 %v3786, %v3785
        %v3800 = vpack.c.b16 %v3788, %v3787
        %v3801 = vpack.c.b16 %v3790, %v3789
        %v3802 = vpack.c.b16 %v3792, %v3791
        %v3803 = vpack.c.b16 %v3794, %v3793
        %v3804 = vpack.c.b16 %v3796, %v3795
        %3813 = vmatprep.subr.bf16.mxu0 0
        %3814 = vmatpush1.bf16.msra.mxu0 %v3804
        %3815 = vmatprep.subr.bf16.mxu0 0
        %3816 = vmatpush1.bf16.msra.mxu0 %v3803
        %3817 = vmatprep.subr.bf16.mxu0 0
        %3818 = vmatpush1.bf16.msra.mxu0 %v3802
        %3819 = vmatprep.subr.bf16.mxu0 0
        %3820 = vmatpush1.bf16.msra.mxu0 %v3801
        %3821 = vmatprep.subr.bf16.mxu0 0
        %3822 = vmatpush1.bf16.msra.mxu0 %v3800
        %3823 = vmatprep.subr.bf16.mxu0 0
        %3824 = vmatpush1.bf16.msra.mxu0 %v3799
        %3825 = vmatprep.subr.bf16.mxu0 0
        %3826 = vmatpush1.bf16.msra.mxu0 %v3798
        %3827 = vmatprep.subr.bf16.mxu0 0
        %3828 = vmatpush1.bf16.msra.mxu0 %v3797
        %3829 = vmatprep.subr.bf16.mxu0 0
        %3830 = vmatpush2.bf16.msra.mxu0 0
        %3831 = vmatprep.subr.bf16.mxu0 0
        %3832 = vmatpush2.bf16.msra.mxu0 0
        %3833 = vmatprep.subr.bf16.mxu0 0
        %3834 = vmatpush2.bf16.msra.mxu0 0
        %3835 = vmatprep.subr.bf16.mxu0 0
        %3836 = vmatpush2.bf16.msra.mxu0 0
        %3837 = vmatprep.subr.bf16.mxu0 0
        %3838 = vmatpush2.bf16.msra.mxu0 0
        %3839 = vmatprep.subr.bf16.mxu0 0
        %3840 = vmatpush2.bf16.msra.mxu0 0
        %3841 = vmatprep.subr.bf16.mxu0 0
        %3842 = vmatpush2.bf16.msra.mxu0 0
        %3843 = vmatprep.subr.bf16.mxu0 0
        %3844 = vmatpush2.bf16.msra.mxu0 0
        %3845 = vmatprep.mubr.bf16.mxu0 0
        %3846 = vmatmul.mubr.bf16.gmra.mxu0 %v3727
        %v3847 = vpop.f32.mrf.mxu0
        %v3848 = vadd.f32 %v3763, %v3847
        %v3849 = vpop.f32.mrf.mxu0
        %v3850 = vpop.f32.mrf.mxu0
        %v3851 = vadd.f32 %v3763, %v3850
        %v3852 = vpop.f32.mrf.mxu0
        %3853 = vmatprep.mubr.bf16.mxu0 0
        %3854 = vmatmul.mubr.bf16.gmra.mxu0 %v3728
        %v3855 = vpop.f32.mrf.mxu0
        %v3856 = vadd.f32 %v3763, %v3855
        %v3857 = vpop.f32.mrf.mxu0
        %v3858 = vpop.f32.mrf.mxu0
        %v3859 = vadd.f32 %v3763, %v3858
        %v3860 = vpop.f32.mrf.mxu0
        %3861 = vmatprep.mubr.bf16.mxu0 0
        %3862 = vmatmul.mubr.bf16.gmra.mxu0 %v3729
        %v3863 = vpop.f32.mrf.mxu0
        %v3864 = vadd.f32 %v3763, %v3863
        %v3865 = vpop.f32.mrf.mxu0
        %v3866 = vpop.f32.mrf.mxu0
        %v3867 = vadd.f32 %v3763, %v3866
        %v3868 = vpop.f32.mrf.mxu0
        %3869 = vmatprep.mubr.bf16.mxu0 0
        %3870 = vmatmul.mubr.bf16.gmra.mxu0 %v3730
        %v3871 = vpop.f32.mrf.mxu0
        %v3872 = vadd.f32 %v3763, %v3871
        %v3873 = vpop.f32.mrf.mxu0
        %v3874 = vpop.f32.mrf.mxu0
        %v3875 = vadd.f32 %v3763, %v3874
        %v3876 = vpop.f32.mrf.mxu0
        %3877 = vmatprep.mubr.bf16.mxu0 0
        %3878 = vmatmul.mubr.bf16.gmra.mxu0 %v3731
        %v3879 = vpop.f32.mrf.mxu0
        %v3880 = vadd.f32 %v3763, %v3879
        %v3881 = vpop.f32.mrf.mxu0
        %v3882 = vpop.f32.mrf.mxu0
        %v3883 = vadd.f32 %v3763, %v3882
        %v3884 = vpop.f32.mrf.mxu0
        %3885 = vmatprep.mubr.bf16.mxu0 0
        %3886 = vmatmul.mubr.bf16.gmra.mxu0 %v3732
        %v3887 = vpop.f32.mrf.mxu0
        %v3888 = vadd.f32 %v3763, %v3887
        %v3889 = vpop.f32.mrf.mxu0
        %v3890 = vpop.f32.mrf.mxu0
        %v3891 = vadd.f32 %v3763, %v3890
        %v3892 = vpop.f32.mrf.mxu0
        %3893 = vmatprep.mubr.bf16.mxu0 0
        %3894 = vmatmul.mubr.bf16.gmra.mxu0 %v3733
        %v3895 = vpop.f32.mrf.mxu0
        %v3896 = vadd.f32 %v3763, %v3895
        %v3897 = vpop.f32.mrf.mxu0
        %v3898 = vpop.f32.mrf.mxu0
        %v3899 = vadd.f32 %v3763, %v3898
        %v3900 = vpop.f32.mrf.mxu0
        %3901 = vmatprep.mubr.bf16.mxu0 0
        %3902 = vmatmul.mubr.bf16.gmra.mxu0 %v3734
        %v3903 = vpop.f32.mrf.mxu0
        %v3904 = vadd.f32 %v3763, %v3903
        %v3905 = vpop.f32.mrf.mxu0
        %v3906 = vpop.f32.mrf.mxu0
        %v3907 = vadd.f32 %v3763, %v3906
        %v3908 = vpop.f32.mrf.mxu0
        %3909 = vmatprep.mubr.bf16.mxu0 0
        %3910 = vmatmul.mubr.bf16.gmra.mxu0 %v3735
        %v3911 = vpop.f32.mrf.mxu0
        %v3912 = vadd.f32 %v3763, %v3911
        %v3913 = vpop.f32.mrf.mxu0
        %v3914 = vpop.f32.mrf.mxu0
        %v3915 = vadd.f32 %v3763, %v3914
        %v3916 = vpop.f32.mrf.mxu0
        %3917 = vmatprep.mubr.bf16.mxu0 0
        %3918 = vmatmul.mubr.bf16.gmra.mxu0 %v3736
        %v3919 = vpop.f32.mrf.mxu0
        %v3920 = vadd.f32 %v3763, %v3919
        %v3921 = vpop.f32.mrf.mxu0
        %v3922 = vpop.f32.mrf.mxu0
        %v3923 = vadd.f32 %v3763, %v3922
        %v3924 = vpop.f32.mrf.mxu0
        %3925 = vmatprep.mubr.bf16.mxu0 0
        %3926 = vmatmul.mubr.bf16.gmra.mxu0 %v3737
        %v3927 = vpop.f32.mrf.mxu0
        %v3928 = vadd.f32 %v3763, %v3927
        %v3929 = vpop.f32.mrf.mxu0
        %v3930 = vpop.f32.mrf.mxu0
        %v3931 = vadd.f32 %v3763, %v3930
        %v3932 = vpop.f32.mrf.mxu0
        %3933 = vmatprep.mubr.bf16.mxu0 0
        %3934 = vmatmul.mubr.bf16.gmra.mxu0 %v3738
        %v3935 = vpop.f32.mrf.mxu0
        %v3936 = vadd.f32 %v3763, %v3935
        %v3937 = vpop.f32.mrf.mxu0
        %v3938 = vpop.f32.mrf.mxu0
        %v3939 = vadd.f32 %v3763, %v3938
        %v3940 = vpop.f32.mrf.mxu0
        %3941 = vmatprep.mubr.bf16.mxu0 0
        %3942 = vmatmul.mubr.bf16.gmra.mxu0 %v3739
        %v3943 = vpop.f32.mrf.mxu0
        %v3944 = vadd.f32 %v3763, %v3943
        %v3945 = vpop.f32.mrf.mxu0
        %v3946 = vpop.f32.mrf.mxu0
        %v3947 = vadd.f32 %v3763, %v3946
        %v3948 = vpop.f32.mrf.mxu0
        %3949 = vmatprep.mubr.bf16.mxu0 0
        %3950 = vmatmul.mubr.bf16.gmra.mxu0 %v3740
        %v3951 = vpop.f32.mrf.mxu0
        %v3952 = vadd.f32 %v3763, %v3951
        %v3953 = vpop.f32.mrf.mxu0
        %v3954 = vpop.f32.mrf.mxu0
        %v3955 = vadd.f32 %v3763, %v3954
        %v3956 = vpop.f32.mrf.mxu0
        %3957 = vmatprep.mubr.bf16.mxu0 0
        %3958 = vmatmul.mubr.bf16.gmra.mxu0 %v3741
        %v3959 = vpop.f32.mrf.mxu0
        %v3960 = vadd.f32 %v3763, %v3959
        %v3961 = vpop.f32.mrf.mxu0
        %v3962 = vpop.f32.mrf.mxu0
        %v3963 = vadd.f32 %v3763, %v3962
        %v3964 = vpop.f32.mrf.mxu0
        %3965 = vmatprep.mubr.bf16.mxu0 0
        %3966 = vmatmul.mubr.bf16.gmra.mxu0 %v3742
        %v3967 = vpop.f32.mrf.mxu0
        %v3968 = vadd.f32 %v3763, %v3967
        %v3969 = vpop.f32.mrf.mxu0
        %v3970 = vpop.f32.mrf.mxu0
        %v3971 = vadd.f32 %v3763, %v3970
        %v3972 = vpop.f32.mrf.mxu0
        %3973 = vdwg.mxu0
        %v3974 = vmax.f32 %v3848, 0.0
        %v3975 = vmax.f32 %v3851, 0.0
        %v3976 = vmax.f32 %v3856, 0.0
        %v3977 = vmax.f32 %v3859, 0.0
        %v3978 = vmax.f32 %v3864, 0.0
        %v3979 = vmax.f32 %v3867, 0.0
        %v3980 = vmax.f32 %v3872, 0.0
        %v3981 = vmax.f32 %v3875, 0.0
        %v3982 = vmax.f32 %v3880, 0.0
        %v3983 = vmax.f32 %v3883, 0.0
        %v3984 = vmax.f32 %v3888, 0.0
        %v3985 = vmax.f32 %v3891, 0.0
        %v3986 = vmax.f32 %v3896, 0.0
        %v3987 = vmax.f32 %v3899, 0.0
        %v3988 = vmax.f32 %v3904, 0.0
        %v3989 = vmax.f32 %v3907, 0.0
        %v3990 = vmax.f32 %v3912, 0.0
        %v3991 = vmax.f32 %v3915, 0.0
        %v3992 = vmax.f32 %v3920, 0.0
        %v3993 = vmax.f32 %v3923, 0.0
        %v3994 = vmax.f32 %v3928, 0.0
        %v3995 = vmax.f32 %v3931, 0.0
        %v3996 = vmax.f32 %v3936, 0.0
        %v3997 = vmax.f32 %v3939, 0.0
        %v3998 = vmax.f32 %v3944, 0.0
        %v3999 = vmax.f32 %v3947, 0.0
        %v4000 = vmax.f32 %v3952, 0.0
        %v4001 = vmax.f32 %v3955, 0.0
        %v4002 = vmax.f32 %v3960, 0.0
        %v4003 = vmax.f32 %v3963, 0.0
        %v4004 = vmax.f32 %v3968, 0.0
        %v4005 = vmax.f32 %v3971, 0.0
        %v4006 = vpack.c.bf16 %v3975, %v3974
        %v4007 = vpack.c.bf16 %v3977, %v3976
        %v4008 = vpack.c.bf16 %v3979, %v3978
        %v4009 = vpack.c.bf16 %v3981, %v3980
        %v4010 = vpack.c.bf16 %v3983, %v3982
        %v4011 = vpack.c.bf16 %v3985, %v3984
        %v4012 = vpack.c.bf16 %v3987, %v3986
        %v4013 = vpack.c.bf16 %v3989, %v3988
        %v4014 = vpack.c.bf16 %v3991, %v3990
        %v4015 = vpack.c.bf16 %v3993, %v3992
        %v4016 = vpack.c.bf16 %v3995, %v3994
        %v4017 = vpack.c.bf16 %v3997, %v3996
        %v4018 = vpack.c.bf16 %v3999, %v3998
        %v4019 = vpack.c.bf16 %v4001, %v4000
        %v4020 = vpack.c.bf16 %v4003, %v4002
        %v4021 = vpack.c.bf16 %v4005, %v4004
        %v4022 = vld [vmem:[%s4 + $0x80] sm:$0xf]
        %v4023 = vld [vmem:[%s4 + $0x84] sm:$0xf]
        %v4024 = vld [vmem:[%s4 + $0x88] sm:$0xf]
        %v4025 = vld [vmem:[%s4 + $0x8c] sm:$0xf]
        %v4026 = vld [vmem:[%s4 + $0x90] sm:$0xf]
        %v4027 = vld [vmem:[%s4 + $0x94] sm:$0xf]
        %v4028 = vld [vmem:[%s4 + $0x98] sm:$0xf]
        %v4029 = vld [vmem:[%s4 + $0x9c] sm:$0xf]
        %v4030 = vld [vmem:[%s4 + $0xa0] sm:$0xf]
        %v4031 = vld [vmem:[%s4 + $0xa4] sm:$0xf]
        %v4032 = vld [vmem:[%s4 + $0xa8] sm:$0xf]
        %v4033 = vld [vmem:[%s4 + $0xac] sm:$0xf]
        %v4034 = vld [vmem:[%s4 + $0xb0] sm:$0xf]
        %v4035 = vld [vmem:[%s4 + $0xb4] sm:$0xf]
        %v4036 = vld [vmem:[%s4 + $0xb8] sm:$0xf]
        %v4037 = vld [vmem:[%s4 + $0xbc] sm:$0xf]
        %v4039 = vlaneseq
        %v4040 = vshrl.u32 %v4039, 7
        %v4041 = vsub.s32 0, %v4040
        %v4042 = vrot.slane %v279, %v4041
        %v4060 = vunpack.c.l.b16 %v4022
        %v4061 = vunpack.c.l.b16 %v4023
        %v4062 = vunpack.c.l.b16 %v4024
        %v4063 = vunpack.c.l.b16 %v4025
        %v4064 = vunpack.c.l.b16 %v4026
        %v4065 = vunpack.c.l.b16 %v4027
        %v4066 = vunpack.c.l.b16 %v4028
        %v4067 = vunpack.c.l.b16 %v4029
        %v4068 = vunpack.c.l.b16 %v4030
        %v4069 = vunpack.c.l.b16 %v4031
        %v4070 = vunpack.c.l.b16 %v4032
        %v4071 = vunpack.c.l.b16 %v4033
        %v4072 = vunpack.c.l.b16 %v4034
        %v4073 = vunpack.c.l.b16 %v4035
        %v4074 = vunpack.c.l.b16 %v4036
        %v4075 = vunpack.c.l.b16 %v4037
        %v4076 = vpack.c.b16 %v4061, %v4060
        %v4077 = vpack.c.b16 %v4063, %v4062
        %v4078 = vpack.c.b16 %v4065, %v4064
        %v4079 = vpack.c.b16 %v4067, %v4066
        %v4080 = vpack.c.b16 %v4069, %v4068
        %v4081 = vpack.c.b16 %v4071, %v4070
        %v4082 = vpack.c.b16 %v4073, %v4072
        %v4083 = vpack.c.b16 %v4075, %v4074
        %4092 = vmatprep.subr.bf16.mxu0 0
        %4093 = vmatpush1.bf16.msra.mxu0 %v4083
        %4094 = vmatprep.subr.bf16.mxu0 0
        %4095 = vmatpush1.bf16.msra.mxu0 %v4082
        %4096 = vmatprep.subr.bf16.mxu0 0
        %4097 = vmatpush1.bf16.msra.mxu0 %v4081
        %4098 = vmatprep.subr.bf16.mxu0 0
        %4099 = vmatpush1.bf16.msra.mxu0 %v4080
        %4100 = vmatprep.subr.bf16.mxu0 0
        %4101 = vmatpush1.bf16.msra.mxu0 %v4079
        %4102 = vmatprep.subr.bf16.mxu0 0
        %4103 = vmatpush1.bf16.msra.mxu0 %v4078
        %4104 = vmatprep.subr.bf16.mxu0 0
        %4105 = vmatpush1.bf16.msra.mxu0 %v4077
        %4106 = vmatprep.subr.bf16.mxu0 0
        %4107 = vmatpush1.bf16.msra.mxu0 %v4076
        %4108 = vmatprep.subr.bf16.mxu0 0
        %4109 = vmatpush2.bf16.msra.mxu0 0
        %4110 = vmatprep.subr.bf16.mxu0 0
        %4111 = vmatpush2.bf16.msra.mxu0 0
        %4112 = vmatprep.subr.bf16.mxu0 0
        %4113 = vmatpush2.bf16.msra.mxu0 0
        %4114 = vmatprep.subr.bf16.mxu0 0
        %4115 = vmatpush2.bf16.msra.mxu0 0
        %4116 = vmatprep.subr.bf16.mxu0 0
        %4117 = vmatpush2.bf16.msra.mxu0 0
        %4118 = vmatprep.subr.bf16.mxu0 0
        %4119 = vmatpush2.bf16.msra.mxu0 0
        %4120 = vmatprep.subr.bf16.mxu0 0
        %4121 = vmatpush2.bf16.msra.mxu0 0
        %4122 = vmatprep.subr.bf16.mxu0 0
        %4123 = vmatpush2.bf16.msra.mxu0 0
        %4124 = vmatprep.mubr.bf16.mxu0 0
        %4125 = vmatmul.mubr.bf16.gmra.mxu0 %v4006
        %v4126 = vpop.f32.mrf.mxu0
        %v4127 = vadd.f32 %v4042, %v4126
        %v4128 = vpop.f32.mrf.mxu0
        %v4129 = vpop.f32.mrf.mxu0
        %v4130 = vadd.f32 %v4042, %v4129
        %v4131 = vpop.f32.mrf.mxu0
        %4132 = vmatprep.mubr.bf16.mxu0 0
        %4133 = vmatmul.mubr.bf16.gmra.mxu0 %v4007
        %v4134 = vpop.f32.mrf.mxu0
        %v4135 = vadd.f32 %v4042, %v4134
        %v4136 = vpop.f32.mrf.mxu0
        %v4137 = vpop.f32.mrf.mxu0
        %v4138 = vadd.f32 %v4042, %v4137
        %v4139 = vpop.f32.mrf.mxu0
        %4140 = vmatprep.mubr.bf16.mxu0 0
        %4141 = vmatmul.mubr.bf16.gmra.mxu0 %v4008
        %v4142 = vpop.f32.mrf.mxu0
        %v4143 = vadd.f32 %v4042, %v4142
        %v4144 = vpop.f32.mrf.mxu0
        %v4145 = vpop.f32.mrf.mxu0
        %v4146 = vadd.f32 %v4042, %v4145
        %v4147 = vpop.f32.mrf.mxu0
        %4148 = vmatprep.mubr.bf16.mxu0 0
        %4149 = vmatmul.mubr.bf16.gmra.mxu0 %v4009
        %v4150 = vpop.f32.mrf.mxu0
        %v4151 = vadd.f32 %v4042, %v4150
        %v4152 = vpop.f32.mrf.mxu0
        %v4153 = vpop.f32.mrf.mxu0
        %v4154 = vadd.f32 %v4042, %v4153
        %v4155 = vpop.f32.mrf.mxu0
        %4156 = vmatprep.mubr.bf16.mxu0 0
        %4157 = vmatmul.mubr.bf16.gmra.mxu0 %v4010
        %v4158 = vpop.f32.mrf.mxu0
        %v4159 = vadd.f32 %v4042, %v4158
        %v4160 = vpop.f32.mrf.mxu0
        %v4161 = vpop.f32.mrf.mxu0
        %v4162 = vadd.f32 %v4042, %v4161
        %v4163 = vpop.f32.mrf.mxu0
        %4164 = vmatprep.mubr.bf16.mxu0 0
        %4165 = vmatmul.mubr.bf16.gmra.mxu0 %v4011
        %v4166 = vpop.f32.mrf.mxu0
        %v4167 = vadd.f32 %v4042, %v4166
        %v4168 = vpop.f32.mrf.mxu0
        %v4169 = vpop.f32.mrf.mxu0
        %v4170 = vadd.f32 %v4042, %v4169
        %v4171 = vpop.f32.mrf.mxu0
        %4172 = vmatprep.mubr.bf16.mxu0 0
        %4173 = vmatmul.mubr.bf16.gmra.mxu0 %v4012
        %v4174 = vpop.f32.mrf.mxu0
        %v4175 = vadd.f32 %v4042, %v4174
        %v4176 = vpop.f32.mrf.mxu0
        %v4177 = vpop.f32.mrf.mxu0
        %v4178 = vadd.f32 %v4042, %v4177
        %v4179 = vpop.f32.mrf.mxu0
        %4180 = vmatprep.mubr.bf16.mxu0 0
        %4181 = vmatmul.mubr.bf16.gmra.mxu0 %v4013
        %v4182 = vpop.f32.mrf.mxu0
        %v4183 = vadd.f32 %v4042, %v4182
        %v4184 = vpop.f32.mrf.mxu0
        %v4185 = vpop.f32.mrf.mxu0
        %v4186 = vadd.f32 %v4042, %v4185
        %v4187 = vpop.f32.mrf.mxu0
        %4188 = vmatprep.mubr.bf16.mxu0 0
        %4189 = vmatmul.mubr.bf16.gmra.mxu0 %v4014
        %v4190 = vpop.f32.mrf.mxu0
        %v4191 = vadd.f32 %v4042, %v4190
        %v4192 = vpop.f32.mrf.mxu0
        %v4193 = vpop.f32.mrf.mxu0
        %v4194 = vadd.f32 %v4042, %v4193
        %v4195 = vpop.f32.mrf.mxu0
        %4196 = vmatprep.mubr.bf16.mxu0 0
        %4197 = vmatmul.mubr.bf16.gmra.mxu0 %v4015
        %v4198 = vpop.f32.mrf.mxu0
        %v4199 = vadd.f32 %v4042, %v4198
        %v4200 = vpop.f32.mrf.mxu0
        %v4201 = vpop.f32.mrf.mxu0
        %v4202 = vadd.f32 %v4042, %v4201
        %v4203 = vpop.f32.mrf.mxu0
        %4204 = vmatprep.mubr.bf16.mxu0 0
        %4205 = vmatmul.mubr.bf16.gmra.mxu0 %v4016
        %v4206 = vpop.f32.mrf.mxu0
        %v4207 = vadd.f32 %v4042, %v4206
        %v4208 = vpop.f32.mrf.mxu0
        %v4209 = vpop.f32.mrf.mxu0
        %v4210 = vadd.f32 %v4042, %v4209
        %v4211 = vpop.f32.mrf.mxu0
        %4212 = vmatprep.mubr.bf16.mxu0 0
        %4213 = vmatmul.mubr.bf16.gmra.mxu0 %v4017
        %v4214 = vpop.f32.mrf.mxu0
        %v4215 = vadd.f32 %v4042, %v4214
        %v4216 = vpop.f32.mrf.mxu0
        %v4217 = vpop.f32.mrf.mxu0
        %v4218 = vadd.f32 %v4042, %v4217
        %v4219 = vpop.f32.mrf.mxu0
        %4220 = vmatprep.mubr.bf16.mxu0 0
        %4221 = vmatmul.mubr.bf16.gmra.mxu0 %v4018
        %v4222 = vpop.f32.mrf.mxu0
        %v4223 = vadd.f32 %v4042, %v4222
        %v4224 = vpop.f32.mrf.mxu0
        %v4225 = vpop.f32.mrf.mxu0
        %v4226 = vadd.f32 %v4042, %v4225
        %v4227 = vpop.f32.mrf.mxu0
        %4228 = vmatprep.mubr.bf16.mxu0 0
        %4229 = vmatmul.mubr.bf16.gmra.mxu0 %v4019
        %v4230 = vpop.f32.mrf.mxu0
        %v4231 = vadd.f32 %v4042, %v4230
        %v4232 = vpop.f32.mrf.mxu0
        %v4233 = vpop.f32.mrf.mxu0
        %v4234 = vadd.f32 %v4042, %v4233
        %v4235 = vpop.f32.mrf.mxu0
        %4236 = vmatprep.mubr.bf16.mxu0 0
        %4237 = vmatmul.mubr.bf16.gmra.mxu0 %v4020
        %v4238 = vpop.f32.mrf.mxu0
        %v4239 = vadd.f32 %v4042, %v4238
        %v4240 = vpop.f32.mrf.mxu0
        %v4241 = vpop.f32.mrf.mxu0
        %v4242 = vadd.f32 %v4042, %v4241
        %v4243 = vpop.f32.mrf.mxu0
        %4244 = vmatprep.mubr.bf16.mxu0 0
        %4245 = vmatmul.mubr.bf16.gmra.mxu0 %v4021
        %v4246 = vpop.f32.mrf.mxu0
        %v4247 = vadd.f32 %v4042, %v4246
        %v4248 = vpop.f32.mrf.mxu0
        %v4249 = vpop.f32.mrf.mxu0
        %v4250 = vadd.f32 %v4042, %v4249
        %v4251 = vpop.f32.mrf.mxu0
        %4252 = vdwg.mxu0
        %v4253 = vpack.c.bf16 %v4130, %v4127
        %v4254 = vpack.c.bf16 %v4138, %v4135
        %v4255 = vpack.c.bf16 %v4146, %v4143
        %v4256 = vpack.c.bf16 %v4154, %v4151
        %v4257 = vpack.c.bf16 %v4162, %v4159
        %v4258 = vpack.c.bf16 %v4170, %v4167
        %v4259 = vpack.c.bf16 %v4178, %v4175
        %v4260 = vpack.c.bf16 %v4186, %v4183
        %v4261 = vpack.c.bf16 %v4194, %v4191
        %v4262 = vpack.c.bf16 %v4202, %v4199
        %v4263 = vpack.c.bf16 %v4210, %v4207
        %v4264 = vpack.c.bf16 %v4218, %v4215
        %v4265 = vpack.c.bf16 %v4226, %v4223
        %v4266 = vpack.c.bf16 %v4234, %v4231
        %v4267 = vpack.c.bf16 %v4242, %v4239
        %v4268 = vpack.c.bf16 %v4250, %v4247
        %v4285 = vunpack.c.l.b16 %v4253
        %v4286 = vunpack.c.h.b16 %v4253
        %v4287 = vunpack.c.l.b16 %v4254
        %v4288 = vunpack.c.h.b16 %v4254
        %v4289 = vunpack.c.l.b16 %v4255
        %v4290 = vunpack.c.h.b16 %v4255
        %v4291 = vunpack.c.l.b16 %v4256
        %v4292 = vunpack.c.h.b16 %v4256
        %v4293 = vunpack.c.l.b16 %v4257
        %v4294 = vunpack.c.h.b16 %v4257
        %v4295 = vunpack.c.l.b16 %v4258
        %v4296 = vunpack.c.h.b16 %v4258
        %v4297 = vunpack.c.l.b16 %v4259
        %v4298 = vunpack.c.h.b16 %v4259
        %v4299 = vunpack.c.l.b16 %v4260
        %v4300 = vunpack.c.h.b16 %v4260
        %v4301 = vunpack.c.l.b16 %v4261
        %v4302 = vunpack.c.h.b16 %v4261
        %v4303 = vunpack.c.l.b16 %v4262
        %v4304 = vunpack.c.h.b16 %v4262
        %v4305 = vunpack.c.l.b16 %v4263
        %v4306 = vunpack.c.h.b16 %v4263
        %v4307 = vunpack.c.l.b16 %v4264
        %v4308 = vunpack.c.h.b16 %v4264
        %v4309 = vunpack.c.l.b16 %v4265
        %v4310 = vunpack.c.h.b16 %v4265
        %v4311 = vunpack.c.l.b16 %v4266
        %v4312 = vunpack.c.h.b16 %v4266
        %v4313 = vunpack.c.l.b16 %v4267
        %v4314 = vunpack.c.h.b16 %v4267
        %v4315 = vunpack.c.l.b16 %v4268
        %v4316 = vunpack.c.h.b16 %v4268
        %v4317 = vpack.c.b16 %v4285, %v4285
        %v4318 = vpack.c.b16 %v4286, %v4286
        %v4319 = vpack.c.b16 %v4287, %v4287
        %v4320 = vpack.c.b16 %v4288, %v4288
        %v4321 = vpack.c.b16 %v4289, %v4289
        %v4322 = vpack.c.b16 %v4290, %v4290
        %v4323 = vpack.c.b16 %v4291, %v4291
        %v4324 = vpack.c.b16 %v4292, %v4292
        %v4325 = vpack.c.b16 %v4293, %v4293
        %v4326 = vpack.c.b16 %v4294, %v4294
        %v4327 = vpack.c.b16 %v4295, %v4295
        %v4328 = vpack.c.b16 %v4296, %v4296
        %v4329 = vpack.c.b16 %v4297, %v4297
        %v4330 = vpack.c.b16 %v4298, %v4298
        %v4331 = vpack.c.b16 %v4299, %v4299
        %v4332 = vpack.c.b16 %v4300, %v4300
        %v4333 = vpack.c.b16 %v4301, %v4301
        %v4334 = vpack.c.b16 %v4302, %v4302
        %v4335 = vpack.c.b16 %v4303, %v4303
        %v4336 = vpack.c.b16 %v4304, %v4304
        %v4337 = vpack.c.b16 %v4305, %v4305
        %v4338 = vpack.c.b16 %v4306, %v4306
        %v4339 = vpack.c.b16 %v4307, %v4307
        %v4340 = vpack.c.b16 %v4308, %v4308
        %v4341 = vpack.c.b16 %v4309, %v4309
        %v4342 = vpack.c.b16 %v4310, %v4310
        %v4343 = vpack.c.b16 %v4311, %v4311
        %v4344 = vpack.c.b16 %v4312, %v4312
        %v4345 = vpack.c.b16 %v4313, %v4313
        %v4346 = vpack.c.b16 %v4314, %v4314
        %v4347 = vpack.c.b16 %v4315, %v4315
        %v4348 = vpack.c.b16 %v4316, %v4316
        %4381 = vst [vmem:[%s261] sm:$0xf] %v4317
        %4382 = vst [vmem:[%s261 + $0x4] sm:$0xf] %v4318
        %4383 = vst [vmem:[%s261 + $0x8] sm:$0xf] %v4319
        %4384 = vst [vmem:[%s261 + $0xc] sm:$0xf] %v4320
        %4385 = vst [vmem:[%s261 + $0x10] sm:$0xf] %v4321
        %4386 = vst [vmem:[%s261 + $0x14] sm:$0xf] %v4322
        %4387 = vst [vmem:[%s261 + $0x18] sm:$0xf] %v4323
        %4388 = vst [vmem:[%s261 + $0x1c] sm:$0xf] %v4324
        %4389 = vst [vmem:[%s261 + $0x20] sm:$0xf] %v4325
        %4390 = vst [vmem:[%s261 + $0x24] sm:$0xf] %v4326
        %4391 = vst [vmem:[%s261 + $0x28] sm:$0xf] %v4327
        %4392 = vst [vmem:[%s261 + $0x2c] sm:$0xf] %v4328
        %4393 = vst [vmem:[%s261 + $0x30] sm:$0xf] %v4329
        %4394 = vst [vmem:[%s261 + $0x34] sm:$0xf] %v4330
        %4395 = vst [vmem:[%s261 + $0x38] sm:$0xf] %v4331
        %4396 = vst [vmem:[%s261 + $0x3c] sm:$0xf] %v4332
        %4397 = vst [vmem:[%s261 + $0x40] sm:$0xf] %v4333
        %4398 = vst [vmem:[%s261 + $0x44] sm:$0xf] %v4334
        %4399 = vst [vmem:[%s261 + $0x48] sm:$0xf] %v4335
        %4400 = vst [vmem:[%s261 + $0x4c] sm:$0xf] %v4336
        %4401 = vst [vmem:[%s261 + $0x50] sm:$0xf] %v4337
        %4402 = vst [vmem:[%s261 + $0x54] sm:$0xf] %v4338
        %4403 = vst [vmem:[%s261 + $0x58] sm:$0xf] %v4339
        %4404 = vst [vmem:[%s261 + $0x5c] sm:$0xf] %v4340
        %4405 = vst [vmem:[%s261 + $0x60] sm:$0xf] %v4341
        %4406 = vst [vmem:[%s261 + $0x64] sm:$0xf] %v4342
        %4407 = vst [vmem:[%s261 + $0x68] sm:$0xf] %v4343
        %4408 = vst [vmem:[%s261 + $0x6c] sm:$0xf] %v4344
        %4409 = vst [vmem:[%s261 + $0x70] sm:$0xf] %v4345
        %4410 = vst [vmem:[%s261 + $0x74] sm:$0xf] %v4346
        %4411 = vst [vmem:[%s261 + $0x78] sm:$0xf] %v4347
        %4412 = vst [vmem:[%s261 + $0x7c] sm:$0xf] %v4348
        %s4413 = sand.u32 %s164, 1
        %s4414 = scalar_lea.sflag [#allocation3], %s4413
        %s4415 = sand.u32 %s164, 1
        %s4416 = smul.addr %s4415, 128
        %s4417 = scalar_lea.vmem [#allocation2], %s4416
        // Predicated region
        $region45: #{tpu_custom_call.1} parent=43 // pred_check
          %p4418 = pneg %p174
        $region46: #{tpu_custom_call.1} parent=43 // pred_check_branch
          %4420 = sbr.rel (%p4418) target = $region48
        $region47: #{tpu_custom_call.1} parent=43 // pred_region
          %s4421 = smul.u32 32, %s20
          %s4423 = ssub.s32 2048, 2048
          %4424 = vsyncadd %s4414, %s4423
          %s4425 = smul.addr %s4421, 64
          %s4426 = scalar_lea.hbm %s6, %s4425
          %s4427 = sshll.u32 %s4417, 4
          %s4428 = int_to_ptr.vmem [resolvable:$true] %s4427
          %4433 = dma.vmem_to_hbm [thread:$0]  %s4428, 2048, %s4426, %s4414, 64, 64, 4
        $region48: #{tpu_custom_call.1} parent=43 // pred_fallthru
          _
      $region44: #{tpu_custom_call.1} parent=5 // pred_fallthru
        _
      %p4434 = scmp.le.s32.totalorder 2, %s15
      // Predicated region
      $region49: #{tpu_custom_call.1} parent=5 // pred_check
        %p4435 = pneg %p4434
      $region50: #{tpu_custom_call.1} parent=5 // pred_check_branch
        %4437 = sbr.rel (%p4435) target = $region52
      $region51: #{tpu_custom_call.1} parent=5 // pred_region
        %s4438 = ssub.s32 %s15, 2
        // Predicated region
        $region53: #{tpu_custom_call.1} parent=51 // pred_check
          %p4439 = pneg %p180
        $region54: #{tpu_custom_call.1} parent=51 // pred_check_branch
          %4441 = sbr.rel (%p4439) target = $region56
        $region55: #{tpu_custom_call.1} parent=51 // pred_region
          %s4442 = sand.u32 %s165, 1
          %s4443 = scalar_lea.sflag [#allocation3], %s4442
          %s4444 = sand.u32 %s165, 1
          %s4445 = smul.addr %s4444, 128
          %s4446 = scalar_lea.vmem [#allocation2], %s4445
          %4447 = dma.done %s4443, 2048
        $region56: #{tpu_custom_call.1} parent=51 // pred_fallthru
          _
      $region52: #{tpu_custom_call.1} parent=5 // pred_fallthru
        _
    $region6: #{tpu_custom_call.1} parent=1 // loop_footer
      %s19 = sadd.s32 1, %s15
    $region7: #{tpu_custom_call.1} parent=1 // loop_footer_branch
      %14 = sbr.rel target = $region3
    $region8: #{tpu_custom_call.1} parent=1 // loop_exit
      _
    %4448 = vsyncpa [#allocation3], 1
    %s4449 = scalar_lea.sflag [#allocation3], 1
    %4450 = vsyncpa %s4449, 1

</llo_original>
